<compile_context>
chip_gen: v5e
topology: v5e:2x2
jax: 0.10.0
libtpu: 0.0.40
codegen_flags: <defaults>
</compile_context>

<pallas_src>
import functools

import jax
import jax.numpy as jnp
from jax.experimental import pallas as pl
from jax.experimental.pallas import tpu as pltpu


# ----------------------------- fused forward kernel ---------------------------

def _fused_temporal_attention_kernel(
    xs_ref, bias_ref, wqkv_ref, bqkv_ref, wo_ref, bo_ref,
    o_ref, qkv_s, ctx_s, *, num_heads, head_dim):
  """One batch element per grid step; everything stays resident in VMEM."""
  D = num_heads * head_dim

  # ---- fused Q/K/V projection (BN + 1/sqrt(d) folded into weights) + ReLU ----
  # Single contraction-2D bf16 matmul, f32 accumulation; epilogue in f32.
  z = jnp.dot(xs_ref[0], wqkv_ref[...], preferred_element_type=jnp.float32)
  z = z + bqkv_ref[...]                              # (1, 3D) f32 broadcast
  qkv_s[...] = jnp.maximum(z, 0.0).astype(qkv_s.dtype)   # bf16 scratch (NT, 3D)

  # Additive validity bias (0 valid / ~-32768 invalid), hoisted above the head
  # loop and converted to f32 once so each head only pays one vadd.
  bias = bias_ref[...].astype(jnp.float32)           # (NT, NT)

  # ---- per-head masked temporal attention (short static loop, unrolled) ------
  for h in range(num_heads):
    c0 = h * head_dim
    q = qkv_s[:, c0:c0 + head_dim]                   # (NT, dh) bf16, pre-scaled
    k = qkv_s[:, D + c0:D + c0 + head_dim]           # (NT, dh) bf16
    v = qkv_s[:, 2 * D + c0:2 * D + c0 + head_dim]   # (NT, dh) bf16

    # lane-dense (NT, NT) scores: q @ k^T (TRANS_B pattern), bf16 in / f32 acc.
    s = jax.lax.dot_general(q, k, (((1,), (1,)), ((), ())),
                            preferred_element_type=jnp.float32)
    s = s + bias                                     # single vadd per head

    # numerically stable softmax over the lane axis, all f32; masked entries
    # underflow to exactly 0 (row max >= 0 since q,k >= 0 post-ReLU).
    s = s - jnp.max(s, axis=-1, keepdims=True)
    p = jnp.exp(s)
    p = p * pl.reciprocal(jnp.sum(p, axis=-1, keepdims=True), approx=True)

    # context = P @ V with bf16 MXU operands, f32 accumulation.
    ctx_s[:, c0:c0 + head_dim] = jnp.dot(
        p.astype(jnp.bfloat16), v,
        preferred_element_type=jnp.float32).astype(ctx_s.dtype)

  # ---- output FC (BN folded) + ReLU ------------------------------------------
  o = jnp.dot(ctx_s[...], wo_ref[...], preferred_element_type=jnp.float32)
  o_ref[0] = jnp.maximum(o + bo_ref[...], 0.0).astype(o_ref.dtype)


# ------------------------------ parameter folding ------------------------------

def _fold_bn(fc_params, eps=1e-5):
  """Fold eval-mode BatchNorm2d into the 1x1-conv weight/bias."""
  w, b, gamma, beta, mean, var = fc_params
  s = gamma * jax.lax.rsqrt(var + eps)
  w_f = w * s[None, :]
  b_f = (b - mean) * s + beta
  return w_f, b_f


# ------------------------------ module forward ---------------------------------

def temporal_attention(X, STE, params, K, d, mask=True):
  """X, STE: (B, T, N, D) with D = K*d. Returns (B, T, N, D)."""
  B, T, N, D = X.shape
  assert D == K * d
  # The torch module's mask broadcast (repeat by K*batch) is only consistent
  # when K == d; assert to avoid silently diverging from torch semantics.
  assert K == d, "TemporalAttention requires K == d"
  H = D // K            # number of chunks from torch.split(., K, dim=-1)
  NT = T * N
  scale = 1.0 / (float(d) ** 0.5)

  # Fold BN into the 1x1-conv weights; fold the 1/sqrt(d) score scale into the
  # Q projection (ReLU is positive-homogeneous); fuse q/k/v column-wise.
  wq, bq = _fold_bn(params["fc_q"])
  wk, bk = _fold_bn(params["fc_k"])
  wv, bv = _fold_bn(params["fc_v"])
  wo, bo = _fold_bn(params["fc_out"])
  wq = wq * scale
  bq = bq * scale
  w_qkv = jnp.concatenate([wq, wk, wv], axis=1).astype(jnp.bfloat16)  # (2D, 3D)
  b_qkv = jnp.concatenate([bq, bk, bv])[None, :]                      # (1, 3D) f32
  wo_b = wo.astype(jnp.bfloat16)                                      # (D, D)
  bo_b = bo[None, :]                                                  # (1, D) f32

  # Additive validity bias over flattened rows r = t*N + n: 0 where the key is
  # the same node (and causally visible when mask=True), -2^15+1 elsewhere.
  # Built once here (constant-folded by XLA), shipped as bf16 (quarter the old
  # f32 mask DMA).
  r = jnp.arange(NT, dtype=jnp.int32)
  valid = (r[:, None] % N) == (r[None, :] % N)
  if mask:
    valid = valid & ((r[:, None] // N) >= (r[None, :] // N))   # tril over time
  bias = jnp.where(valid, 0.0, -(2.0 ** 15) + 1.0).astype(jnp.bfloat16)

  # Present X‖STE as a single (B, NT, 2D) bf16 slab (rows ordered (t, n)), so
  # the projection is one contraction-2D matmul and the input DMA is bf16.
  xs = jnp.concatenate([X, STE], axis=-1).reshape(B, NT, 2 * D)
  xs = xs.astype(jnp.bfloat16)

  kern = functools.partial(
      _fused_temporal_attention_kernel, num_heads=H, head_dim=K)

  full = lambda b: (0, 0)
  out = pl.pallas_call(
      kern,
      out_shape=jax.ShapeDtypeStruct((B, NT, D), jnp.float32),
      grid_spec=pltpu.PrefetchScalarGridSpec(
          num_scalar_prefetch=0,
          grid=(B,),
          in_specs=[
              pl.BlockSpec((1, NT, 2 * D), lambda b: (b, 0, 0)),  # X‖STE slab
              pl.BlockSpec((NT, NT), full),                       # additive bias mask
              pl.BlockSpec((2 * D, 3 * D), full),                 # fused W_qkv
              pl.BlockSpec((1, 3 * D), full),                     # folded bias qkv
              pl.BlockSpec((D, D), full),                         # W_out
              pl.BlockSpec((1, D), full),                         # folded bias out
          ],
          out_specs=pl.BlockSpec((1, NT, D), lambda b: (b, 0, 0)),
          scratch_shapes=[
              pltpu.VMEM((NT, 3 * D), jnp.bfloat16),              # relu(qkv), bf16
              pltpu.VMEM((NT, D), jnp.bfloat16),                  # attn context, bf16
          ],
      ),
      compiler_params=pltpu.CompilerParams(
          dimension_semantics=("parallel",),
          vmem_limit_bytes=32 * 1024 * 1024,
      ),
  )(xs, bias, w_qkv, b_qkv, wo_b, bo_b)

  return out.reshape(B, T, N, D)


# ------------------------------ parameter init ----------------------------------

def _fc_params(key, cin, cout):
  # xavier_uniform_ for the 1x1 conv weight, zeros bias, default BN params.
  limit = (6.0 / (cin + cout)) ** 0.5
  w = jax.random.uniform(key, (cin, cout), jnp.float32, -limit, limit)
  b = jnp.zeros((cout,), jnp.float32)
  gamma = jnp.ones((cout,), jnp.float32)
  beta = jnp.zeros((cout,), jnp.float32)
  mean = jnp.zeros((cout,), jnp.float32)
  var = jnp.ones((cout,), jnp.float32)
  return (w, b, gamma, beta, mean, var)


def init_params(key, K, d):
  D = K * d
  k1, k2, k3, k4 = jax.random.split(key, 4)
  return {
      "fc_q": _fc_params(k1, 2 * D, D),
      "fc_k": _fc_params(k2, 2 * D, D),
      "fc_v": _fc_params(k3, 2 * D, D),
      "fc_out": _fc_params(k4, D, D),
  }


# ------------------------------ pure-JAX reference -------------------------------

def _reference(X, STE, params, K, d, mask):
  def fc(x, p):
    w, b, gamma, beta, mean, var = p
    z = x @ w + b
    z = (z - mean) * (gamma * jax.lax.rsqrt(var + 1e-5)) + beta
    return jnp.maximum(z, 0.0)

  B, T, N, D = X.shape
  H = D // K
  x = jnp.concatenate([X, STE], axis=-1)
  q, k, v = fc(x, params["fc_q"]), fc(x, params["fc_k"]), fc(x, params["fc_v"])

  def heads(t):  # (B,T,N,D) -> (H*B, N, T, K), stacked h*B + b like torch.cat(split)
    t = t.reshape(B, T, N, H, K)
    return jnp.transpose(t, (3, 0, 2, 1, 4)).reshape(H * B, N, T, K)

  qh, kh, vh = heads(q), heads(k), heads(v)
  s = jnp.einsum("bntk,bnsk->bnts", qh, kh) / (d ** 0.5)
  if mask:
    tri = jnp.tril(jnp.ones((T, T), bool))
    s = jnp.where(tri[None, None], s, jnp.float32(-(2 ** 15) + 1))
  p = jax.nn.softmax(s, axis=-1)
  o = jnp.einsum("bnts,bnsk->bntk", p, vh).reshape(H, B, N, T, K)
  o = jnp.transpose(o, (1, 3, 2, 0, 4)).reshape(B, T, N, D)
  return fc(o, params["fc_out"])


if __name__ == "__main__":
  key = jax.random.PRNGKey(0)
  # Note: the PyTorch module is only fully consistent when K == d.
  B, T, N = 2, 8, 16
  K, d = 8, 8
  D = K * d  # 64

  kx, ks, kp = jax.random.split(key, 3)
  X = jax.random.normal(kx, (B, T, N, D), jnp.float32)
  STE = jax.random.normal(ks, (B, T, N, D), jnp.float32)
  params = init_params(kp, K, d)

  fwd = jax.jit(functools.partial(temporal_attention, K=K, d=d, mask=True))
  out = jax.block_until_ready(fwd(X, STE, params))

  assert out.shape == (B, T, N, D)
  assert bool(jnp.all(jnp.isfinite(out)))

  # Check against an f32 pure-JAX reference (tolerance covers bf16 operands and
  # the approx EUP reciprocal in the softmax normalisation).
  ref = _reference(X, STE, params, K, d, mask=True)
  rel = float(jnp.linalg.norm(out - ref) / (jnp.linalg.norm(ref) + 1e-12))
  assert rel < 5e-2, f"relative error too large: {rel}"

  print("KERNEL_OK")
</pallas_src>

<mosaic_0001>
module attributes {stable_mosaic.version = 11 : i64} {
  func.func @_fused_temporal_attention_kernel(%arg0: i32, %arg1: memref<1x128x128xbf16, #tpu.memory_space<vmem>>, %arg2: memref<128x128xbf16, #tpu.memory_space<vmem>>, %arg3: memref<128x192xbf16, #tpu.memory_space<vmem>>, %arg4: memref<1x192xf32, #tpu.memory_space<vmem>>, %arg5: memref<64x64xbf16, #tpu.memory_space<vmem>>, %arg6: memref<1x64xf32, #tpu.memory_space<vmem>>, %arg7: memref<1x128x64xf32, #tpu.memory_space<vmem>>, %arg8: memref<128x192xbf16, #tpu.memory_space<vmem>>, %arg9: memref<128x64xbf16, #tpu.memory_space<vmem>>) attributes {dimension_semantics = [#tpu.dimension_semantics<parallel>], iteration_bounds = array<i64: 2>, scalar_prefetch = 0 : i64, scratch_operands = 2 : i64, tpu.core_type = #tpu.core_type<tc>, window_params = [{transform_indices = @transform_0, window_bounds = array<i64: 1, 128, 128>}, {pipeline_mode = #tpu.pipeline_mode<synchronous>, transform_indices = @transform_1, window_bounds = array<i64: 128, 128>}, {pipeline_mode = #tpu.pipeline_mode<synchronous>, transform_indices = @transform_2, window_bounds = array<i64: 128, 192>}, {pipeline_mode = #tpu.pipeline_mode<synchronous>, transform_indices = @transform_3, window_bounds = array<i64: 1, 192>}, {pipeline_mode = #tpu.pipeline_mode<synchronous>, transform_indices = @transform_4, window_bounds = array<i64: 64, 64>}, {pipeline_mode = #tpu.pipeline_mode<synchronous>, transform_indices = @transform_5, window_bounds = array<i64: 1, 64>}, {transform_indices = @transform_6, window_bounds = array<i64: 1, 128, 64>}]} {
    %c0 = arith.constant 0 : index
    %c0_0 = arith.constant 0 : index
    %c0_1 = arith.constant 0 : index
    %0 = vector.load %arg1[%c0, %c0_0, %c0_1] : memref<1x128x128xbf16, #tpu.memory_space<vmem>>, vector<1x128x128xbf16>
    %1 = vector.shape_cast %0 : vector<1x128x128xbf16> to vector<128x128xbf16>
    %c0_2 = arith.constant 0 : index
    %c0_3 = arith.constant 0 : index
    %2 = vector.load %arg3[%c0_2, %c0_3] : memref<128x192xbf16, #tpu.memory_space<vmem>>, vector<128x192xbf16>
    %cst = arith.constant dense<0.000000e+00> : vector<128x192xf32>
    %3 = tpu.matmul %1, %2, %cst {dimension_numbers = #tpu.dot_dimension_numbers<[1], [0], [0], [1], [0, 0, 1, 1], [], []>} : vector<128x128xbf16>, vector<128x192xbf16>, vector<128x192xf32> -> vector<128x192xf32>
    %c0_4 = arith.constant 0 : index
    %c0_5 = arith.constant 0 : index
    %4 = vector.load %arg4[%c0_4, %c0_5] : memref<1x192xf32, #tpu.memory_space<vmem>>, vector<1x192xf32>
    %5 = vector.broadcast %4 : vector<1x192xf32> to vector<128x192xf32>
    %6 = arith.addf %3, %5 : vector<128x192xf32>
    %cst_6 = arith.constant 0.000000e+00 : f32
    %7 = vector.broadcast %cst_6 : f32 to vector<128x192xf32>
    %8 = arith.maximumf %6, %7 : vector<128x192xf32>
    %9 = arith.truncf %8 : vector<128x192xf32> to vector<128x192xbf16>
    %c0_7 = arith.constant 0 : index
    %c0_8 = arith.constant 0 : index
    %10 = vector.load %arg8[%c0_7, %c0_8] : memref<128x192xbf16, #tpu.memory_space<vmem>>, vector<128x192xbf16>
    tpu.vector_store %arg8[%c0_7, %c0_8], %9 {strides = array<i32>} : memref<128x192xbf16, #tpu.memory_space<vmem>>, vector<128x192xbf16>,
    %c0_9 = arith.constant 0 : index
    %c0_10 = arith.constant 0 : index
    %11 = vector.load %arg2[%c0_9, %c0_10] : memref<128x128xbf16, #tpu.memory_space<vmem>>, vector<128x128xbf16>
    %12 = arith.extf %11 : vector<128x128xbf16> to vector<128x128xf32>
    %c0_11 = arith.constant 0 : index
    %c0_12 = arith.constant 0 : index
    %13 = vector.load %arg8[%c0_11, %c0_12] : memref<128x192xbf16, #tpu.memory_space<vmem>>, vector<128x8xbf16>
    %c0_13 = arith.constant 0 : index
    %c64 = arith.constant 64 : index
    %14 = vector.load %arg8[%c0_13, %c64] : memref<128x192xbf16, #tpu.memory_space<vmem>>, vector<128x8xbf16>
    %c0_14 = arith.constant 0 : index
    %c128 = arith.constant 128 : index
    %15 = vector.load %arg8[%c0_14, %c128] : memref<128x192xbf16, #tpu.memory_space<vmem>>, vector<128x8xbf16>
    %cst_15 = arith.constant dense<0.000000e+00> : vector<128x128xf32>
    %16 = tpu.matmul %13, %14, %cst_15 {dimension_numbers = #tpu.dot_dimension_numbers<[1], [1], [0], [0], [0, 0, 1, 0], [], []>} : vector<128x8xbf16>, vector<128x8xbf16>, vector<128x128xf32> -> vector<128x128xf32>
    %17 = arith.addf %16, %12 : vector<128x128xf32>
    %cst_16 = arith.constant dense<0xFF800000> : vector<128xf32>
    %18 = vector.multi_reduction <maximumf>, %17, %cst_16 [1] : vector<128x128xf32> to vector<128xf32>
    %19 = vector.shape_cast %18 : vector<128xf32> to vector<128x1xf32>
    %20 = vector.broadcast %19 : vector<128x1xf32> to vector<128x128xf32>
    %21 = arith.subf %17, %20 : vector<128x128xf32>
    %22 = math.exp %21 : vector<128x128xf32>
    %cst_17 = arith.constant dense<0.000000e+00> : vector<128xf32>
    %23 = vector.multi_reduction <add>, %22, %cst_17 [1] : vector<128x128xf32> to vector<128xf32>
    %24 = vector.shape_cast %23 : vector<128xf32> to vector<128x1xf32>
    %25 = tpu.reciprocal %24 {approx = true} : vector<128x1xf32> -> vector<128x1xf32>
    %26 = vector.broadcast %25 : vector<128x1xf32> to vector<128x128xf32>
    %27 = arith.mulf %22, %26 : vector<128x128xf32>
    %28 = arith.truncf %27 : vector<128x128xf32> to vector<128x128xbf16>
    %cst_18 = arith.constant dense<0.000000e+00> : vector<128x8xf32>
    %29 = tpu.matmul %28, %15, %cst_18 {dimension_numbers = #tpu.dot_dimension_numbers<[1], [0], [0], [1], [0, 0, 1, 1], [], []>} : vector<128x128xbf16>, vector<128x8xbf16>, vector<128x8xf32> -> vector<128x8xf32>
    %30 = arith.truncf %29 : vector<128x8xf32> to vector<128x8xbf16>
    %c0_19 = arith.constant 0 : index
    %c0_20 = arith.constant 0 : index
    %31 = vector.load %arg9[%c0_19, %c0_20] : memref<128x64xbf16, #tpu.memory_space<vmem>>, vector<128x8xbf16>
    tpu.vector_store %arg9[%c0_19, %c0_20], %30 {strides = array<i32>} : memref<128x64xbf16, #tpu.memory_space<vmem>>, vector<128x8xbf16>,
    %c0_21 = arith.constant 0 : index
    %c8 = arith.constant 8 : index
    %32 = vector.load %arg8[%c0_21, %c8] : memref<128x192xbf16, #tpu.memory_space<vmem>>, vector<128x8xbf16>
    %c0_22 = arith.constant 0 : index
    %c72 = arith.constant 72 : index
    %33 = vector.load %arg8[%c0_22, %c72] : memref<128x192xbf16, #tpu.memory_space<vmem>>, vector<128x8xbf16>
    %c0_23 = arith.constant 0 : index
    %c136 = arith.constant 136 : index
    %34 = vector.load %arg8[%c0_23, %c136] : memref<128x192xbf16, #tpu.memory_space<vmem>>, vector<128x8xbf16>
    %cst_24 = arith.constant dense<0.000000e+00> : vector<128x128xf32>
    %35 = tpu.matmul %32, %33, %cst_24 {dimension_numbers = #tpu.dot_dimension_numbers<[1], [1], [0], [0], [0, 0, 1, 0], [], []>} : vector<128x8xbf16>, vector<128x8xbf16>, vector<128x128xf32> -> vector<128x128xf32>
    %36 = arith.addf %35, %12 : vector<128x128xf32>
    %cst_25 = arith.constant dense<0xFF800000> : vector<128xf32>
    %37 = vector.multi_reduction <maximumf>, %36, %cst_25 [1] : vector<128x128xf32> to vector<128xf32>
    %38 = vector.shape_cast %37 : vector<128xf32> to vector<128x1xf32>
    %39 = vector.broadcast %38 : vector<128x1xf32> to vector<128x128xf32>
    %40 = arith.subf %36, %39 : vector<128x128xf32>
    %41 = math.exp %40 : vector<128x128xf32>
    %cst_26 = arith.constant dense<0.000000e+00> : vector<128xf32>
    %42 = vector.multi_reduction <add>, %41, %cst_26 [1] : vector<128x128xf32> to vector<128xf32>
    %43 = vector.shape_cast %42 : vector<128xf32> to vector<128x1xf32>
    %44 = tpu.reciprocal %43 {approx = true} : vector<128x1xf32> -> vector<128x1xf32>
    %45 = vector.broadcast %44 : vector<128x1xf32> to vector<128x128xf32>
    %46 = arith.mulf %41, %45 : vector<128x128xf32>
    %47 = arith.truncf %46 : vector<128x128xf32> to vector<128x128xbf16>
    %cst_27 = arith.constant dense<0.000000e+00> : vector<128x8xf32>
    %48 = tpu.matmul %47, %34, %cst_27 {dimension_numbers = #tpu.dot_dimension_numbers<[1], [0], [0], [1], [0, 0, 1, 1], [], []>} : vector<128x128xbf16>, vector<128x8xbf16>, vector<128x8xf32> -> vector<128x8xf32>
    %49 = arith.truncf %48 : vector<128x8xf32> to vector<128x8xbf16>
    %c0_28 = arith.constant 0 : index
    %c8_29 = arith.constant 8 : index
    %50 = vector.load %arg9[%c0_28, %c8_29] : memref<128x64xbf16, #tpu.memory_space<vmem>>, vector<128x8xbf16>
    tpu.vector_store %arg9[%c0_28, %c8_29], %49 {strides = array<i32>} : memref<128x64xbf16, #tpu.memory_space<vmem>>, vector<128x8xbf16>,
    %c0_30 = arith.constant 0 : index
    %c16 = arith.constant 16 : index
    %51 = vector.load %arg8[%c0_30, %c16] : memref<128x192xbf16, #tpu.memory_space<vmem>>, vector<128x8xbf16>
    %c0_31 = arith.constant 0 : index
    %c80 = arith.constant 80 : index
    %52 = vector.load %arg8[%c0_31, %c80] : memref<128x192xbf16, #tpu.memory_space<vmem>>, vector<128x8xbf16>
    %c0_32 = arith.constant 0 : index
    %c144 = arith.constant 144 : index
    %53 = vector.load %arg8[%c0_32, %c144] : memref<128x192xbf16, #tpu.memory_space<vmem>>, vector<128x8xbf16>
    %cst_33 = arith.constant dense<0.000000e+00> : vector<128x128xf32>
    %54 = tpu.matmul %51, %52, %cst_33 {dimension_numbers = #tpu.dot_dimension_numbers<[1], [1], [0], [0], [0, 0, 1, 0], [], []>} : vector<128x8xbf16>, vector<128x8xbf16>, vector<128x128xf32> -> vector<128x128xf32>
    %55 = arith.addf %54, %12 : vector<128x128xf32>
    %cst_34 = arith.constant dense<0xFF800000> : vector<128xf32>
    %56 = vector.multi_reduction <maximumf>, %55, %cst_34 [1] : vector<128x128xf32> to vector<128xf32>
    %57 = vector.shape_cast %56 : vector<128xf32> to vector<128x1xf32>
    %58 = vector.broadcast %57 : vector<128x1xf32> to vector<128x128xf32>
    %59 = arith.subf %55, %58 : vector<128x128xf32>
    %60 = math.exp %59 : vector<128x128xf32>
    %cst_35 = arith.constant dense<0.000000e+00> : vector<128xf32>
    %61 = vector.multi_reduction <add>, %60, %cst_35 [1] : vector<128x128xf32> to vector<128xf32>
    %62 = vector.shape_cast %61 : vector<128xf32> to vector<128x1xf32>
    %63 = tpu.reciprocal %62 {approx = true} : vector<128x1xf32> -> vector<128x1xf32>
    %64 = vector.broadcast %63 : vector<128x1xf32> to vector<128x128xf32>
    %65 = arith.mulf %60, %64 : vector<128x128xf32>
    %66 = arith.truncf %65 : vector<128x128xf32> to vector<128x128xbf16>
    %cst_36 = arith.constant dense<0.000000e+00> : vector<128x8xf32>
    %67 = tpu.matmul %66, %53, %cst_36 {dimension_numbers = #tpu.dot_dimension_numbers<[1], [0], [0], [1], [0, 0, 1, 1], [], []>} : vector<128x128xbf16>, vector<128x8xbf16>, vector<128x8xf32> -> vector<128x8xf32>
    %68 = arith.truncf %67 : vector<128x8xf32> to vector<128x8xbf16>
    %c0_37 = arith.constant 0 : index
    %c16_38 = arith.constant 16 : index
    %69 = vector.load %arg9[%c0_37, %c16_38] : memref<128x64xbf16, #tpu.memory_space<vmem>>, vector<128x8xbf16>
    tpu.vector_store %arg9[%c0_37, %c16_38], %68 {strides = array<i32>} : memref<128x64xbf16, #tpu.memory_space<vmem>>, vector<128x8xbf16>,
    %c0_39 = arith.constant 0 : index
    %c24 = arith.constant 24 : index
    %70 = vector.load %arg8[%c0_39, %c24] : memref<128x192xbf16, #tpu.memory_space<vmem>>, vector<128x8xbf16>
    %c0_40 = arith.constant 0 : index
    %c88 = arith.constant 88 : index
    %71 = vector.load %arg8[%c0_40, %c88] : memref<128x192xbf16, #tpu.memory_space<vmem>>, vector<128x8xbf16>
    %c0_41 = arith.constant 0 : index
    %c152 = arith.constant 152 : index
    %72 = vector.load %arg8[%c0_41, %c152] : memref<128x192xbf16, #tpu.memory_space<vmem>>, vector<128x8xbf16>
    %cst_42 = arith.constant dense<0.000000e+00> : vector<128x128xf32>
    %73 = tpu.matmul %70, %71, %cst_42 {dimension_numbers = #tpu.dot_dimension_numbers<[1], [1], [0], [0], [0, 0, 1, 0], [], []>} : vector<128x8xbf16>, vector<128x8xbf16>, vector<128x128xf32> -> vector<128x128xf32>
    %74 = arith.addf %73, %12 : vector<128x128xf32>
    %cst_43 = arith.constant dense<0xFF800000> : vector<128xf32>
    %75 = vector.multi_reduction <maximumf>, %74, %cst_43 [1] : vector<128x128xf32> to vector<128xf32>
    %76 = vector.shape_cast %75 : vector<128xf32> to vector<128x1xf32>
    %77 = vector.broadcast %76 : vector<128x1xf32> to vector<128x128xf32>
    %78 = arith.subf %74, %77 : vector<128x128xf32>
    %79 = math.exp %78 : vector<128x128xf32>
    %cst_44 = arith.constant dense<0.000000e+00> : vector<128xf32>
    %80 = vector.multi_reduction <add>, %79, %cst_44 [1] : vector<128x128xf32> to vector<128xf32>
    %81 = vector.shape_cast %80 : vector<128xf32> to vector<128x1xf32>
    %82 = tpu.reciprocal %81 {approx = true} : vector<128x1xf32> -> vector<128x1xf32>
    %83 = vector.broadcast %82 : vector<128x1xf32> to vector<128x128xf32>
    %84 = arith.mulf %79, %83 : vector<128x128xf32>
    %85 = arith.truncf %84 : vector<128x128xf32> to vector<128x128xbf16>
    %cst_45 = arith.constant dense<0.000000e+00> : vector<128x8xf32>
    %86 = tpu.matmul %85, %72, %cst_45 {dimension_numbers = #tpu.dot_dimension_numbers<[1], [0], [0], [1], [0, 0, 1, 1], [], []>} : vector<128x128xbf16>, vector<128x8xbf16>, vector<128x8xf32> -> vector<128x8xf32>
    %87 = arith.truncf %86 : vector<128x8xf32> to vector<128x8xbf16>
    %c0_46 = arith.constant 0 : index
    %c24_47 = arith.constant 24 : index
    %88 = vector.load %arg9[%c0_46, %c24_47] : memref<128x64xbf16, #tpu.memory_space<vmem>>, vector<128x8xbf16>
    tpu.vector_store %arg9[%c0_46, %c24_47], %87 {strides = array<i32>} : memref<128x64xbf16, #tpu.memory_space<vmem>>, vector<128x8xbf16>,
    %c0_48 = arith.constant 0 : index
    %c32 = arith.constant 32 : index
    %89 = vector.load %arg8[%c0_48, %c32] : memref<128x192xbf16, #tpu.memory_space<vmem>>, vector<128x8xbf16>
    %c0_49 = arith.constant 0 : index
    %c96 = arith.constant 96 : index
    %90 = vector.load %arg8[%c0_49, %c96] : memref<128x192xbf16, #tpu.memory_space<vmem>>, vector<128x8xbf16>
    %c0_50 = arith.constant 0 : index
    %c160 = arith.constant 160 : index
    %91 = vector.load %arg8[%c0_50, %c160] : memref<128x192xbf16, #tpu.memory_space<vmem>>, vector<128x8xbf16>
    %cst_51 = arith.constant dense<0.000000e+00> : vector<128x128xf32>
    %92 = tpu.matmul %89, %90, %cst_51 {dimension_numbers = #tpu.dot_dimension_numbers<[1], [1], [0], [0], [0, 0, 1, 0], [], []>} : vector<128x8xbf16>, vector<128x8xbf16>, vector<128x128xf32> -> vector<128x128xf32>
    %93 = arith.addf %92, %12 : vector<128x128xf32>
    %cst_52 = arith.constant dense<0xFF800000> : vector<128xf32>
    %94 = vector.multi_reduction <maximumf>, %93, %cst_52 [1] : vector<128x128xf32> to vector<128xf32>
    %95 = vector.shape_cast %94 : vector<128xf32> to vector<128x1xf32>
    %96 = vector.broadcast %95 : vector<128x1xf32> to vector<128x128xf32>
    %97 = arith.subf %93, %96 : vector<128x128xf32>
    %98 = math.exp %97 : vector<128x128xf32>
    %cst_53 = arith.constant dense<0.000000e+00> : vector<128xf32>
    %99 = vector.multi_reduction <add>, %98, %cst_53 [1] : vector<128x128xf32> to vector<128xf32>
    %100 = vector.shape_cast %99 : vector<128xf32> to vector<128x1xf32>
    %101 = tpu.reciprocal %100 {approx = true} : vector<128x1xf32> -> vector<128x1xf32>
    %102 = vector.broadcast %101 : vector<128x1xf32> to vector<128x128xf32>
    %103 = arith.mulf %98, %102 : vector<128x128xf32>
    %104 = arith.truncf %103 : vector<128x128xf32> to vector<128x128xbf16>
    %cst_54 = arith.constant dense<0.000000e+00> : vector<128x8xf32>
    %105 = tpu.matmul %104, %91, %cst_54 {dimension_numbers = #tpu.dot_dimension_numbers<[1], [0], [0], [1], [0, 0, 1, 1], [], []>} : vector<128x128xbf16>, vector<128x8xbf16>, vector<128x8xf32> -> vector<128x8xf32>
    %106 = arith.truncf %105 : vector<128x8xf32> to vector<128x8xbf16>
    %c0_55 = arith.constant 0 : index
    %c32_56 = arith.constant 32 : index
    %107 = vector.load %arg9[%c0_55, %c32_56] : memref<128x64xbf16, #tpu.memory_space<vmem>>, vector<128x8xbf16>
    tpu.vector_store %arg9[%c0_55, %c32_56], %106 {strides = array<i32>} : memref<128x64xbf16, #tpu.memory_space<vmem>>, vector<128x8xbf16>,
    %c0_57 = arith.constant 0 : index
    %c40 = arith.constant 40 : index
    %108 = vector.load %arg8[%c0_57, %c40] : memref<128x192xbf16, #tpu.memory_space<vmem>>, vector<128x8xbf16>
    %c0_58 = arith.constant 0 : index
    %c104 = arith.constant 104 : index
    %109 = vector.load %arg8[%c0_58, %c104] : memref<128x192xbf16, #tpu.memory_space<vmem>>, vector<128x8xbf16>
    %c0_59 = arith.constant 0 : index
    %c168 = arith.constant 168 : index
    %110 = vector.load %arg8[%c0_59, %c168] : memref<128x192xbf16, #tpu.memory_space<vmem>>, vector<128x8xbf16>
    %cst_60 = arith.constant dense<0.000000e+00> : vector<128x128xf32>
    %111 = tpu.matmul %108, %109, %cst_60 {dimension_numbers = #tpu.dot_dimension_numbers<[1], [1], [0], [0], [0, 0, 1, 0], [], []>} : vector<128x8xbf16>, vector<128x8xbf16>, vector<128x128xf32> -> vector<128x128xf32>
    %112 = arith.addf %111, %12 : vector<128x128xf32>
    %cst_61 = arith.constant dense<0xFF800000> : vector<128xf32>
    %113 = vector.multi_reduction <maximumf>, %112, %cst_61 [1] : vector<128x128xf32> to vector<128xf32>
    %114 = vector.shape_cast %113 : vector<128xf32> to vector<128x1xf32>
    %115 = vector.broadcast %114 : vector<128x1xf32> to vector<128x128xf32>
    %116 = arith.subf %112, %115 : vector<128x128xf32>
    %117 = math.exp %116 : vector<128x128xf32>
    %cst_62 = arith.constant dense<0.000000e+00> : vector<128xf32>
    %118 = vector.multi_reduction <add>, %117, %cst_62 [1] : vector<128x128xf32> to vector<128xf32>
    %119 = vector.shape_cast %118 : vector<128xf32> to vector<128x1xf32>
    %120 = tpu.reciprocal %119 {approx = true} : vector<128x1xf32> -> vector<128x1xf32>
    %121 = vector.broadcast %120 : vector<128x1xf32> to vector<128x128xf32>
    %122 = arith.mulf %117, %121 : vector<128x128xf32>
    %123 = arith.truncf %122 : vector<128x128xf32> to vector<128x128xbf16>
    %cst_63 = arith.constant dense<0.000000e+00> : vector<128x8xf32>
    %124 = tpu.matmul %123, %110, %cst_63 {dimension_numbers = #tpu.dot_dimension_numbers<[1], [0], [0], [1], [0, 0, 1, 1], [], []>} : vector<128x128xbf16>, vector<128x8xbf16>, vector<128x8xf32> -> vector<128x8xf32>
    %125 = arith.truncf %124 : vector<128x8xf32> to vector<128x8xbf16>
    %c0_64 = arith.constant 0 : index
    %c40_65 = arith.constant 40 : index
    %126 = vector.load %arg9[%c0_64, %c40_65] : memref<128x64xbf16, #tpu.memory_space<vmem>>, vector<128x8xbf16>
    tpu.vector_store %arg9[%c0_64, %c40_65], %125 {strides = array<i32>} : memref<128x64xbf16, #tpu.memory_space<vmem>>, vector<128x8xbf16>,
    %c0_66 = arith.constant 0 : index
    %c48 = arith.constant 48 : index
    %127 = vector.load %arg8[%c0_66, %c48] : memref<128x192xbf16, #tpu.memory_space<vmem>>, vector<128x8xbf16>
    %c0_67 = arith.constant 0 : index
    %c112 = arith.constant 112 : index
    %128 = vector.load %arg8[%c0_67, %c112] : memref<128x192xbf16, #tpu.memory_space<vmem>>, vector<128x8xbf16>
    %c0_68 = arith.constant 0 : index
    %c176 = arith.constant 176 : index
    %129 = vector.load %arg8[%c0_68, %c176] : memref<128x192xbf16, #tpu.memory_space<vmem>>, vector<128x8xbf16>
    %cst_69 = arith.constant dense<0.000000e+00> : vector<128x128xf32>
    %130 = tpu.matmul %127, %128, %cst_69 {dimension_numbers = #tpu.dot_dimension_numbers<[1], [1], [0], [0], [0, 0, 1, 0], [], []>} : vector<128x8xbf16>, vector<128x8xbf16>, vector<128x128xf32> -> vector<128x128xf32>
    %131 = arith.addf %130, %12 : vector<128x128xf32>
    %cst_70 = arith.constant dense<0xFF800000> : vector<128xf32>
    %132 = vector.multi_reduction <maximumf>, %131, %cst_70 [1] : vector<128x128xf32> to vector<128xf32>
    %133 = vector.shape_cast %132 : vector<128xf32> to vector<128x1xf32>
    %134 = vector.broadcast %133 : vector<128x1xf32> to vector<128x128xf32>
    %135 = arith.subf %131, %134 : vector<128x128xf32>
    %136 = math.exp %135 : vector<128x128xf32>
    %cst_71 = arith.constant dense<0.000000e+00> : vector<128xf32>
    %137 = vector.multi_reduction <add>, %136, %cst_71 [1] : vector<128x128xf32> to vector<128xf32>
    %138 = vector.shape_cast %137 : vector<128xf32> to vector<128x1xf32>
    %139 = tpu.reciprocal %138 {approx = true} : vector<128x1xf32> -> vector<128x1xf32>
    %140 = vector.broadcast %139 : vector<128x1xf32> to vector<128x128xf32>
    %141 = arith.mulf %136, %140 : vector<128x128xf32>
    %142 = arith.truncf %141 : vector<128x128xf32> to vector<128x128xbf16>
    %cst_72 = arith.constant dense<0.000000e+00> : vector<128x8xf32>
    %143 = tpu.matmul %142, %129, %cst_72 {dimension_numbers = #tpu.dot_dimension_numbers<[1], [0], [0], [1], [0, 0, 1, 1], [], []>} : vector<128x128xbf16>, vector<128x8xbf16>, vector<128x8xf32> -> vector<128x8xf32>
    %144 = arith.truncf %143 : vector<128x8xf32> to vector<128x8xbf16>
    %c0_73 = arith.constant 0 : index
    %c48_74 = arith.constant 48 : index
    %145 = vector.load %arg9[%c0_73, %c48_74] : memref<128x64xbf16, #tpu.memory_space<vmem>>, vector<128x8xbf16>
    tpu.vector_store %arg9[%c0_73, %c48_74], %144 {strides = array<i32>} : memref<128x64xbf16, #tpu.memory_space<vmem>>, vector<128x8xbf16>,
    %c0_75 = arith.constant 0 : index
    %c56 = arith.constant 56 : index
    %146 = vector.load %arg8[%c0_75, %c56] : memref<128x192xbf16, #tpu.memory_space<vmem>>, vector<128x8xbf16>
    %c0_76 = arith.constant 0 : index
    %c120 = arith.constant 120 : index
    %147 = vector.load %arg8[%c0_76, %c120] : memref<128x192xbf16, #tpu.memory_space<vmem>>, vector<128x8xbf16>
    %c0_77 = arith.constant 0 : index
    %c184 = arith.constant 184 : index
    %148 = vector.load %arg8[%c0_77, %c184] : memref<128x192xbf16, #tpu.memory_space<vmem>>, vector<128x8xbf16>
    %cst_78 = arith.constant dense<0.000000e+00> : vector<128x128xf32>
    %149 = tpu.matmul %146, %147, %cst_78 {dimension_numbers = #tpu.dot_dimension_numbers<[1], [1], [0], [0], [0, 0, 1, 0], [], []>} : vector<128x8xbf16>, vector<128x8xbf16>, vector<128x128xf32> -> vector<128x128xf32>
    %150 = arith.addf %149, %12 : vector<128x128xf32>
    %cst_79 = arith.constant dense<0xFF800000> : vector<128xf32>
    %151 = vector.multi_reduction <maximumf>, %150, %cst_79 [1] : vector<128x128xf32> to vector<128xf32>
    %152 = vector.shape_cast %151 : vector<128xf32> to vector<128x1xf32>
    %153 = vector.broadcast %152 : vector<128x1xf32> to vector<128x128xf32>
    %154 = arith.subf %150, %153 : vector<128x128xf32>
    %155 = math.exp %154 : vector<128x128xf32>
    %cst_80 = arith.constant dense<0.000000e+00> : vector<128xf32>
    %156 = vector.multi_reduction <add>, %155, %cst_80 [1] : vector<128x128xf32> to vector<128xf32>
    %157 = vector.shape_cast %156 : vector<128xf32> to vector<128x1xf32>
    %158 = tpu.reciprocal %157 {approx = true} : vector<128x1xf32> -> vector<128x1xf32>
    %159 = vector.broadcast %158 : vector<128x1xf32> to vector<128x128xf32>
    %160 = arith.mulf %155, %159 : vector<128x128xf32>
    %161 = arith.truncf %160 : vector<128x128xf32> to vector<128x128xbf16>
    %cst_81 = arith.constant dense<0.000000e+00> : vector<128x8xf32>
    %162 = tpu.matmul %161, %148, %cst_81 {dimension_numbers = #tpu.dot_dimension_numbers<[1], [0], [0], [1], [0, 0, 1, 1], [], []>} : vector<128x128xbf16>, vector<128x8xbf16>, vector<128x8xf32> -> vector<128x8xf32>
    %163 = arith.truncf %162 : vector<128x8xf32> to vector<128x8xbf16>
    %c0_82 = arith.constant 0 : index
    %c56_83 = arith.constant 56 : index
    %164 = vector.load %arg9[%c0_82, %c56_83] : memref<128x64xbf16, #tpu.memory_space<vmem>>, vector<128x8xbf16>
    tpu.vector_store %arg9[%c0_82, %c56_83], %163 {strides = array<i32>} : memref<128x64xbf16, #tpu.memory_space<vmem>>, vector<128x8xbf16>,
    %c0_84 = arith.constant 0 : index
    %c0_85 = arith.constant 0 : index
    %165 = vector.load %arg9[%c0_84, %c0_85] : memref<128x64xbf16, #tpu.memory_space<vmem>>, vector<128x64xbf16>
    %c0_86 = arith.constant 0 : index
    %c0_87 = arith.constant 0 : index
    %166 = vector.load %arg5[%c0_86, %c0_87] : memref<64x64xbf16, #tpu.memory_space<vmem>>, vector<64x64xbf16>
    %cst_88 = arith.constant dense<0.000000e+00> : vector<128x64xf32>
    %167 = tpu.matmul %165, %166, %cst_88 {dimension_numbers = #tpu.dot_dimension_numbers<[1], [0], [0], [1], [0, 0, 1, 1], [], []>} : vector<128x64xbf16>, vector<64x64xbf16>, vector<128x64xf32> -> vector<128x64xf32>
    %c0_89 = arith.constant 0 : index
    %c0_90 = arith.constant 0 : index
    %168 = vector.load %arg6[%c0_89, %c0_90] : memref<1x64xf32, #tpu.memory_space<vmem>>, vector<1x64xf32>
    %169 = vector.broadcast %168 : vector<1x64xf32> to vector<128x64xf32>
    %170 = arith.addf %167, %169 : vector<128x64xf32>
    %cst_91 = arith.constant 0.000000e+00 : f32
    %171 = vector.broadcast %cst_91 : f32 to vector<128x64xf32>
    %172 = arith.maximumf %170, %171 : vector<128x64xf32>
    %c0_92 = arith.constant 0 : index
    %c0_93 = arith.constant 0 : index
    %c0_94 = arith.constant 0 : index
    %173 = vector.load %arg7[%c0_92, %c0_93, %c0_94] : memref<1x128x64xf32, #tpu.memory_space<vmem>>, vector<1x128x64xf32>
    %174 = vector.shape_cast %173 : vector<1x128x64xf32> to vector<128x64xf32>
    %175 = vector.shape_cast %172 : vector<128x64xf32> to vector<1x128x64xf32>
    tpu.vector_store %arg7[%c0_92, %c0_93, %c0_94], %175 {strides = array<i32>} : memref<1x128x64xf32, #tpu.memory_space<vmem>>, vector<1x128x64xf32>,
    return
  }
  func.func @transform_0(%arg0: i32) -> (i32, i32, i32) {
    %c0_i32 = arith.constant 0 : i32
    %c0_i32_0 = arith.constant 0 : i32
    %c0_i32_1 = arith.constant 0 : i32
    return %arg0, %c0_i32, %c0_i32_0 : i32, i32, i32
  }
  func.func @transform_1(%arg0: i32) -> (i32, i32) {
    %c0_i32 = arith.constant 0 : i32
    %c0_i32_0 = arith.constant 0 : i32
    %c0_i32_1 = arith.constant 0 : i32
    return %c0_i32, %c0_i32_0 : i32, i32
  }
  func.func @transform_2(%arg0: i32) -> (i32, i32) {
    %c0_i32 = arith.constant 0 : i32
    %c0_i32_0 = arith.constant 0 : i32
    %c0_i32_1 = arith.constant 0 : i32
    return %c0_i32, %c0_i32_0 : i32, i32
  }
  func.func @transform_3(%arg0: i32) -> (i32, i32) {
    %c0_i32 = arith.constant 0 : i32
    %c0_i32_0 = arith.constant 0 : i32
    %c0_i32_1 = arith.constant 0 : i32
    return %c0_i32, %c0_i32_0 : i32, i32
  }
  func.func @transform_4(%arg0: i32) -> (i32, i32) {
    %c0_i32 = arith.constant 0 : i32
    %c0_i32_0 = arith.constant 0 : i32
    %c0_i32_1 = arith.constant 0 : i32
    return %c0_i32, %c0_i32_0 : i32, i32
  }
  func.func @transform_5(%arg0: i32) -> (i32, i32) {
    %c0_i32 = arith.constant 0 : i32
    %c0_i32_0 = arith.constant 0 : i32
    %c0_i32_1 = arith.constant 0 : i32
    return %c0_i32, %c0_i32_0 : i32, i32
  }
  func.func @transform_6(%arg0: i32) -> (i32, i32, i32) {
    %c0_i32 = arith.constant 0 : i32
    %c0_i32_0 = arith.constant 0 : i32
    %c0_i32_1 = arith.constant 0 : i32
    return %arg0, %c0_i32, %c0_i32_0 : i32, i32, i32
  }
}

</mosaic_0001>

<llo_original>
// kernel: temporal_attention.1
$region0: #{temporal_attention.1}
  #allocation0 [shape = 'u32[]', space=smem, size = 0x4, offset = 0x4, fixed_abs, tag = 'smem constant byte address 0x4 - core index']
  #allocation1 [shape = 'u32[72,128]{1,0:T(1,128)}', space=vmem, size = 0x9000, scoped, tag = 'internal scratch']
  #allocation2 [shape = 'bf16[128,192]{1,0:T(8,128)(2,1)}', space=vmem, size = 0x10000, scoped, tag = 'scratch operand']
  #allocation3 [shape = 'bf16[128,64]{1,0:T(8,128)(2,1)}', space=vmem, size = 0x8000, scoped, tag = 'scratch operand']
  %s0 = inlined_call_operand.vmem [shape: bf16[2,128,128], index: 0, kind: input, shape index: {}]
  %s1 = inlined_call_operand.vmem [shape: bf16[128,128], index: 1, kind: input, shape index: {}]
  %s2 = inlined_call_operand.vmem [shape: bf16[128,192], index: 2, kind: input, shape index: {}]
  %s3 = inlined_call_operand.vmem [shape: f32[1,192], index: 3, kind: input, shape index: {}]
  %s4 = inlined_call_operand.vmem [shape: bf16[64,64], index: 4, kind: input, shape index: {}]
  %s5 = inlined_call_operand.vmem [shape: f32[1,64], index: 5, kind: input, shape index: {}]
  %s6 = inlined_call_operand.hbm [shape: f32[2,128,64], index: 6, kind: output, shape index: {}]
  %s7 = sld [smem:[#allocation0]]
  $region57: #{temporal_attention.1} parent=0
    _
  %s9 = ssub.s32 1, %s7
  %s10 = scalar_select 0, %s9, %s7
  $region1: #{temporal_attention.1} parent=0
    #allocation4 [shape = 'u8[131072]{0}', space=vmem, size = 0x20000, scoped, tag = 'output window, operand 0']
    #allocation5 [shape = 's32[2]{0}', space=sflag, size = 0x8, scoped, tag = 'scoped memory for temporal_attention.1']
    %11 = vsyncpa [#allocation5], 0
    %s12 = scalar_lea.sflag [#allocation5], 1
    %13 = vsyncpa %s12, 0
    loop: start=0, step=1, limit=4
    $region2: #{temporal_attention.1} parent=1 // loop_pre_header
      _
    $region3: #{temporal_attention.1} parent=1 // loop_header
      %s15 = sphi 0, %s19
      %p16 = scmp.ge.s32.totalorder %s15, 4
      %s25 = sphi 0, %s27
      %s28 = sphi 0, %s25
      %s29 = sphi 0, %s28
      %s45 = sphi 0, %s29
      %s49 = sphi 0, %s49
      %s51 = sphi 0, %s49
      %s52 = sphi 0, %s51
      %s66 = sphi 0, %s52
      %s70 = sphi 0, %s70
      %s72 = sphi 0, %s70
      %s73 = sphi 0, %s72
      %s87 = sphi 0, %s73
      %s91 = sphi 0, %s91
      %s93 = sphi 0, %s91
      %s94 = sphi 0, %s93
      %s108 = sphi 0, %s94
      %s112 = sphi 0, %s112
      %s114 = sphi 0, %s112
      %s115 = sphi 0, %s114
      %s129 = sphi 0, %s115
      %s133 = sphi 0, %s133
      %s135 = sphi 0, %s133
      %s136 = sphi 0, %s135
      %s150 = sphi 0, %s136
      %s156 = sphi 0, %s158
      %s159 = sphi 0, %s156
      %s160 = sphi 0, %s159
      %s176 = sphi 0, %s160
    $region4: #{temporal_attention.1} parent=1 // loop_header_branch
      %18 = sbr.rel (%p16) target = $region8
    $region5: #{temporal_attention.1} parent=1 // loop_body
      %s20 = ssub.s32 %s15, 1
      %s21 = ssub.s32 %s15, 2
      %s22 = sadd.s32 %s15, 1
      %s23 = ssub.s32 %s15, %s22
      %p24 = scmp.eq.s32.totalorder %s23, 0
      %s26 = sadd.s32 %s25, 1
      %s27 = scalar_select %p24, %s25, %s26
      %p30 = pneg %p24
      %p31 = scmp.eq.s32.totalorder %s15, 1
      %p32 = por %p30, %p31
      %p33 = scmp.ne.s32.totalorder %s25, %s28
      %p34 = scmp.eq.s32.totalorder %s15, 0
      %p35 = por %p33, %p34
      %p36 = scmp.ne.s32.totalorder %s25, %s28
      %p37 = scmp.eq.s32.totalorder %s20, 1
      %p38 = por %p36, %p37
      %p39 = scmp.ne.s32.totalorder %s28, %s29
      %p40 = scmp.eq.s32.totalorder %s20, 0
      %p41 = por %p39, %p40
      %p42 = scmp.ne.s32.totalorder %s28, %s29
      %p43 = scmp.eq.s32.totalorder %s21, 1
      %p44 = por %p42, %p43
      %p46 = scmp.ne.s32.totalorder %s29, %s45
      %p47 = scmp.eq.s32.totalorder %s21, 0
      %p48 = por %p46, %p47
      %s50 = sadd.s32 %s49, 1
      %p53 = scmp.eq.s32.totalorder %s15, 1
      %p54 = scmp.ne.s32.totalorder %s49, %s51
      %p55 = scmp.eq.s32.totalorder %s15, 0
      %p56 = por %p54, %p55
      %p57 = scmp.ne.s32.totalorder %s49, %s51
      %p58 = scmp.eq.s32.totalorder %s20, 1
      %p59 = por %p57, %p58
      %p60 = scmp.ne.s32.totalorder %s51, %s52
      %p61 = scmp.eq.s32.totalorder %s20, 0
      %p62 = por %p60, %p61
      %p63 = scmp.ne.s32.totalorder %s51, %s52
      %p64 = scmp.eq.s32.totalorder %s21, 1
      %p65 = por %p63, %p64
      %p67 = scmp.ne.s32.totalorder %s52, %s66
      %p68 = scmp.eq.s32.totalorder %s21, 0
      %p69 = por %p67, %p68
      %s71 = sadd.s32 %s70, 1
      %p74 = scmp.eq.s32.totalorder %s15, 1
      %p75 = scmp.ne.s32.totalorder %s70, %s72
      %p76 = scmp.eq.s32.totalorder %s15, 0
      %p77 = por %p75, %p76
      %p78 = scmp.ne.s32.totalorder %s70, %s72
      %p79 = scmp.eq.s32.totalorder %s20, 1
      %p80 = por %p78, %p79
      %p81 = scmp.ne.s32.totalorder %s72, %s73
      %p82 = scmp.eq.s32.totalorder %s20, 0
      %p83 = por %p81, %p82
      %p84 = scmp.ne.s32.totalorder %s72, %s73
      %p85 = scmp.eq.s32.totalorder %s21, 1
      %p86 = por %p84, %p85
      %p88 = scmp.ne.s32.totalorder %s73, %s87
      %p89 = scmp.eq.s32.totalorder %s21, 0
      %p90 = por %p88, %p89
      %s92 = sadd.s32 %s91, 1
      %p95 = scmp.eq.s32.totalorder %s15, 1
      %p96 = scmp.ne.s32.totalorder %s91, %s93
      %p97 = scmp.eq.s32.totalorder %s15, 0
      %p98 = por %p96, %p97
      %p99 = scmp.ne.s32.totalorder %s91, %s93
      %p100 = scmp.eq.s32.totalorder %s20, 1
      %p101 = por %p99, %p100
      %p102 = scmp.ne.s32.totalorder %s93, %s94
      %p103 = scmp.eq.s32.totalorder %s20, 0
      %p104 = por %p102, %p103
      %p105 = scmp.ne.s32.totalorder %s93, %s94
      %p106 = scmp.eq.s32.totalorder %s21, 1
      %p107 = por %p105, %p106
      %p109 = scmp.ne.s32.totalorder %s94, %s108
      %p110 = scmp.eq.s32.totalorder %s21, 0
      %p111 = por %p109, %p110
      %s113 = sadd.s32 %s112, 1
      %p116 = scmp.eq.s32.totalorder %s15, 1
      %p117 = scmp.ne.s32.totalorder %s112, %s114
      %p118 = scmp.eq.s32.totalorder %s15, 0
      %p119 = por %p117, %p118
      %p120 = scmp.ne.s32.totalorder %s112, %s114
      %p121 = scmp.eq.s32.totalorder %s20, 1
      %p122 = por %p120, %p121
      %p123 = scmp.ne.s32.totalorder %s114, %s115
      %p124 = scmp.eq.s32.totalorder %s20, 0
      %p125 = por %p123, %p124
      %p126 = scmp.ne.s32.totalorder %s114, %s115
      %p127 = scmp.eq.s32.totalorder %s21, 1
      %p128 = por %p126, %p127
      %p130 = scmp.ne.s32.totalorder %s115, %s129
      %p131 = scmp.eq.s32.totalorder %s21, 0
      %p132 = por %p130, %p131
      %s134 = sadd.s32 %s133, 1
      %p137 = scmp.eq.s32.totalorder %s15, 1
      %p138 = scmp.ne.s32.totalorder %s133, %s135
      %p139 = scmp.eq.s32.totalorder %s15, 0
      %p140 = por %p138, %p139
      %p141 = scmp.ne.s32.totalorder %s133, %s135
      %p142 = scmp.eq.s32.totalorder %s20, 1
      %p143 = por %p141, %p142
      %p144 = scmp.ne.s32.totalorder %s135, %s136
      %p145 = scmp.eq.s32.totalorder %s20, 0
      %p146 = por %p144, %p145
      %p147 = scmp.ne.s32.totalorder %s135, %s136
      %p148 = scmp.eq.s32.totalorder %s21, 1
      %p149 = por %p147, %p148
      %p151 = scmp.ne.s32.totalorder %s136, %s150
      %p152 = scmp.eq.s32.totalorder %s21, 0
      %p153 = por %p151, %p152
      %s154 = ssub.s32 %s15, %s22
      %p155 = scmp.eq.s32.totalorder %s154, 0
      %s157 = sadd.s32 %s156, 1
      %s158 = scalar_select %p155, %s156, %s157
      %p161 = pneg %p155
      %p162 = scmp.eq.s32.totalorder %s15, 1
      %p163 = por %p161, %p162
      %p164 = scmp.ne.s32.totalorder %s156, %s159
      %p165 = scmp.eq.s32.totalorder %s15, 0
      %p166 = por %p164, %p165
      %p167 = scmp.ne.s32.totalorder %s156, %s159
      %p168 = scmp.eq.s32.totalorder %s20, 1
      %p169 = por %p167, %p168
      %p170 = scmp.ne.s32.totalorder %s159, %s160
      %p171 = scmp.eq.s32.totalorder %s20, 0
      %p172 = por %p170, %p171
      %p173 = scmp.ne.s32.totalorder %s159, %s160
      %p174 = scmp.eq.s32.totalorder %s21, 1
      %p175 = por %p173, %p174
      %p177 = scmp.ne.s32.totalorder %s160, %s176
      %p178 = scmp.eq.s32.totalorder %s21, 0
      %p179 = por %p177, %p178
      %p180 = scmp.le.s32.totalorder 1, %s15
      %p181 = scmp.lt.s32.totalorder %s15, 3
      %p182 = pnand %p180, %p181
      %p183 = pneg %p182
      // Predicated region
      $region9: #{temporal_attention.1} parent=5 // pred_check
        _
      $region10: #{temporal_attention.1} parent=5 // pred_check_branch
        %185 = sbr.rel (%p182) target = $region12
      $region11: #{temporal_attention.1} parent=5 // pred_region
        %s186 = ssub.s32 %s15, 1
        // Predicated region
        $region13: #{temporal_attention.1} parent=11 // pred_check
          %p187 = pneg %p62
        $region14: #{temporal_attention.1} parent=11 // pred_check_branch
          %189 = sbr.rel (%p187) target = $region16
        $region15: #{temporal_attention.1} parent=11 // pred_region
          _
        $region16: #{temporal_attention.1} parent=11 // pred_fallthru
          _
        // Predicated region
        $region17: #{temporal_attention.1} parent=11 // pred_check
          %p190 = pneg %p83
        $region18: #{temporal_attention.1} parent=11 // pred_check_branch
          %192 = sbr.rel (%p190) target = $region20
        $region19: #{temporal_attention.1} parent=11 // pred_region
          _
        $region20: #{temporal_attention.1} parent=11 // pred_fallthru
          _
        // Predicated region
        $region21: #{temporal_attention.1} parent=11 // pred_check
          %p193 = pneg %p104
        $region22: #{temporal_attention.1} parent=11 // pred_check_branch
          %195 = sbr.rel (%p193) target = $region24
        $region23: #{temporal_attention.1} parent=11 // pred_region
          _
        $region24: #{temporal_attention.1} parent=11 // pred_fallthru
          _
        // Predicated region
        $region25: #{temporal_attention.1} parent=11 // pred_check
          %p196 = pneg %p125
        $region26: #{temporal_attention.1} parent=11 // pred_check_branch
          %198 = sbr.rel (%p196) target = $region28
        $region27: #{temporal_attention.1} parent=11 // pred_region
          _
        $region28: #{temporal_attention.1} parent=11 // pred_fallthru
          _
        // Predicated region
        $region29: #{temporal_attention.1} parent=11 // pred_check
          %p199 = pneg %p146
        $region30: #{temporal_attention.1} parent=11 // pred_check_branch
          %201 = sbr.rel (%p199) target = $region32
        $region31: #{temporal_attention.1} parent=11 // pred_region
          _
        $region32: #{temporal_attention.1} parent=11 // pred_fallthru
          _
      $region12: #{temporal_attention.1} parent=5 // pred_fallthru
        _
      %p202 = scmp.lt.s32.totalorder %s15, 2
      // Predicated region
      $region33: #{temporal_attention.1} parent=5 // pred_check
        %p203 = pneg %p202
      $region34: #{temporal_attention.1} parent=5 // pred_check_branch
        %205 = sbr.rel (%p203) target = $region36
      $region35: #{temporal_attention.1} parent=5 // pred_region
        // Predicated region
        $region37: #{temporal_attention.1} parent=35 // pred_check
          %p206 = pneg %p35
        $region38: #{temporal_attention.1} parent=35 // pred_check_branch
          %208 = sbr.rel (%p206) target = $region40
        $region39: #{temporal_attention.1} parent=35 // pred_region
          %p209 = scmp.lt.s32.totalorder %s15, 1
          %s210 = scalar_select %p209, %s15, 1
          %s211 = smul.addr %s210, 16
          %s212 = smul.addr %s211, 4
          %s213 = scalar_lea.vmem %s0, %s212
        $region40: #{temporal_attention.1} parent=35 // pred_fallthru
          _
      $region36: #{temporal_attention.1} parent=5 // pred_fallthru
        _
      %p214 = scmp.le.s32.totalorder 1, %s15
      %p215 = scmp.lt.s32.totalorder %s15, 3
      %p216 = pnand %p214, %p215
      %p217 = pneg %p216
      // Predicated region
      $region41: #{temporal_attention.1} parent=5 // pred_check
        _
      $region42: #{temporal_attention.1} parent=5 // pred_check_branch
        %219 = sbr.rel (%p216) target = $region44
      $region43: #{temporal_attention.1} parent=5 // pred_region
        %s220 = ssub.s32 %s15, 1
        %p221 = scmp.lt.s32.totalorder %s20, 1
        %s222 = scalar_select %p221, %s20, 1
        %s223 = smul.addr %s222, 16
        %s224 = smul.addr %s223, 4
        %s225 = scalar_lea.vmem %s0, %s224
        %p226 = pneg %p41
        %p227 = pneg %p38
        %p228 = pneg %p62
        %p229 = pneg %p59
        %p230 = pneg %p83
        %p231 = pneg %p80
        %p232 = pneg %p104
        %p233 = pneg %p101
        %p234 = pneg %p125
        %p235 = pneg %p122
        %p236 = pneg %p146
        %p237 = pneg %p143
        %p238 = pneg %p172
        %p239 = pneg %p169
        %s240 = sand.u32 %s159, 1
        %s241 = scalar_lea.sflag [#allocation5], %s240
        %s242 = sand.u32 %s159, 1
        %s243 = smul.addr %s242, 128
        %s244 = scalar_lea.vmem [#allocation4], %s243
        %p245 = scmp.lt.s32.totalorder %s20, 1
        %s246 = scalar_select %p245, %s20, 1
        %s247 = smul.addr %s246, 16
        %s248 = smul.addr %s247, 4
        %s249 = scalar_lea.vmem %s0, %s248
        %v251 = vld [vmem:[%s249] sm:$0xf]
        %v252 = vld [vmem:[%s249 + $0x4] sm:$0xf]
        %v253 = vld [vmem:[%s249 + $0x8] sm:$0xf]
        %v254 = vld [vmem:[%s249 + $0xc] sm:$0xf]
        %v255 = vld [vmem:[%s249 + $0x10] sm:$0xf]
        %v256 = vld [vmem:[%s249 + $0x14] sm:$0xf]
        %v257 = vld [vmem:[%s249 + $0x18] sm:$0xf]
        %v258 = vld [vmem:[%s249 + $0x1c] sm:$0xf]
        %v259 = vld [vmem:[%s249 + $0x20] sm:$0xf]
        %v260 = vld [vmem:[%s249 + $0x24] sm:$0xf]
        %v261 = vld [vmem:[%s249 + $0x28] sm:$0xf]
        %v262 = vld [vmem:[%s249 + $0x2c] sm:$0xf]
        %v263 = vld [vmem:[%s249 + $0x30] sm:$0xf]
        %v264 = vld [vmem:[%s249 + $0x34] sm:$0xf]
        %v265 = vld [vmem:[%s249 + $0x38] sm:$0xf]
        %v266 = vld [vmem:[%s249 + $0x3c] sm:$0xf]
        %v267 = vld [vmem:[%s2] sm:$0xff]
        %v268 = vld [vmem:[%s2 + $0x8] sm:$0xff]
        %v269 = vld [vmem:[%s2 + $0x10] sm:$0xff]
        %v270 = vld [vmem:[%s2 + $0x18] sm:$0xff]
        %v271 = vld [vmem:[%s2 + $0x20] sm:$0xff]
        %v272 = vld [vmem:[%s2 + $0x28] sm:$0xff]
        %v273 = vld [vmem:[%s2 + $0x30] sm:$0xff]
        %v274 = vld [vmem:[%s2 + $0x38] sm:$0xff]
        %v275 = vld [vmem:[%s2 + $0x40] sm:$0xff]
        %v276 = vld [vmem:[%s2 + $0x48] sm:$0xff]
        %v277 = vld [vmem:[%s2 + $0x50] sm:$0xff]
        %v278 = vld [vmem:[%s2 + $0x58] sm:$0xff]
        %v279 = vld [vmem:[%s2 + $0x60] sm:$0xff]
        %v280 = vld [vmem:[%s2 + $0x68] sm:$0xff]
        %v281 = vld [vmem:[%s2 + $0x70] sm:$0xff]
        %v282 = vld [vmem:[%s2 + $0x78] sm:$0xff]
        %v283 = vld [vmem:[%s3] sm:$0x3]
        %v285 = vperm.slane %v283, 0
        %v286 = vperm.slane %v283, 1
        %v305 = vunpack.c.l.b16 %v251
        %v306 = vunpack.c.l.b16 %v252
        %v307 = vunpack.c.l.b16 %v253
        %v308 = vunpack.c.l.b16 %v254
        %v309 = vunpack.c.l.b16 %v255
        %v310 = vunpack.c.l.b16 %v256
        %v311 = vunpack.c.l.b16 %v257
        %v312 = vunpack.c.l.b16 %v258
        %v313 = vunpack.c.l.b16 %v259
        %v314 = vunpack.c.l.b16 %v260
        %v315 = vunpack.c.l.b16 %v261
        %v316 = vunpack.c.l.b16 %v262
        %v317 = vunpack.c.l.b16 %v263
        %v318 = vunpack.c.l.b16 %v264
        %v319 = vunpack.c.l.b16 %v265
        %v320 = vunpack.c.l.b16 %v266
        %v321 = vpack.c.b16 %v306, %v305
        %v322 = vpack.c.b16 %v308, %v307
        %v323 = vpack.c.b16 %v310, %v309
        %v324 = vpack.c.b16 %v312, %v311
        %v325 = vpack.c.b16 %v314, %v313
        %v326 = vpack.c.b16 %v316, %v315
        %v327 = vpack.c.b16 %v318, %v317
        %v328 = vpack.c.b16 %v320, %v319
        %v353 = vunpack.c.l.b16 %v267
        %v354 = vunpack.c.h.b16 %v267
        %v355 = vunpack.c.l.b16 %v268
        %v356 = vunpack.c.h.b16 %v268
        %v357 = vunpack.c.l.b16 %v269
        %v358 = vunpack.c.h.b16 %v269
        %v359 = vunpack.c.l.b16 %v270
        %v360 = vunpack.c.h.b16 %v270
        %v361 = vunpack.c.l.b16 %v271
        %v362 = vunpack.c.h.b16 %v271
        %v363 = vunpack.c.l.b16 %v272
        %v364 = vunpack.c.h.b16 %v272
        %v365 = vunpack.c.l.b16 %v273
        %v366 = vunpack.c.h.b16 %v273
        %v367 = vunpack.c.l.b16 %v274
        %v368 = vunpack.c.h.b16 %v274
        %v369 = vunpack.c.l.b16 %v275
        %v370 = vunpack.c.h.b16 %v275
        %v371 = vunpack.c.l.b16 %v276
        %v372 = vunpack.c.h.b16 %v276
        %v373 = vunpack.c.l.b16 %v277
        %v374 = vunpack.c.h.b16 %v277
        %v375 = vunpack.c.l.b16 %v278
        %v376 = vunpack.c.h.b16 %v278
        %v377 = vunpack.c.l.b16 %v279
        %v378 = vunpack.c.h.b16 %v279
        %v379 = vunpack.c.l.b16 %v280
        %v380 = vunpack.c.h.b16 %v280
        %v381 = vunpack.c.l.b16 %v281
        %v382 = vunpack.c.h.b16 %v281
        %v383 = vunpack.c.l.b16 %v282
        %v384 = vunpack.c.h.b16 %v282
        %v385 = vpack.c.b16 %v355, %v353
        %v386 = vpack.c.b16 %v356, %v354
        %v387 = vpack.c.b16 %v359, %v357
        %v388 = vpack.c.b16 %v360, %v358
        %v389 = vpack.c.b16 %v363, %v361
        %v390 = vpack.c.b16 %v364, %v362
        %v391 = vpack.c.b16 %v367, %v365
        %v392 = vpack.c.b16 %v368, %v366
        %v393 = vpack.c.b16 %v371, %v369
        %v394 = vpack.c.b16 %v372, %v370
        %v395 = vpack.c.b16 %v375, %v373
        %v396 = vpack.c.b16 %v376, %v374
        %v397 = vpack.c.b16 %v379, %v377
        %v398 = vpack.c.b16 %v380, %v378
        %v399 = vpack.c.b16 %v383, %v381
        %v400 = vpack.c.b16 %v384, %v382
        %417 = vmatpush.bf16.msra.mxu0 %v399
        %418 = vmatpush.bf16.msra.mxu0 %v397
        %419 = vmatpush.bf16.msra.mxu0 %v395
        %420 = vmatpush.bf16.msra.mxu0 %v393
        %421 = vmatpush.bf16.msra.mxu0 %v391
        %422 = vmatpush.bf16.msra.mxu0 %v389
        %423 = vmatpush.bf16.msra.mxu0 %v387
        %424 = vmatpush.bf16.msra.mxu0 %v385
        %425 = vmatmul.bf16.gmra.mxu0 %v321
        %v426 = vpop.f32.mrf.mxu0
        %v427 = vadd.f32 %v285, %v426
        %v428 = vpop.f32.mrf.mxu0
        %v429 = vadd.f32 %v285, %v428
        %430 = vmatmul.bf16.gmra.mxu0 %v322
        %v431 = vpop.f32.mrf.mxu0
        %v432 = vadd.f32 %v285, %v431
        %v433 = vpop.f32.mrf.mxu0
        %v434 = vadd.f32 %v285, %v433
        %435 = vmatmul.bf16.gmra.mxu0 %v323
        %v436 = vpop.f32.mrf.mxu0
        %v437 = vadd.f32 %v285, %v436
        %v438 = vpop.f32.mrf.mxu0
        %v439 = vadd.f32 %v285, %v438
        %440 = vmatmul.bf16.gmra.mxu0 %v324
        %v441 = vpop.f32.mrf.mxu0
        %v442 = vadd.f32 %v285, %v441
        %v443 = vpop.f32.mrf.mxu0
        %v444 = vadd.f32 %v285, %v443
        %445 = vmatmul.bf16.gmra.mxu0 %v325
        %v446 = vpop.f32.mrf.mxu0
        %v447 = vadd.f32 %v285, %v446
        %v448 = vpop.f32.mrf.mxu0
        %v449 = vadd.f32 %v285, %v448
        %450 = vmatmul.bf16.gmra.mxu0 %v326
        %v451 = vpop.f32.mrf.mxu0
        %v452 = vadd.f32 %v285, %v451
        %v453 = vpop.f32.mrf.mxu0
        %v454 = vadd.f32 %v285, %v453
        %455 = vmatmul.bf16.gmra.mxu0 %v327
        %v456 = vpop.f32.mrf.mxu0
        %v457 = vadd.f32 %v285, %v456
        %v458 = vpop.f32.mrf.mxu0
        %v459 = vadd.f32 %v285, %v458
        %460 = vmatmul.bf16.gmra.mxu0 %v328
        %v461 = vpop.f32.mrf.mxu0
        %v462 = vadd.f32 %v285, %v461
        %v463 = vpop.f32.mrf.mxu0
        %v464 = vadd.f32 %v285, %v463
        %465 = vdwg.mxu0
        %466 = vmatpush.bf16.msra.mxu0 %v400
        %467 = vmatpush.bf16.msra.mxu0 %v398
        %468 = vmatpush.bf16.msra.mxu0 %v396
        %469 = vmatpush.bf16.msra.mxu0 %v394
        %470 = vmatpush.bf16.msra.mxu0 %v392
        %471 = vmatpush.bf16.msra.mxu0 %v390
        %472 = vmatpush.bf16.msra.mxu0 %v388
        %473 = vmatpush.bf16.msra.mxu0 %v386
        %474 = vmatmul.bf16.gmra.mxu0 %v321
        %v475 = vpop.f32.mrf.mxu0
        %v476 = vadd.f32 %v286, %v475
        %v477 = vpop.f32.mrf.mxu0
        %v478 = vadd.f32 %v286, %v477
        %479 = vmatmul.bf16.gmra.mxu0 %v322
        %v480 = vpop.f32.mrf.mxu0
        %v481 = vadd.f32 %v286, %v480
        %v482 = vpop.f32.mrf.mxu0
        %v483 = vadd.f32 %v286, %v482
        %484 = vmatmul.bf16.gmra.mxu0 %v323
        %v485 = vpop.f32.mrf.mxu0
        %v486 = vadd.f32 %v286, %v485
        %v487 = vpop.f32.mrf.mxu0
        %v488 = vadd.f32 %v286, %v487
        %489 = vmatmul.bf16.gmra.mxu0 %v324
        %v490 = vpop.f32.mrf.mxu0
        %v491 = vadd.f32 %v286, %v490
        %v492 = vpop.f32.mrf.mxu0
        %v493 = vadd.f32 %v286, %v492
        %494 = vmatmul.bf16.gmra.mxu0 %v325
        %v495 = vpop.f32.mrf.mxu0
        %v496 = vadd.f32 %v286, %v495
        %v497 = vpop.f32.mrf.mxu0
        %v498 = vadd.f32 %v286, %v497
        %499 = vmatmul.bf16.gmra.mxu0 %v326
        %v500 = vpop.f32.mrf.mxu0
        %v501 = vadd.f32 %v286, %v500
        %v502 = vpop.f32.mrf.mxu0
        %v503 = vadd.f32 %v286, %v502
        %504 = vmatmul.bf16.gmra.mxu0 %v327
        %v505 = vpop.f32.mrf.mxu0
        %v506 = vadd.f32 %v286, %v505
        %v507 = vpop.f32.mrf.mxu0
        %v508 = vadd.f32 %v286, %v507
        %509 = vmatmul.bf16.gmra.mxu0 %v328
        %v510 = vpop.f32.mrf.mxu0
        %v511 = vadd.f32 %v286, %v510
        %v512 = vpop.f32.mrf.mxu0
        %v513 = vadd.f32 %v286, %v512
        %514 = vdwg.mxu0
        %v515 = vmax.f32 %v427, 0.0
        %v516 = vmax.f32 %v476, 0.0
        %v517 = vmax.f32 %v429, 0.0
        %v518 = vmax.f32 %v478, 0.0
        %v519 = vmax.f32 %v432, 0.0
        %v520 = vmax.f32 %v481, 0.0
        %v521 = vmax.f32 %v434, 0.0
        %v522 = vmax.f32 %v483, 0.0
        %v523 = vmax.f32 %v437, 0.0
        %v524 = vmax.f32 %v486, 0.0
        %v525 = vmax.f32 %v439, 0.0
        %v526 = vmax.f32 %v488, 0.0
        %v527 = vmax.f32 %v442, 0.0
        %v528 = vmax.f32 %v491, 0.0
        %v529 = vmax.f32 %v444, 0.0
        %v530 = vmax.f32 %v493, 0.0
        %v531 = vmax.f32 %v447, 0.0
        %v532 = vmax.f32 %v496, 0.0
        %v533 = vmax.f32 %v449, 0.0
        %v534 = vmax.f32 %v498, 0.0
        %v535 = vmax.f32 %v452, 0.0
        %v536 = vmax.f32 %v501, 0.0
        %v537 = vmax.f32 %v454, 0.0
        %v538 = vmax.f32 %v503, 0.0
        %v539 = vmax.f32 %v457, 0.0
        %v540 = vmax.f32 %v506, 0.0
        %v541 = vmax.f32 %v459, 0.0
        %v542 = vmax.f32 %v508, 0.0
        %v543 = vmax.f32 %v462, 0.0
        %v544 = vmax.f32 %v511, 0.0
        %v545 = vmax.f32 %v464, 0.0
        %v546 = vmax.f32 %v513, 0.0
        %v547 = vpack.c.bf16 %v516, %v515
        %v548 = vpack.c.bf16 %v518, %v517
        %v549 = vpack.c.bf16 %v520, %v519
        %v550 = vpack.c.bf16 %v522, %v521
        %v551 = vpack.c.bf16 %v524, %v523
        %v552 = vpack.c.bf16 %v526, %v525
        %v553 = vpack.c.bf16 %v528, %v527
        %v554 = vpack.c.bf16 %v530, %v529
        %v555 = vpack.c.bf16 %v532, %v531
        %v556 = vpack.c.bf16 %v534, %v533
        %v557 = vpack.c.bf16 %v536, %v535
        %v558 = vpack.c.bf16 %v538, %v537
        %v559 = vpack.c.bf16 %v540, %v539
        %v560 = vpack.c.bf16 %v542, %v541
        %v561 = vpack.c.bf16 %v544, %v543
        %v562 = vpack.c.bf16 %v546, %v545
        %vm563 = vcmask 1043456
        %vm564 = vcmask 523268
        %vm565 = vmor %vm564, %vm563
        %566 = vst.msk [vmem:[#allocation2] sm:$0xff] %vm565, %v547
        %567 = vst.msk [vmem:[#allocation2 + $0x8] sm:$0xff] %vm565, %v548
        %568 = vst.msk [vmem:[#allocation2 + $0x10] sm:$0xff] %vm565, %v549
        %569 = vst.msk [vmem:[#allocation2 + $0x18] sm:$0xff] %vm565, %v550
        %570 = vst.msk [vmem:[#allocation2 + $0x20] sm:$0xff] %vm565, %v551
        %571 = vst.msk [vmem:[#allocation2 + $0x28] sm:$0xff] %vm565, %v552
        %572 = vst.msk [vmem:[#allocation2 + $0x30] sm:$0xff] %vm565, %v553
        %573 = vst.msk [vmem:[#allocation2 + $0x38] sm:$0xff] %vm565, %v554
        %574 = vst.msk [vmem:[#allocation2 + $0x40] sm:$0xff] %vm565, %v555
        %575 = vst.msk [vmem:[#allocation2 + $0x48] sm:$0xff] %vm565, %v556
        %576 = vst.msk [vmem:[#allocation2 + $0x50] sm:$0xff] %vm565, %v557
        %577 = vst.msk [vmem:[#allocation2 + $0x58] sm:$0xff] %vm565, %v558
        %578 = vst.msk [vmem:[#allocation2 + $0x60] sm:$0xff] %vm565, %v559
        %579 = vst.msk [vmem:[#allocation2 + $0x68] sm:$0xff] %vm565, %v560
        %580 = vst.msk [vmem:[#allocation2 + $0x70] sm:$0xff] %vm565, %v561
        %581 = vst.msk [vmem:[#allocation2 + $0x78] sm:$0xff] %vm565, %v562
        %v582 = vld [vmem:[%s1] sm:$0xf]
        %v583 = vld [vmem:[%s1 + $0x4] sm:$0xf]
        %v584 = vld [vmem:[%s1 + $0x8] sm:$0xf]
        %v585 = vld [vmem:[%s1 + $0xc] sm:$0xf]
        %v586 = vld [vmem:[%s1 + $0x10] sm:$0xf]
        %v587 = vld [vmem:[%s1 + $0x14] sm:$0xf]
        %v588 = vld [vmem:[%s1 + $0x18] sm:$0xf]
        %v589 = vld [vmem:[%s1 + $0x1c] sm:$0xf]
        %v590 = vld [vmem:[%s1 + $0x20] sm:$0xf]
        %v591 = vld [vmem:[%s1 + $0x24] sm:$0xf]
        %v592 = vld [vmem:[%s1 + $0x28] sm:$0xf]
        %v593 = vld [vmem:[%s1 + $0x2c] sm:$0xf]
        %v594 = vld [vmem:[%s1 + $0x30] sm:$0xf]
        %v595 = vld [vmem:[%s1 + $0x34] sm:$0xf]
        %v596 = vld [vmem:[%s1 + $0x38] sm:$0xf]
        %v597 = vld [vmem:[%s1 + $0x3c] sm:$0xf]
        %v598 = vunpack.c.l.bf16 %v582
        %v599 = vunpack.c.l.bf16 %v583
        %v600 = vunpack.c.l.bf16 %v584
        %v601 = vunpack.c.l.bf16 %v585
        %v602 = vunpack.c.l.bf16 %v586
        %v603 = vunpack.c.l.bf16 %v587
        %v604 = vunpack.c.l.bf16 %v588
        %v605 = vunpack.c.l.bf16 %v589
        %v606 = vunpack.c.l.bf16 %v590
        %v607 = vunpack.c.l.bf16 %v591
        %v608 = vunpack.c.l.bf16 %v592
        %v609 = vunpack.c.l.bf16 %v593
        %v610 = vunpack.c.l.bf16 %v594
        %v611 = vunpack.c.l.bf16 %v595
        %v612 = vunpack.c.l.bf16 %v596
        %v613 = vunpack.c.l.bf16 %v597
        %v614 = vld [vmem:[#allocation2] sm:$0xf]
        %v615 = vld [vmem:[#allocation2 + $0x8] sm:$0xf]
        %v616 = vld [vmem:[#allocation2 + $0x10] sm:$0xf]
        %v617 = vld [vmem:[#allocation2 + $0x18] sm:$0xf]
        %v618 = vld [vmem:[#allocation2 + $0x20] sm:$0xf]
        %v619 = vld [vmem:[#allocation2 + $0x28] sm:$0xf]
        %v620 = vld [vmem:[#allocation2 + $0x30] sm:$0xf]
        %v621 = vld [vmem:[#allocation2 + $0x38] sm:$0xf]
        %v622 = vld [vmem:[#allocation2 + $0x40] sm:$0xf]
        %v623 = vld [vmem:[#allocation2 + $0x48] sm:$0xf]
        %v624 = vld [vmem:[#allocation2 + $0x50] sm:$0xf]
        %v625 = vld [vmem:[#allocation2 + $0x58] sm:$0xf]
        %v626 = vld [vmem:[#allocation2 + $0x60] sm:$0xf]
        %v627 = vld [vmem:[#allocation2 + $0x68] sm:$0xf]
        %v628 = vld [vmem:[#allocation2 + $0x70] sm:$0xf]
        %v629 = vld [vmem:[#allocation2 + $0x78] sm:$0xf]
        %v630 = vld [vmem:[#allocation2 + $0x4] sm:$0xf]
        %v631 = vld [vmem:[#allocation2 + $0xc] sm:$0xf]
        %v632 = vld [vmem:[#allocation2 + $0x14] sm:$0xf]
        %v633 = vld [vmem:[#allocation2 + $0x1c] sm:$0xf]
        %v634 = vld [vmem:[#allocation2 + $0x24] sm:$0xf]
        %v635 = vld [vmem:[#allocation2 + $0x2c] sm:$0xf]
        %v636 = vld [vmem:[#allocation2 + $0x34] sm:$0xf]
        %v637 = vld [vmem:[#allocation2 + $0x3c] sm:$0xf]
        %v638 = vld [vmem:[#allocation2 + $0x44] sm:$0xf]
        %v639 = vld [vmem:[#allocation2 + $0x4c] sm:$0xf]
        %v640 = vld [vmem:[#allocation2 + $0x54] sm:$0xf]
        %v641 = vld [vmem:[#allocation2 + $0x5c] sm:$0xf]
        %v642 = vld [vmem:[#allocation2 + $0x64] sm:$0xf]
        %v643 = vld [vmem:[#allocation2 + $0x6c] sm:$0xf]
        %v644 = vld [vmem:[#allocation2 + $0x74] sm:$0xf]
        %v645 = vld [vmem:[#allocation2 + $0x7c] sm:$0xf]
        %v662 = vunpack.c.l.b16 %v614
        %v663 = vunpack.c.l.b16 %v615
        %v664 = vunpack.c.l.b16 %v616
        %v665 = vunpack.c.l.b16 %v617
        %v666 = vunpack.c.l.b16 %v618
        %v667 = vunpack.c.l.b16 %v619
        %v668 = vunpack.c.l.b16 %v620
        %v669 = vunpack.c.l.b16 %v621
        %v670 = vunpack.c.l.b16 %v622
        %v671 = vunpack.c.l.b16 %v623
        %v672 = vunpack.c.l.b16 %v624
        %v673 = vunpack.c.l.b16 %v625
        %v674 = vunpack.c.l.b16 %v626
        %v675 = vunpack.c.l.b16 %v627
        %v676 = vunpack.c.l.b16 %v628
        %v677 = vunpack.c.l.b16 %v629
        %v678 = vpack.c.b16 %v663, %v662
        %v679 = vpack.c.b16 %v665, %v664
        %v680 = vpack.c.b16 %v667, %v666
        %v681 = vpack.c.b16 %v669, %v668
        %v682 = vpack.c.b16 %v671, %v670
        %v683 = vpack.c.b16 %v673, %v672
        %v684 = vpack.c.b16 %v675, %v674
        %v685 = vpack.c.b16 %v677, %v676
        %686 = vrot.lane.b32.xlu0 %v678, 64
        %v687 = vpop.permute.xlu0 %686
        %688 = vrot.lane.b32.xlu0 %v679, 64
        %v689 = vpop.permute.xlu0 %688
        %690 = vrot.lane.b32.xlu0 %v680, 64
        %v691 = vpop.permute.xlu0 %690
        %692 = vrot.lane.b32.xlu0 %v681, 64
        %v693 = vpop.permute.xlu0 %692
        %694 = vrot.lane.b32.xlu0 %v682, 64
        %v695 = vpop.permute.xlu0 %694
        %696 = vrot.lane.b32.xlu0 %v683, 64
        %v697 = vpop.permute.xlu0 %696
        %698 = vrot.lane.b32.xlu0 %v684, 64
        %v699 = vpop.permute.xlu0 %698
        %700 = vrot.lane.b32.xlu0 %v685, 64
        %v701 = vpop.permute.xlu0 %700
        %vm702 = vcmask 64512
        %v704 = vsel %vm702, %v678, 0
        %v707 = vsel %vm702, %v679, 0
        %v710 = vsel %vm702, %v680, 0
        %v713 = vsel %vm702, %v681, 0
        %v716 = vsel %vm702, %v682, 0
        %v719 = vsel %vm702, %v683, 0
        %v722 = vsel %vm702, %v684, 0
        %v725 = vsel %vm702, %v685, 0
        %v728 = vsel %vm702, %v687, 0
        %v731 = vsel %vm702, %v689, 0
        %v734 = vsel %vm702, %v691, 0
        %v737 = vsel %vm702, %v693, 0
        %v740 = vsel %vm702, %v695, 0
        %v743 = vsel %vm702, %v697, 0
        %v746 = vsel %vm702, %v699, 0
        %v749 = vsel %vm702, %v701, 0
        %751 = vmatpush.bf16.xpose.msra.mxu0 %v749
        %752 = vmatpush.bf16.xpose.msra.mxu0 %v746
        %753 = vmatpush.bf16.xpose.msra.mxu0 %v743
        %754 = vmatpush.bf16.xpose.msra.mxu0 %v740
        %755 = vmatpush.bf16.xpose.msra.mxu0 %v737
        %756 = vmatpush.bf16.xpose.msra.mxu0 %v734
        %757 = vmatpush.bf16.xpose.msra.mxu0 %v731
        %758 = vmatpush.bf16.xpose.msra.mxu0 %v728
        %759 = vmatmul.bf16.gmra.mxu0 %v704
        %v760 = vpop.f32.mrf.mxu0
        %v761 = vadd.f32 %v598, %v760
        %v762 = vpop.f32.mrf.mxu0
        %v763 = vadd.f32 %v599, %v762
        %764 = vmatmul.bf16.gmra.mxu0 %v707
        %v765 = vpop.f32.mrf.mxu0
        %v766 = vadd.f32 %v600, %v765
        %v767 = vpop.f32.mrf.mxu0
        %v768 = vadd.f32 %v601, %v767
        %769 = vmatmul.bf16.gmra.mxu0 %v710
        %v770 = vpop.f32.mrf.mxu0
        %v771 = vadd.f32 %v602, %v770
        %v772 = vpop.f32.mrf.mxu0
        %v773 = vadd.f32 %v603, %v772
        %774 = vmatmul.bf16.gmra.mxu0 %v713
        %v775 = vpop.f32.mrf.mxu0
        %v776 = vadd.f32 %v604, %v775
        %v777 = vpop.f32.mrf.mxu0
        %v778 = vadd.f32 %v605, %v777
        %779 = vmatmul.bf16.gmra.mxu0 %v716
        %v780 = vpop.f32.mrf.mxu0
        %v781 = vadd.f32 %v606, %v780
        %v782 = vpop.f32.mrf.mxu0
        %v783 = vadd.f32 %v607, %v782
        %784 = vmatmul.bf16.gmra.mxu0 %v719
        %v785 = vpop.f32.mrf.mxu0
        %v786 = vadd.f32 %v608, %v785
        %v787 = vpop.f32.mrf.mxu0
        %v788 = vadd.f32 %v609, %v787
        %789 = vmatmul.bf16.gmra.mxu0 %v722
        %v790 = vpop.f32.mrf.mxu0
        %v791 = vadd.f32 %v610, %v790
        %v792 = vpop.f32.mrf.mxu0
        %v793 = vadd.f32 %v611, %v792
        %794 = vmatmul.bf16.gmra.mxu0 %v725
        %v795 = vpop.f32.mrf.mxu0
        %v796 = vadd.f32 %v612, %v795
        %v797 = vpop.f32.mrf.mxu0
        %v798 = vadd.f32 %v613, %v797
        %799 = vdwg.mxu0
        %800 = vmax.xlane.f32.xlu0 %v761
        %v801 = vpop.xlane.xlu0 %800
        %802 = vmax.xlane.f32.xlu0 %v763
        %v803 = vpop.xlane.xlu0 %802
        %804 = vmax.xlane.f32.xlu0 %v766
        %v805 = vpop.xlane.xlu0 %804
        %806 = vmax.xlane.f32.xlu0 %v768
        %v807 = vpop.xlane.xlu0 %806
        %808 = vmax.xlane.f32.xlu0 %v771
        %v809 = vpop.xlane.xlu0 %808
        %810 = vmax.xlane.f32.xlu0 %v773
        %v811 = vpop.xlane.xlu0 %810
        %812 = vmax.xlane.f32.xlu0 %v776
        %v813 = vpop.xlane.xlu0 %812
        %814 = vmax.xlane.f32.xlu0 %v778
        %v815 = vpop.xlane.xlu0 %814
        %816 = vmax.xlane.f32.xlu0 %v781
        %v817 = vpop.xlane.xlu0 %816
        %818 = vmax.xlane.f32.xlu0 %v783
        %v819 = vpop.xlane.xlu0 %818
        %820 = vmax.xlane.f32.xlu0 %v786
        %v821 = vpop.xlane.xlu0 %820
        %822 = vmax.xlane.f32.xlu0 %v788
        %v823 = vpop.xlane.xlu0 %822
        %824 = vmax.xlane.f32.xlu0 %v791
        %v825 = vpop.xlane.xlu0 %824
        %826 = vmax.xlane.f32.xlu0 %v793
        %v827 = vpop.xlane.xlu0 %826
        %828 = vmax.xlane.f32.xlu0 %v796
        %v829 = vpop.xlane.xlu0 %828
        %830 = vmax.xlane.f32.xlu0 %v798
        %v831 = vpop.xlane.xlu0 %830
        %v832 = vsub.f32 %v761, %v801
        %v833 = vsub.f32 %v763, %v803
        %v834 = vsub.f32 %v766, %v805
        %v835 = vsub.f32 %v768, %v807
        %v836 = vsub.f32 %v771, %v809
        %v837 = vsub.f32 %v773, %v811
        %v838 = vsub.f32 %v776, %v813
        %v839 = vsub.f32 %v778, %v815
        %v840 = vsub.f32 %v781, %v817
        %v841 = vsub.f32 %v783, %v819
        %v842 = vsub.f32 %v786, %v821
        %v843 = vsub.f32 %v788, %v823
        %v844 = vsub.f32 %v791, %v825
        %v845 = vsub.f32 %v793, %v827
        %v846 = vsub.f32 %v796, %v829
        %v847 = vsub.f32 %v798, %v831
        %v848 = vmul.f32 %v832, 1.442695
        %v849 = vpow.pop %v848
        %v850 = vmul.f32 %v833, 1.442695
        %v851 = vpow.pop %v850
        %v852 = vmul.f32 %v834, 1.442695
        %v853 = vpow.pop %v852
        %v854 = vmul.f32 %v835, 1.442695
        %v855 = vpow.pop %v854
        %v856 = vmul.f32 %v836, 1.442695
        %v857 = vpow.pop %v856
        %v858 = vmul.f32 %v837, 1.442695
        %v859 = vpow.pop %v858
        %v860 = vmul.f32 %v838, 1.442695
        %v861 = vpow.pop %v860
        %v862 = vmul.f32 %v839, 1.442695
        %v863 = vpow.pop %v862
        %v864 = vmul.f32 %v840, 1.442695
        %v865 = vpow.pop %v864
        %v866 = vmul.f32 %v841, 1.442695
        %v867 = vpow.pop %v866
        %v868 = vmul.f32 %v842, 1.442695
        %v869 = vpow.pop %v868
        %v870 = vmul.f32 %v843, 1.442695
        %v871 = vpow.pop %v870
        %v872 = vmul.f32 %v844, 1.442695
        %v873 = vpow.pop %v872
        %v874 = vmul.f32 %v845, 1.442695
        %v875 = vpow.pop %v874
        %v876 = vmul.f32 %v846, 1.442695
        %v877 = vpow.pop %v876
        %v878 = vmul.f32 %v847, 1.442695
        %v879 = vpow.pop %v878
        %880 = vadd.xlane.f32.xlu0 %v849
        %v881 = vpop.xlane.xlu0 %880
        %882 = vadd.xlane.f32.xlu0 %v851
        %v883 = vpop.xlane.xlu0 %882
        %884 = vadd.xlane.f32.xlu0 %v853
        %v885 = vpop.xlane.xlu0 %884
        %886 = vadd.xlane.f32.xlu0 %v855
        %v887 = vpop.xlane.xlu0 %886
        %888 = vadd.xlane.f32.xlu0 %v857
        %v889 = vpop.xlane.xlu0 %888
        %890 = vadd.xlane.f32.xlu0 %v859
        %v891 = vpop.xlane.xlu0 %890
        %892 = vadd.xlane.f32.xlu0 %v861
        %v893 = vpop.xlane.xlu0 %892
        %894 = vadd.xlane.f32.xlu0 %v863
        %v895 = vpop.xlane.xlu0 %894
        %896 = vadd.xlane.f32.xlu0 %v865
        %v897 = vpop.xlane.xlu0 %896
        %898 = vadd.xlane.f32.xlu0 %v867
        %v899 = vpop.xlane.xlu0 %898
        %900 = vadd.xlane.f32.xlu0 %v869
        %v901 = vpop.xlane.xlu0 %900
        %902 = vadd.xlane.f32.xlu0 %v871
        %v903 = vpop.xlane.xlu0 %902
        %904 = vadd.xlane.f32.xlu0 %v873
        %v905 = vpop.xlane.xlu0 %904
        %906 = vadd.xlane.f32.xlu0 %v875
        %v907 = vpop.xlane.xlu0 %906
        %908 = vadd.xlane.f32.xlu0 %v877
        %v909 = vpop.xlane.xlu0 %908
        %910 = vadd.xlane.f32.xlu0 %v879
        %v911 = vpop.xlane.xlu0 %910
        %v912 = vrcp.pop %v881
        %v913 = vrcp.pop %v883
        %v914 = vrcp.pop %v885
        %v915 = vrcp.pop %v887
        %v916 = vrcp.pop %v889
        %v917 = vrcp.pop %v891
        %v918 = vrcp.pop %v893
        %v919 = vrcp.pop %v895
        %v920 = vrcp.pop %v897
        %v921 = vrcp.pop %v899
        %v922 = vrcp.pop %v901
        %v923 = vrcp.pop %v903
        %v924 = vrcp.pop %v905
        %v925 = vrcp.pop %v907
        %v926 = vrcp.pop %v909
        %v927 = vrcp.pop %v911
        %v928 = vmul.f32 %v849, %v912
        %v929 = vmul.f32 %v851, %v913
        %v930 = vmul.f32 %v853, %v914
        %v931 = vmul.f32 %v855, %v915
        %v932 = vmul.f32 %v857, %v916
        %v933 = vmul.f32 %v859, %v917
        %v934 = vmul.f32 %v861, %v918
        %v935 = vmul.f32 %v863, %v919
        %v936 = vmul.f32 %v865, %v920
        %v937 = vmul.f32 %v867, %v921
        %v938 = vmul.f32 %v869, %v922
        %v939 = vmul.f32 %v871, %v923
        %v940 = vmul.f32 %v873, %v924
        %v941 = vmul.f32 %v875, %v925
        %v942 = vmul.f32 %v877, %v926
        %v943 = vmul.f32 %v879, %v927
        %v944 = vpack.c.bf16 %v929, %v928
        %v945 = vpack.c.bf16 %v931, %v930
        %v946 = vpack.c.bf16 %v933, %v932
        %v947 = vpack.c.bf16 %v935, %v934
        %v948 = vpack.c.bf16 %v937, %v936
        %v949 = vpack.c.bf16 %v939, %v938
        %v950 = vpack.c.bf16 %v941, %v940
        %v951 = vpack.c.bf16 %v943, %v942
        %v968 = vunpack.c.l.b16 %v630
        %v969 = vunpack.c.l.b16 %v631
        %v970 = vunpack.c.l.b16 %v632
        %v971 = vunpack.c.l.b16 %v633
        %v972 = vunpack.c.l.b16 %v634
        %v973 = vunpack.c.l.b16 %v635
        %v974 = vunpack.c.l.b16 %v636
        %v975 = vunpack.c.l.b16 %v637
        %v976 = vunpack.c.l.b16 %v638
        %v977 = vunpack.c.l.b16 %v639
        %v978 = vunpack.c.l.b16 %v640
        %v979 = vunpack.c.l.b16 %v641
        %v980 = vunpack.c.l.b16 %v642
        %v981 = vunpack.c.l.b16 %v643
        %v982 = vunpack.c.l.b16 %v644
        %v983 = vunpack.c.l.b16 %v645
        %v984 = vpack.c.b16 %v969, %v968
        %v985 = vpack.c.b16 %v971, %v970
        %v986 = vpack.c.b16 %v973, %v972
        %v987 = vpack.c.b16 %v975, %v974
        %v988 = vpack.c.b16 %v977, %v976
        %v989 = vpack.c.b16 %v979, %v978
        %v990 = vpack.c.b16 %v981, %v980
        %v991 = vpack.c.b16 %v983, %v982
        %1000 = vmatpush.bf16.msra.mxu0 %v991
        %1001 = vmatpush.bf16.msra.mxu0 %v990
        %1002 = vmatpush.bf16.msra.mxu0 %v989
        %1003 = vmatpush.bf16.msra.mxu0 %v988
        %1004 = vmatpush.bf16.msra.mxu0 %v987
        %1005 = vmatpush.bf16.msra.mxu0 %v986
        %1006 = vmatpush.bf16.msra.mxu0 %v985
        %1007 = vmatpush.bf16.msra.mxu0 %v984
        %1008 = vmatmul.bf16.gmra.mxu0 %v944
        %v1009 = vpop.f32.mrf.mxu0
        %v1010 = vadd.f32 0.0, %v1009
        %v1011 = vpop.f32.mrf.mxu0
        %v1012 = vadd.f32 0.0, %v1011
        %1013 = vmatmul.bf16.gmra.mxu0 %v945
        %v1014 = vpop.f32.mrf.mxu0
        %v1015 = vadd.f32 0.0, %v1014
        %v1016 = vpop.f32.mrf.mxu0
        %v1017 = vadd.f32 0.0, %v1016
        %1018 = vmatmul.bf16.gmra.mxu0 %v946
        %v1019 = vpop.f32.mrf.mxu0
        %v1020 = vadd.f32 0.0, %v1019
        %v1021 = vpop.f32.mrf.mxu0
        %v1022 = vadd.f32 0.0, %v1021
        %1023 = vmatmul.bf16.gmra.mxu0 %v947
        %v1024 = vpop.f32.mrf.mxu0
        %v1025 = vadd.f32 0.0, %v1024
        %v1026 = vpop.f32.mrf.mxu0
        %v1027 = vadd.f32 0.0, %v1026
        %1028 = vmatmul.bf16.gmra.mxu0 %v948
        %v1029 = vpop.f32.mrf.mxu0
        %v1030 = vadd.f32 0.0, %v1029
        %v1031 = vpop.f32.mrf.mxu0
        %v1032 = vadd.f32 0.0, %v1031
        %1033 = vmatmul.bf16.gmra.mxu0 %v949
        %v1034 = vpop.f32.mrf.mxu0
        %v1035 = vadd.f32 0.0, %v1034
        %v1036 = vpop.f32.mrf.mxu0
        %v1037 = vadd.f32 0.0, %v1036
        %1038 = vmatmul.bf16.gmra.mxu0 %v950
        %v1039 = vpop.f32.mrf.mxu0
        %v1040 = vadd.f32 0.0, %v1039
        %v1041 = vpop.f32.mrf.mxu0
        %v1042 = vadd.f32 0.0, %v1041
        %1043 = vmatmul.bf16.gmra.mxu0 %v951
        %v1044 = vpop.f32.mrf.mxu0
        %v1045 = vadd.f32 0.0, %v1044
        %v1046 = vpop.f32.mrf.mxu0
        %v1047 = vadd.f32 0.0, %v1046
        %1048 = vdwg.mxu0
        %v1049 = vpack.c.bf16 %v1010, %v1010
        %v1050 = vpack.c.bf16 %v1012, %v1012
        %v1051 = vpack.c.bf16 %v1015, %v1015
        %v1052 = vpack.c.bf16 %v1017, %v1017
        %v1053 = vpack.c.bf16 %v1020, %v1020
        %v1054 = vpack.c.bf16 %v1022, %v1022
        %v1055 = vpack.c.bf16 %v1025, %v1025
        %v1056 = vpack.c.bf16 %v1027, %v1027
        %v1057 = vpack.c.bf16 %v1030, %v1030
        %v1058 = vpack.c.bf16 %v1032, %v1032
        %v1059 = vpack.c.bf16 %v1035, %v1035
        %v1060 = vpack.c.bf16 %v1037, %v1037
        %v1061 = vpack.c.bf16 %v1040, %v1040
        %v1062 = vpack.c.bf16 %v1042, %v1042
        %v1063 = vpack.c.bf16 %v1045, %v1045
        %v1064 = vpack.c.bf16 %v1047, %v1047
        %vm1065 = vcmask 60416
        %1066 = vst.msk [vmem:[#allocation3] sm:$0xf] %vm1065, %v1049
        %1067 = vst.msk [vmem:[#allocation3 + $0x4] sm:$0xf] %vm1065, %v1050
        %1068 = vst.msk [vmem:[#allocation3 + $0x8] sm:$0xf] %vm1065, %v1051
        %1069 = vst.msk [vmem:[#allocation3 + $0xc] sm:$0xf] %vm1065, %v1052
        %1070 = vst.msk [vmem:[#allocation3 + $0x10] sm:$0xf] %vm1065, %v1053
        %1071 = vst.msk [vmem:[#allocation3 + $0x14] sm:$0xf] %vm1065, %v1054
        %1072 = vst.msk [vmem:[#allocation3 + $0x18] sm:$0xf] %vm1065, %v1055
        %1073 = vst.msk [vmem:[#allocation3 + $0x1c] sm:$0xf] %vm1065, %v1056
        %1074 = vst.msk [vmem:[#allocation3 + $0x20] sm:$0xf] %vm1065, %v1057
        %1075 = vst.msk [vmem:[#allocation3 + $0x24] sm:$0xf] %vm1065, %v1058
        %1076 = vst.msk [vmem:[#allocation3 + $0x28] sm:$0xf] %vm1065, %v1059
        %1077 = vst.msk [vmem:[#allocation3 + $0x2c] sm:$0xf] %vm1065, %v1060
        %1078 = vst.msk [vmem:[#allocation3 + $0x30] sm:$0xf] %vm1065, %v1061
        %1079 = vst.msk [vmem:[#allocation3 + $0x34] sm:$0xf] %vm1065, %v1062
        %1080 = vst.msk [vmem:[#allocation3 + $0x38] sm:$0xf] %vm1065, %v1063
        %1081 = vst.msk [vmem:[#allocation3 + $0x3c] sm:$0xf] %vm1065, %v1064
        %v1082 = vld [vmem:[#allocation2] sm:$0xf]
        %v1083 = vld [vmem:[#allocation2 + $0x8] sm:$0xf]
        %v1084 = vld [vmem:[#allocation2 + $0x10] sm:$0xf]
        %v1085 = vld [vmem:[#allocation2 + $0x18] sm:$0xf]
        %v1086 = vld [vmem:[#allocation2 + $0x20] sm:$0xf]
        %v1087 = vld [vmem:[#allocation2 + $0x28] sm:$0xf]
        %v1088 = vld [vmem:[#allocation2 + $0x30] sm:$0xf]
        %v1089 = vld [vmem:[#allocation2 + $0x38] sm:$0xf]
        %v1090 = vld [vmem:[#allocation2 + $0x40] sm:$0xf]
        %v1091 = vld [vmem:[#allocation2 + $0x48] sm:$0xf]
        %v1092 = vld [vmem:[#allocation2 + $0x50] sm:$0xf]
        %v1093 = vld [vmem:[#allocation2 + $0x58] sm:$0xf]
        %v1094 = vld [vmem:[#allocation2 + $0x60] sm:$0xf]
        %v1095 = vld [vmem:[#allocation2 + $0x68] sm:$0xf]
        %v1096 = vld [vmem:[#allocation2 + $0x70] sm:$0xf]
        %v1097 = vld [vmem:[#allocation2 + $0x78] sm:$0xf]
        %v1098 = vld [vmem:[#allocation2 + $0x4] sm:$0xf]
        %v1099 = vld [vmem:[#allocation2 + $0xc] sm:$0xf]
        %v1100 = vld [vmem:[#allocation2 + $0x14] sm:$0xf]
        %v1101 = vld [vmem:[#allocation2 + $0x1c] sm:$0xf]
        %v1102 = vld [vmem:[#allocation2 + $0x24] sm:$0xf]
        %v1103 = vld [vmem:[#allocation2 + $0x2c] sm:$0xf]
        %v1104 = vld [vmem:[#allocation2 + $0x34] sm:$0xf]
        %v1105 = vld [vmem:[#allocation2 + $0x3c] sm:$0xf]
        %v1106 = vld [vmem:[#allocation2 + $0x44] sm:$0xf]
        %v1107 = vld [vmem:[#allocation2 + $0x4c] sm:$0xf]
        %v1108 = vld [vmem:[#allocation2 + $0x54] sm:$0xf]
        %v1109 = vld [vmem:[#allocation2 + $0x5c] sm:$0xf]
        %v1110 = vld [vmem:[#allocation2 + $0x64] sm:$0xf]
        %v1111 = vld [vmem:[#allocation2 + $0x6c] sm:$0xf]
        %v1112 = vld [vmem:[#allocation2 + $0x74] sm:$0xf]
        %v1113 = vld [vmem:[#allocation2 + $0x7c] sm:$0xf]
        %v1130 = vunpack.c.l.b16 %v1082
        %v1131 = vunpack.c.l.b16 %v1083
        %v1132 = vunpack.c.l.b16 %v1084
        %v1133 = vunpack.c.l.b16 %v1085
        %v1134 = vunpack.c.l.b16 %v1086
        %v1135 = vunpack.c.l.b16 %v1087
        %v1136 = vunpack.c.l.b16 %v1088
        %v1137 = vunpack.c.l.b16 %v1089
        %v1138 = vunpack.c.l.b16 %v1090
        %v1139 = vunpack.c.l.b16 %v1091
        %v1140 = vunpack.c.l.b16 %v1092
        %v1141 = vunpack.c.l.b16 %v1093
        %v1142 = vunpack.c.l.b16 %v1094
        %v1143 = vunpack.c.l.b16 %v1095
        %v1144 = vunpack.c.l.b16 %v1096
        %v1145 = vunpack.c.l.b16 %v1097
        %v1146 = vpack.c.b16 %v1131, %v1130
        %v1147 = vpack.c.b16 %v1133, %v1132
        %v1148 = vpack.c.b16 %v1135, %v1134
        %v1149 = vpack.c.b16 %v1137, %v1136
        %v1150 = vpack.c.b16 %v1139, %v1138
        %v1151 = vpack.c.b16 %v1141, %v1140
        %v1152 = vpack.c.b16 %v1143, %v1142
        %v1153 = vpack.c.b16 %v1145, %v1144
        %1154 = vrot.lane.b32.xlu0 %v1146, 120
        %v1155 = vpop.permute.xlu0 %1154
        %1156 = vrot.lane.b32.xlu0 %v1147, 120
        %v1157 = vpop.permute.xlu0 %1156
        %1158 = vrot.lane.b32.xlu0 %v1148, 120
        %v1159 = vpop.permute.xlu0 %1158
        %1160 = vrot.lane.b32.xlu0 %v1149, 120
        %v1161 = vpop.permute.xlu0 %1160
        %1162 = vrot.lane.b32.xlu0 %v1150, 120
        %v1163 = vpop.permute.xlu0 %1162
        %1164 = vrot.lane.b32.xlu0 %v1151, 120
        %v1165 = vpop.permute.xlu0 %1164
        %1166 = vrot.lane.b32.xlu0 %v1152, 120
        %v1167 = vpop.permute.xlu0 %1166
        %1168 = vrot.lane.b32.xlu0 %v1153, 120
        %v1169 = vpop.permute.xlu0 %1168
        %1170 = vrot.lane.b32.xlu0 %v1146, 56
        %v1171 = vpop.permute.xlu0 %1170
        %1172 = vrot.lane.b32.xlu0 %v1147, 56
        %v1173 = vpop.permute.xlu0 %1172
        %1174 = vrot.lane.b32.xlu0 %v1148, 56
        %v1175 = vpop.permute.xlu0 %1174
        %1176 = vrot.lane.b32.xlu0 %v1149, 56
        %v1177 = vpop.permute.xlu0 %1176
        %1178 = vrot.lane.b32.xlu0 %v1150, 56
        %v1179 = vpop.permute.xlu0 %1178
        %1180 = vrot.lane.b32.xlu0 %v1151, 56
        %v1181 = vpop.permute.xlu0 %1180
        %1182 = vrot.lane.b32.xlu0 %v1152, 56
        %v1183 = vpop.permute.xlu0 %1182
        %1184 = vrot.lane.b32.xlu0 %v1153, 56
        %v1185 = vpop.permute.xlu0 %1184
        %v1187 = vsel %vm702, %v1155, 0
        %v1190 = vsel %vm702, %v1157, 0
        %v1193 = vsel %vm702, %v1159, 0
        %v1196 = vsel %vm702, %v1161, 0
        %v1199 = vsel %vm702, %v1163, 0
        %v1202 = vsel %vm702, %v1165, 0
        %v1205 = vsel %vm702, %v1167, 0
        %v1208 = vsel %vm702, %v1169, 0
        %v1211 = vsel %vm702, %v1171, 0
        %v1214 = vsel %vm702, %v1173, 0
        %v1217 = vsel %vm702, %v1175, 0
        %v1220 = vsel %vm702, %v1177, 0
        %v1223 = vsel %vm702, %v1179, 0
        %v1226 = vsel %vm702, %v1181, 0
        %v1229 = vsel %vm702, %v1183, 0
        %v1232 = vsel %vm702, %v1185, 0
        %1234 = vmatpush.bf16.xpose.msra.mxu0 %v1232
        %1235 = vmatpush.bf16.xpose.msra.mxu0 %v1229
        %1236 = vmatpush.bf16.xpose.msra.mxu0 %v1226
        %1237 = vmatpush.bf16.xpose.msra.mxu0 %v1223
        %1238 = vmatpush.bf16.xpose.msra.mxu0 %v1220
        %1239 = vmatpush.bf16.xpose.msra.mxu0 %v1217
        %1240 = vmatpush.bf16.xpose.msra.mxu0 %v1214
        %1241 = vmatpush.bf16.xpose.msra.mxu0 %v1211
        %1242 = vmatmul.bf16.gmra.mxu0 %v1187
        %v1243 = vpop.f32.mrf.mxu0
        %v1244 = vadd.f32 %v598, %v1243
        %v1245 = vpop.f32.mrf.mxu0
        %v1246 = vadd.f32 %v599, %v1245
        %1247 = vmatmul.bf16.gmra.mxu0 %v1190
        %v1248 = vpop.f32.mrf.mxu0
        %v1249 = vadd.f32 %v600, %v1248
        %v1250 = vpop.f32.mrf.mxu0
        %v1251 = vadd.f32 %v601, %v1250
        %1252 = vmatmul.bf16.gmra.mxu0 %v1193
        %v1253 = vpop.f32.mrf.mxu0
        %v1254 = vadd.f32 %v602, %v1253
        %v1255 = vpop.f32.mrf.mxu0
        %v1256 = vadd.f32 %v603, %v1255
        %1257 = vmatmul.bf16.gmra.mxu0 %v1196
        %v1258 = vpop.f32.mrf.mxu0
        %v1259 = vadd.f32 %v604, %v1258
        %v1260 = vpop.f32.mrf.mxu0
        %v1261 = vadd.f32 %v605, %v1260
        %1262 = vmatmul.bf16.gmra.mxu0 %v1199
        %v1263 = vpop.f32.mrf.mxu0
        %v1264 = vadd.f32 %v606, %v1263
        %v1265 = vpop.f32.mrf.mxu0
        %v1266 = vadd.f32 %v607, %v1265
        %1267 = vmatmul.bf16.gmra.mxu0 %v1202
        %v1268 = vpop.f32.mrf.mxu0
        %v1269 = vadd.f32 %v608, %v1268
        %v1270 = vpop.f32.mrf.mxu0
        %v1271 = vadd.f32 %v609, %v1270
        %1272 = vmatmul.bf16.gmra.mxu0 %v1205
        %v1273 = vpop.f32.mrf.mxu0
        %v1274 = vadd.f32 %v610, %v1273
        %v1275 = vpop.f32.mrf.mxu0
        %v1276 = vadd.f32 %v611, %v1275
        %1277 = vmatmul.bf16.gmra.mxu0 %v1208
        %v1278 = vpop.f32.mrf.mxu0
        %v1279 = vadd.f32 %v612, %v1278
        %v1280 = vpop.f32.mrf.mxu0
        %v1281 = vadd.f32 %v613, %v1280
        %1282 = vdwg.mxu0
        %1283 = vmax.xlane.f32.xlu0 %v1244
        %v1284 = vpop.xlane.xlu0 %1283
        %1285 = vmax.xlane.f32.xlu0 %v1246
        %v1286 = vpop.xlane.xlu0 %1285
        %1287 = vmax.xlane.f32.xlu0 %v1249
        %v1288 = vpop.xlane.xlu0 %1287
        %1289 = vmax.xlane.f32.xlu0 %v1251
        %v1290 = vpop.xlane.xlu0 %1289
        %1291 = vmax.xlane.f32.xlu0 %v1254
        %v1292 = vpop.xlane.xlu0 %1291
        %1293 = vmax.xlane.f32.xlu0 %v1256
        %v1294 = vpop.xlane.xlu0 %1293
        %1295 = vmax.xlane.f32.xlu0 %v1259
        %v1296 = vpop.xlane.xlu0 %1295
        %1297 = vmax.xlane.f32.xlu0 %v1261
        %v1298 = vpop.xlane.xlu0 %1297
        %1299 = vmax.xlane.f32.xlu0 %v1264
        %v1300 = vpop.xlane.xlu0 %1299
        %1301 = vmax.xlane.f32.xlu0 %v1266
        %v1302 = vpop.xlane.xlu0 %1301
        %1303 = vmax.xlane.f32.xlu0 %v1269
        %v1304 = vpop.xlane.xlu0 %1303
        %1305 = vmax.xlane.f32.xlu0 %v1271
        %v1306 = vpop.xlane.xlu0 %1305
        %1307 = vmax.xlane.f32.xlu0 %v1274
        %v1308 = vpop.xlane.xlu0 %1307
        %1309 = vmax.xlane.f32.xlu0 %v1276
        %v1310 = vpop.xlane.xlu0 %1309
        %1311 = vmax.xlane.f32.xlu0 %v1279
        %v1312 = vpop.xlane.xlu0 %1311
        %1313 = vmax.xlane.f32.xlu0 %v1281
        %v1314 = vpop.xlane.xlu0 %1313
        %v1315 = vsub.f32 %v1244, %v1284
        %v1316 = vsub.f32 %v1246, %v1286
        %v1317 = vsub.f32 %v1249, %v1288
        %v1318 = vsub.f32 %v1251, %v1290
        %v1319 = vsub.f32 %v1254, %v1292
        %v1320 = vsub.f32 %v1256, %v1294
        %v1321 = vsub.f32 %v1259, %v1296
        %v1322 = vsub.f32 %v1261, %v1298
        %v1323 = vsub.f32 %v1264, %v1300
        %v1324 = vsub.f32 %v1266, %v1302
        %v1325 = vsub.f32 %v1269, %v1304
        %v1326 = vsub.f32 %v1271, %v1306
        %v1327 = vsub.f32 %v1274, %v1308
        %v1328 = vsub.f32 %v1276, %v1310
        %v1329 = vsub.f32 %v1279, %v1312
        %v1330 = vsub.f32 %v1281, %v1314
        %v1331 = vmul.f32 %v1315, 1.442695
        %v1332 = vpow.pop %v1331
        %v1333 = vmul.f32 %v1316, 1.442695
        %v1334 = vpow.pop %v1333
        %v1335 = vmul.f32 %v1317, 1.442695
        %v1336 = vpow.pop %v1335
        %v1337 = vmul.f32 %v1318, 1.442695
        %v1338 = vpow.pop %v1337
        %v1339 = vmul.f32 %v1319, 1.442695
        %v1340 = vpow.pop %v1339
        %v1341 = vmul.f32 %v1320, 1.442695
        %v1342 = vpow.pop %v1341
        %v1343 = vmul.f32 %v1321, 1.442695
        %v1344 = vpow.pop %v1343
        %v1345 = vmul.f32 %v1322, 1.442695
        %v1346 = vpow.pop %v1345
        %v1347 = vmul.f32 %v1323, 1.442695
        %v1348 = vpow.pop %v1347
        %v1349 = vmul.f32 %v1324, 1.442695
        %v1350 = vpow.pop %v1349
        %v1351 = vmul.f32 %v1325, 1.442695
        %v1352 = vpow.pop %v1351
        %v1353 = vmul.f32 %v1326, 1.442695
        %v1354 = vpow.pop %v1353
        %v1355 = vmul.f32 %v1327, 1.442695
        %v1356 = vpow.pop %v1355
        %v1357 = vmul.f32 %v1328, 1.442695
        %v1358 = vpow.pop %v1357
        %v1359 = vmul.f32 %v1329, 1.442695
        %v1360 = vpow.pop %v1359
        %v1361 = vmul.f32 %v1330, 1.442695
        %v1362 = vpow.pop %v1361
        %1363 = vadd.xlane.f32.xlu0 %v1332
        %v1364 = vpop.xlane.xlu0 %1363
        %1365 = vadd.xlane.f32.xlu0 %v1334
        %v1366 = vpop.xlane.xlu0 %1365
        %1367 = vadd.xlane.f32.xlu0 %v1336
        %v1368 = vpop.xlane.xlu0 %1367
        %1369 = vadd.xlane.f32.xlu0 %v1338
        %v1370 = vpop.xlane.xlu0 %1369
        %1371 = vadd.xlane.f32.xlu0 %v1340
        %v1372 = vpop.xlane.xlu0 %1371
        %1373 = vadd.xlane.f32.xlu0 %v1342
        %v1374 = vpop.xlane.xlu0 %1373
        %1375 = vadd.xlane.f32.xlu0 %v1344
        %v1376 = vpop.xlane.xlu0 %1375
        %1377 = vadd.xlane.f32.xlu0 %v1346
        %v1378 = vpop.xlane.xlu0 %1377
        %1379 = vadd.xlane.f32.xlu0 %v1348
        %v1380 = vpop.xlane.xlu0 %1379
        %1381 = vadd.xlane.f32.xlu0 %v1350
        %v1382 = vpop.xlane.xlu0 %1381
        %1383 = vadd.xlane.f32.xlu0 %v1352
        %v1384 = vpop.xlane.xlu0 %1383
        %1385 = vadd.xlane.f32.xlu0 %v1354
        %v1386 = vpop.xlane.xlu0 %1385
        %1387 = vadd.xlane.f32.xlu0 %v1356
        %v1388 = vpop.xlane.xlu0 %1387
        %1389 = vadd.xlane.f32.xlu0 %v1358
        %v1390 = vpop.xlane.xlu0 %1389
        %1391 = vadd.xlane.f32.xlu0 %v1360
        %v1392 = vpop.xlane.xlu0 %1391
        %1393 = vadd.xlane.f32.xlu0 %v1362
        %v1394 = vpop.xlane.xlu0 %1393
        %v1395 = vrcp.pop %v1364
        %v1396 = vrcp.pop %v1366
        %v1397 = vrcp.pop %v1368
        %v1398 = vrcp.pop %v1370
        %v1399 = vrcp.pop %v1372
        %v1400 = vrcp.pop %v1374
        %v1401 = vrcp.pop %v1376
        %v1402 = vrcp.pop %v1378
        %v1403 = vrcp.pop %v1380
        %v1404 = vrcp.pop %v1382
        %v1405 = vrcp.pop %v1384
        %v1406 = vrcp.pop %v1386
        %v1407 = vrcp.pop %v1388
        %v1408 = vrcp.pop %v1390
        %v1409 = vrcp.pop %v1392
        %v1410 = vrcp.pop %v1394
        %v1411 = vmul.f32 %v1332, %v1395
        %v1412 = vmul.f32 %v1334, %v1396
        %v1413 = vmul.f32 %v1336, %v1397
        %v1414 = vmul.f32 %v1338, %v1398
        %v1415 = vmul.f32 %v1340, %v1399
        %v1416 = vmul.f32 %v1342, %v1400
        %v1417 = vmul.f32 %v1344, %v1401
        %v1418 = vmul.f32 %v1346, %v1402
        %v1419 = vmul.f32 %v1348, %v1403
        %v1420 = vmul.f32 %v1350, %v1404
        %v1421 = vmul.f32 %v1352, %v1405
        %v1422 = vmul.f32 %v1354, %v1406
        %v1423 = vmul.f32 %v1356, %v1407
        %v1424 = vmul.f32 %v1358, %v1408
        %v1425 = vmul.f32 %v1360, %v1409
        %v1426 = vmul.f32 %v1362, %v1410
        %v1427 = vpack.c.bf16 %v1412, %v1411
        %v1428 = vpack.c.bf16 %v1414, %v1413
        %v1429 = vpack.c.bf16 %v1416, %v1415
        %v1430 = vpack.c.bf16 %v1418, %v1417
        %v1431 = vpack.c.bf16 %v1420, %v1419
        %v1432 = vpack.c.bf16 %v1422, %v1421
        %v1433 = vpack.c.bf16 %v1424, %v1423
        %v1434 = vpack.c.bf16 %v1426, %v1425
        %v1451 = vunpack.c.l.b16 %v1098
        %v1452 = vunpack.c.l.b16 %v1099
        %v1453 = vunpack.c.l.b16 %v1100
        %v1454 = vunpack.c.l.b16 %v1101
        %v1455 = vunpack.c.l.b16 %v1102
        %v1456 = vunpack.c.l.b16 %v1103
        %v1457 = vunpack.c.l.b16 %v1104
        %v1458 = vunpack.c.l.b16 %v1105
        %v1459 = vunpack.c.l.b16 %v1106
        %v1460 = vunpack.c.l.b16 %v1107
        %v1461 = vunpack.c.l.b16 %v1108
        %v1462 = vunpack.c.l.b16 %v1109
        %v1463 = vunpack.c.l.b16 %v1110
        %v1464 = vunpack.c.l.b16 %v1111
        %v1465 = vunpack.c.l.b16 %v1112
        %v1466 = vunpack.c.l.b16 %v1113
        %v1467 = vpack.c.b16 %v1452, %v1451
        %v1468 = vpack.c.b16 %v1454, %v1453
        %v1469 = vpack.c.b16 %v1456, %v1455
        %v1470 = vpack.c.b16 %v1458, %v1457
        %v1471 = vpack.c.b16 %v1460, %v1459
        %v1472 = vpack.c.b16 %v1462, %v1461
        %v1473 = vpack.c.b16 %v1464, %v1463
        %v1474 = vpack.c.b16 %v1466, %v1465
        %1475 = vrot.lane.b32.xlu0 %v1467, 120
        %v1476 = vpop.permute.xlu0 %1475
        %1477 = vrot.lane.b32.xlu0 %v1468, 120
        %v1478 = vpop.permute.xlu0 %1477
        %1479 = vrot.lane.b32.xlu0 %v1469, 120
        %v1480 = vpop.permute.xlu0 %1479
        %1481 = vrot.lane.b32.xlu0 %v1470, 120
        %v1482 = vpop.permute.xlu0 %1481
        %1483 = vrot.lane.b32.xlu0 %v1471, 120
        %v1484 = vpop.permute.xlu0 %1483
        %1485 = vrot.lane.b32.xlu0 %v1472, 120
        %v1486 = vpop.permute.xlu0 %1485
        %1487 = vrot.lane.b32.xlu0 %v1473, 120
        %v1488 = vpop.permute.xlu0 %1487
        %1489 = vrot.lane.b32.xlu0 %v1474, 120
        %v1490 = vpop.permute.xlu0 %1489
        %1499 = vmatpush.bf16.msra.mxu0 %v1490
        %1500 = vmatpush.bf16.msra.mxu0 %v1488
        %1501 = vmatpush.bf16.msra.mxu0 %v1486
        %1502 = vmatpush.bf16.msra.mxu0 %v1484
        %1503 = vmatpush.bf16.msra.mxu0 %v1482
        %1504 = vmatpush.bf16.msra.mxu0 %v1480
        %1505 = vmatpush.bf16.msra.mxu0 %v1478
        %1506 = vmatpush.bf16.msra.mxu0 %v1476
        %1507 = vmatmul.bf16.gmra.mxu0 %v1427
        %v1508 = vpop.f32.mrf.mxu0
        %v1509 = vadd.f32 0.0, %v1508
        %v1510 = vpop.f32.mrf.mxu0
        %v1511 = vadd.f32 0.0, %v1510
        %1512 = vmatmul.bf16.gmra.mxu0 %v1428
        %v1513 = vpop.f32.mrf.mxu0
        %v1514 = vadd.f32 0.0, %v1513
        %v1515 = vpop.f32.mrf.mxu0
        %v1516 = vadd.f32 0.0, %v1515
        %1517 = vmatmul.bf16.gmra.mxu0 %v1429
        %v1518 = vpop.f32.mrf.mxu0
        %v1519 = vadd.f32 0.0, %v1518
        %v1520 = vpop.f32.mrf.mxu0
        %v1521 = vadd.f32 0.0, %v1520
        %1522 = vmatmul.bf16.gmra.mxu0 %v1430
        %v1523 = vpop.f32.mrf.mxu0
        %v1524 = vadd.f32 0.0, %v1523
        %v1525 = vpop.f32.mrf.mxu0
        %v1526 = vadd.f32 0.0, %v1525
        %1527 = vmatmul.bf16.gmra.mxu0 %v1431
        %v1528 = vpop.f32.mrf.mxu0
        %v1529 = vadd.f32 0.0, %v1528
        %v1530 = vpop.f32.mrf.mxu0
        %v1531 = vadd.f32 0.0, %v1530
        %1532 = vmatmul.bf16.gmra.mxu0 %v1432
        %v1533 = vpop.f32.mrf.mxu0
        %v1534 = vadd.f32 0.0, %v1533
        %v1535 = vpop.f32.mrf.mxu0
        %v1536 = vadd.f32 0.0, %v1535
        %1537 = vmatmul.bf16.gmra.mxu0 %v1433
        %v1538 = vpop.f32.mrf.mxu0
        %v1539 = vadd.f32 0.0, %v1538
        %v1540 = vpop.f32.mrf.mxu0
        %v1541 = vadd.f32 0.0, %v1540
        %1542 = vmatmul.bf16.gmra.mxu0 %v1434
        %v1543 = vpop.f32.mrf.mxu0
        %v1544 = vadd.f32 0.0, %v1543
        %v1545 = vpop.f32.mrf.mxu0
        %v1546 = vadd.f32 0.0, %v1545
        %1547 = vdwg.mxu0
        %v1548 = vpack.c.bf16 %v1509, %v1509
        %v1549 = vpack.c.bf16 %v1511, %v1511
        %v1550 = vpack.c.bf16 %v1514, %v1514
        %v1551 = vpack.c.bf16 %v1516, %v1516
        %v1552 = vpack.c.bf16 %v1519, %v1519
        %v1553 = vpack.c.bf16 %v1521, %v1521
        %v1554 = vpack.c.bf16 %v1524, %v1524
        %v1555 = vpack.c.bf16 %v1526, %v1526
        %v1556 = vpack.c.bf16 %v1529, %v1529
        %v1557 = vpack.c.bf16 %v1531, %v1531
        %v1558 = vpack.c.bf16 %v1534, %v1534
        %v1559 = vpack.c.bf16 %v1536, %v1536
        %v1560 = vpack.c.bf16 %v1539, %v1539
        %v1561 = vpack.c.bf16 %v1541, %v1541
        %v1562 = vpack.c.bf16 %v1544, %v1544
        %v1563 = vpack.c.bf16 %v1546, %v1546
        %1580 = vrot.lane.b32.xlu0 %v1548, 8
        %v1581 = vpop.permute.xlu0 %1580
        %1582 = vrot.lane.b32.xlu0 %v1549, 8
        %v1583 = vpop.permute.xlu0 %1582
        %1584 = vrot.lane.b32.xlu0 %v1550, 8
        %v1585 = vpop.permute.xlu0 %1584
        %1586 = vrot.lane.b32.xlu0 %v1551, 8
        %v1587 = vpop.permute.xlu0 %1586
        %1588 = vrot.lane.b32.xlu0 %v1552, 8
        %v1589 = vpop.permute.xlu0 %1588
        %1590 = vrot.lane.b32.xlu0 %v1553, 8
        %v1591 = vpop.permute.xlu0 %1590
        %1592 = vrot.lane.b32.xlu0 %v1554, 8
        %v1593 = vpop.permute.xlu0 %1592
        %1594 = vrot.lane.b32.xlu0 %v1555, 8
        %v1595 = vpop.permute.xlu0 %1594
        %1596 = vrot.lane.b32.xlu0 %v1556, 8
        %v1597 = vpop.permute.xlu0 %1596
        %1598 = vrot.lane.b32.xlu0 %v1557, 8
        %v1599 = vpop.permute.xlu0 %1598
        %1600 = vrot.lane.b32.xlu0 %v1558, 8
        %v1601 = vpop.permute.xlu0 %1600
        %1602 = vrot.lane.b32.xlu0 %v1559, 8
        %v1603 = vpop.permute.xlu0 %1602
        %1604 = vrot.lane.b32.xlu0 %v1560, 8
        %v1605 = vpop.permute.xlu0 %1604
        %1606 = vrot.lane.b32.xlu0 %v1561, 8
        %v1607 = vpop.permute.xlu0 %1606
        %1608 = vrot.lane.b32.xlu0 %v1562, 8
        %v1609 = vpop.permute.xlu0 %1608
        %1610 = vrot.lane.b32.xlu0 %v1563, 8
        %v1611 = vpop.permute.xlu0 %1610
        %vm1628 = vcmask 126016
        %1629 = vst.msk [vmem:[#allocation3] sm:$0xf] %vm1628, %v1581
        %1630 = vst.msk [vmem:[#allocation3 + $0x4] sm:$0xf] %vm1628, %v1583
        %1631 = vst.msk [vmem:[#allocation3 + $0x8] sm:$0xf] %vm1628, %v1585
        %1632 = vst.msk [vmem:[#allocation3 + $0xc] sm:$0xf] %vm1628, %v1587
        %1633 = vst.msk [vmem:[#allocation3 + $0x10] sm:$0xf] %vm1628, %v1589
        %1634 = vst.msk [vmem:[#allocation3 + $0x14] sm:$0xf] %vm1628, %v1591
        %1635 = vst.msk [vmem:[#allocation3 + $0x18] sm:$0xf] %vm1628, %v1593
        %1636 = vst.msk [vmem:[#allocation3 + $0x1c] sm:$0xf] %vm1628, %v1595
        %1637 = vst.msk [vmem:[#allocation3 + $0x20] sm:$0xf] %vm1628, %v1597
        %1638 = vst.msk [vmem:[#allocation3 + $0x24] sm:$0xf] %vm1628, %v1599
        %1639 = vst.msk [vmem:[#allocation3 + $0x28] sm:$0xf] %vm1628, %v1601
        %1640 = vst.msk [vmem:[#allocation3 + $0x2c] sm:$0xf] %vm1628, %v1603
        %1641 = vst.msk [vmem:[#allocation3 + $0x30] sm:$0xf] %vm1628, %v1605
        %1642 = vst.msk [vmem:[#allocation3 + $0x34] sm:$0xf] %vm1628, %v1607
        %1643 = vst.msk [vmem:[#allocation3 + $0x38] sm:$0xf] %vm1628, %v1609
        %1644 = vst.msk [vmem:[#allocation3 + $0x3c] sm:$0xf] %vm1628, %v1611
        %v1645 = vld [vmem:[#allocation2] sm:$0xf]
        %v1646 = vld [vmem:[#allocation2 + $0x8] sm:$0xf]
        %v1647 = vld [vmem:[#allocation2 + $0x10] sm:$0xf]
        %v1648 = vld [vmem:[#allocation2 + $0x18] sm:$0xf]
        %v1649 = vld [vmem:[#allocation2 + $0x20] sm:$0xf]
        %v1650 = vld [vmem:[#allocation2 + $0x28] sm:$0xf]
        %v1651 = vld [vmem:[#allocation2 + $0x30] sm:$0xf]
        %v1652 = vld [vmem:[#allocation2 + $0x38] sm:$0xf]
        %v1653 = vld [vmem:[#allocation2 + $0x40] sm:$0xf]
        %v1654 = vld [vmem:[#allocation2 + $0x48] sm:$0xf]
        %v1655 = vld [vmem:[#allocation2 + $0x50] sm:$0xf]
        %v1656 = vld [vmem:[#allocation2 + $0x58] sm:$0xf]
        %v1657 = vld [vmem:[#allocation2 + $0x60] sm:$0xf]
        %v1658 = vld [vmem:[#allocation2 + $0x68] sm:$0xf]
        %v1659 = vld [vmem:[#allocation2 + $0x70] sm:$0xf]
        %v1660 = vld [vmem:[#allocation2 + $0x78] sm:$0xf]
        %v1661 = vld [vmem:[#allocation2 + $0x4] sm:$0xf]
        %v1662 = vld [vmem:[#allocation2 + $0xc] sm:$0xf]
        %v1663 = vld [vmem:[#allocation2 + $0x14] sm:$0xf]
        %v1664 = vld [vmem:[#allocation2 + $0x1c] sm:$0xf]
        %v1665 = vld [vmem:[#allocation2 + $0x24] sm:$0xf]
        %v1666 = vld [vmem:[#allocation2 + $0x2c] sm:$0xf]
        %v1667 = vld [vmem:[#allocation2 + $0x34] sm:$0xf]
        %v1668 = vld [vmem:[#allocation2 + $0x3c] sm:$0xf]
        %v1669 = vld [vmem:[#allocation2 + $0x44] sm:$0xf]
        %v1670 = vld [vmem:[#allocation2 + $0x4c] sm:$0xf]
        %v1671 = vld [vmem:[#allocation2 + $0x54] sm:$0xf]
        %v1672 = vld [vmem:[#allocation2 + $0x5c] sm:$0xf]
        %v1673 = vld [vmem:[#allocation2 + $0x64] sm:$0xf]
        %v1674 = vld [vmem:[#allocation2 + $0x6c] sm:$0xf]
        %v1675 = vld [vmem:[#allocation2 + $0x74] sm:$0xf]
        %v1676 = vld [vmem:[#allocation2 + $0x7c] sm:$0xf]
        %v1693 = vunpack.c.l.b16 %v1645
        %v1694 = vunpack.c.l.b16 %v1646
        %v1695 = vunpack.c.l.b16 %v1647
        %v1696 = vunpack.c.l.b16 %v1648
        %v1697 = vunpack.c.l.b16 %v1649
        %v1698 = vunpack.c.l.b16 %v1650
        %v1699 = vunpack.c.l.b16 %v1651
        %v1700 = vunpack.c.l.b16 %v1652
        %v1701 = vunpack.c.l.b16 %v1653
        %v1702 = vunpack.c.l.b16 %v1654
        %v1703 = vunpack.c.l.b16 %v1655
        %v1704 = vunpack.c.l.b16 %v1656
        %v1705 = vunpack.c.l.b16 %v1657
        %v1706 = vunpack.c.l.b16 %v1658
        %v1707 = vunpack.c.l.b16 %v1659
        %v1708 = vunpack.c.l.b16 %v1660
        %v1709 = vpack.c.b16 %v1694, %v1693
        %v1710 = vpack.c.b16 %v1696, %v1695
        %v1711 = vpack.c.b16 %v1698, %v1697
        %v1712 = vpack.c.b16 %v1700, %v1699
        %v1713 = vpack.c.b16 %v1702, %v1701
        %v1714 = vpack.c.b16 %v1704, %v1703
        %v1715 = vpack.c.b16 %v1706, %v1705
        %v1716 = vpack.c.b16 %v1708, %v1707
        %1717 = vrot.lane.b32.xlu0 %v1709, 112
        %v1718 = vpop.permute.xlu0 %1717
        %1719 = vrot.lane.b32.xlu0 %v1710, 112
        %v1720 = vpop.permute.xlu0 %1719
        %1721 = vrot.lane.b32.xlu0 %v1711, 112
        %v1722 = vpop.permute.xlu0 %1721
        %1723 = vrot.lane.b32.xlu0 %v1712, 112
        %v1724 = vpop.permute.xlu0 %1723
        %1725 = vrot.lane.b32.xlu0 %v1713, 112
        %v1726 = vpop.permute.xlu0 %1725
        %1727 = vrot.lane.b32.xlu0 %v1714, 112
        %v1728 = vpop.permute.xlu0 %1727
        %1729 = vrot.lane.b32.xlu0 %v1715, 112
        %v1730 = vpop.permute.xlu0 %1729
        %1731 = vrot.lane.b32.xlu0 %v1716, 112
        %v1732 = vpop.permute.xlu0 %1731
        %1733 = vrot.lane.b32.xlu0 %v1709, 48
        %v1734 = vpop.permute.xlu0 %1733
        %1735 = vrot.lane.b32.xlu0 %v1710, 48
        %v1736 = vpop.permute.xlu0 %1735
        %1737 = vrot.lane.b32.xlu0 %v1711, 48
        %v1738 = vpop.permute.xlu0 %1737
        %1739 = vrot.lane.b32.xlu0 %v1712, 48
        %v1740 = vpop.permute.xlu0 %1739
        %1741 = vrot.lane.b32.xlu0 %v1713, 48
        %v1742 = vpop.permute.xlu0 %1741
        %1743 = vrot.lane.b32.xlu0 %v1714, 48
        %v1744 = vpop.permute.xlu0 %1743
        %1745 = vrot.lane.b32.xlu0 %v1715, 48
        %v1746 = vpop.permute.xlu0 %1745
        %1747 = vrot.lane.b32.xlu0 %v1716, 48
        %v1748 = vpop.permute.xlu0 %1747
        %v1750 = vsel %vm702, %v1718, 0
        %v1753 = vsel %vm702, %v1720, 0
        %v1756 = vsel %vm702, %v1722, 0
        %v1759 = vsel %vm702, %v1724, 0
        %v1762 = vsel %vm702, %v1726, 0
        %v1765 = vsel %vm702, %v1728, 0
        %v1768 = vsel %vm702, %v1730, 0
        %v1771 = vsel %vm702, %v1732, 0
        %v1774 = vsel %vm702, %v1734, 0
        %v1777 = vsel %vm702, %v1736, 0
        %v1780 = vsel %vm702, %v1738, 0
        %v1783 = vsel %vm702, %v1740, 0
        %v1786 = vsel %vm702, %v1742, 0
        %v1789 = vsel %vm702, %v1744, 0
        %v1792 = vsel %vm702, %v1746, 0
        %v1795 = vsel %vm702, %v1748, 0
        %1797 = vmatpush.bf16.xpose.msra.mxu0 %v1795
        %1798 = vmatpush.bf16.xpose.msra.mxu0 %v1792
        %1799 = vmatpush.bf16.xpose.msra.mxu0 %v1789
        %1800 = vmatpush.bf16.xpose.msra.mxu0 %v1786
        %1801 = vmatpush.bf16.xpose.msra.mxu0 %v1783
        %1802 = vmatpush.bf16.xpose.msra.mxu0 %v1780
        %1803 = vmatpush.bf16.xpose.msra.mxu0 %v1777
        %1804 = vmatpush.bf16.xpose.msra.mxu0 %v1774
        %1805 = vmatmul.bf16.gmra.mxu0 %v1750
        %v1806 = vpop.f32.mrf.mxu0
        %v1807 = vadd.f32 %v598, %v1806
        %v1808 = vpop.f32.mrf.mxu0
        %v1809 = vadd.f32 %v599, %v1808
        %1810 = vmatmul.bf16.gmra.mxu0 %v1753
        %v1811 = vpop.f32.mrf.mxu0
        %v1812 = vadd.f32 %v600, %v1811
        %v1813 = vpop.f32.mrf.mxu0
        %v1814 = vadd.f32 %v601, %v1813
        %1815 = vmatmul.bf16.gmra.mxu0 %v1756
        %v1816 = vpop.f32.mrf.mxu0
        %v1817 = vadd.f32 %v602, %v1816
        %v1818 = vpop.f32.mrf.mxu0
        %v1819 = vadd.f32 %v603, %v1818
        %1820 = vmatmul.bf16.gmra.mxu0 %v1759
        %v1821 = vpop.f32.mrf.mxu0
        %v1822 = vadd.f32 %v604, %v1821
        %v1823 = vpop.f32.mrf.mxu0
        %v1824 = vadd.f32 %v605, %v1823
        %1825 = vmatmul.bf16.gmra.mxu0 %v1762
        %v1826 = vpop.f32.mrf.mxu0
        %v1827 = vadd.f32 %v606, %v1826
        %v1828 = vpop.f32.mrf.mxu0
        %v1829 = vadd.f32 %v607, %v1828
        %1830 = vmatmul.bf16.gmra.mxu0 %v1765
        %v1831 = vpop.f32.mrf.mxu0
        %v1832 = vadd.f32 %v608, %v1831
        %v1833 = vpop.f32.mrf.mxu0
        %v1834 = vadd.f32 %v609, %v1833
        %1835 = vmatmul.bf16.gmra.mxu0 %v1768
        %v1836 = vpop.f32.mrf.mxu0
        %v1837 = vadd.f32 %v610, %v1836
        %v1838 = vpop.f32.mrf.mxu0
        %v1839 = vadd.f32 %v611, %v1838
        %1840 = vmatmul.bf16.gmra.mxu0 %v1771
        %v1841 = vpop.f32.mrf.mxu0
        %v1842 = vadd.f32 %v612, %v1841
        %v1843 = vpop.f32.mrf.mxu0
        %v1844 = vadd.f32 %v613, %v1843
        %1845 = vdwg.mxu0
        %1846 = vmax.xlane.f32.xlu0 %v1807
        %v1847 = vpop.xlane.xlu0 %1846
        %1848 = vmax.xlane.f32.xlu0 %v1809
        %v1849 = vpop.xlane.xlu0 %1848
        %1850 = vmax.xlane.f32.xlu0 %v1812
        %v1851 = vpop.xlane.xlu0 %1850
        %1852 = vmax.xlane.f32.xlu0 %v1814
        %v1853 = vpop.xlane.xlu0 %1852
        %1854 = vmax.xlane.f32.xlu0 %v1817
        %v1855 = vpop.xlane.xlu0 %1854
        %1856 = vmax.xlane.f32.xlu0 %v1819
        %v1857 = vpop.xlane.xlu0 %1856
        %1858 = vmax.xlane.f32.xlu0 %v1822
        %v1859 = vpop.xlane.xlu0 %1858
        %1860 = vmax.xlane.f32.xlu0 %v1824
        %v1861 = vpop.xlane.xlu0 %1860
        %1862 = vmax.xlane.f32.xlu0 %v1827
        %v1863 = vpop.xlane.xlu0 %1862
        %1864 = vmax.xlane.f32.xlu0 %v1829
        %v1865 = vpop.xlane.xlu0 %1864
        %1866 = vmax.xlane.f32.xlu0 %v1832
        %v1867 = vpop.xlane.xlu0 %1866
        %1868 = vmax.xlane.f32.xlu0 %v1834
        %v1869 = vpop.xlane.xlu0 %1868
        %1870 = vmax.xlane.f32.xlu0 %v1837
        %v1871 = vpop.xlane.xlu0 %1870
        %1872 = vmax.xlane.f32.xlu0 %v1839
        %v1873 = vpop.xlane.xlu0 %1872
        %1874 = vmax.xlane.f32.xlu0 %v1842
        %v1875 = vpop.xlane.xlu0 %1874
        %1876 = vmax.xlane.f32.xlu0 %v1844
        %v1877 = vpop.xlane.xlu0 %1876
        %v1878 = vsub.f32 %v1807, %v1847
        %v1879 = vsub.f32 %v1809, %v1849
        %v1880 = vsub.f32 %v1812, %v1851
        %v1881 = vsub.f32 %v1814, %v1853
        %v1882 = vsub.f32 %v1817, %v1855
        %v1883 = vsub.f32 %v1819, %v1857
        %v1884 = vsub.f32 %v1822, %v1859
        %v1885 = vsub.f32 %v1824, %v1861
        %v1886 = vsub.f32 %v1827, %v1863
        %v1887 = vsub.f32 %v1829, %v1865
        %v1888 = vsub.f32 %v1832, %v1867
        %v1889 = vsub.f32 %v1834, %v1869
        %v1890 = vsub.f32 %v1837, %v1871
        %v1891 = vsub.f32 %v1839, %v1873
        %v1892 = vsub.f32 %v1842, %v1875
        %v1893 = vsub.f32 %v1844, %v1877
        %v1894 = vmul.f32 %v1878, 1.442695
        %v1895 = vpow.pop %v1894
        %v1896 = vmul.f32 %v1879, 1.442695
        %v1897 = vpow.pop %v1896
        %v1898 = vmul.f32 %v1880, 1.442695
        %v1899 = vpow.pop %v1898
        %v1900 = vmul.f32 %v1881, 1.442695
        %v1901 = vpow.pop %v1900
        %v1902 = vmul.f32 %v1882, 1.442695
        %v1903 = vpow.pop %v1902
        %v1904 = vmul.f32 %v1883, 1.442695
        %v1905 = vpow.pop %v1904
        %v1906 = vmul.f32 %v1884, 1.442695
        %v1907 = vpow.pop %v1906
        %v1908 = vmul.f32 %v1885, 1.442695
        %v1909 = vpow.pop %v1908
        %v1910 = vmul.f32 %v1886, 1.442695
        %v1911 = vpow.pop %v1910
        %v1912 = vmul.f32 %v1887, 1.442695
        %v1913 = vpow.pop %v1912
        %v1914 = vmul.f32 %v1888, 1.442695
        %v1915 = vpow.pop %v1914
        %v1916 = vmul.f32 %v1889, 1.442695
        %v1917 = vpow.pop %v1916
        %v1918 = vmul.f32 %v1890, 1.442695
        %v1919 = vpow.pop %v1918
        %v1920 = vmul.f32 %v1891, 1.442695
        %v1921 = vpow.pop %v1920
        %v1922 = vmul.f32 %v1892, 1.442695
        %v1923 = vpow.pop %v1922
        %v1924 = vmul.f32 %v1893, 1.442695
        %v1925 = vpow.pop %v1924
        %1926 = vadd.xlane.f32.xlu0 %v1895
        %v1927 = vpop.xlane.xlu0 %1926
        %1928 = vadd.xlane.f32.xlu0 %v1897
        %v1929 = vpop.xlane.xlu0 %1928
        %1930 = vadd.xlane.f32.xlu0 %v1899
        %v1931 = vpop.xlane.xlu0 %1930
        %1932 = vadd.xlane.f32.xlu0 %v1901
        %v1933 = vpop.xlane.xlu0 %1932
        %1934 = vadd.xlane.f32.xlu0 %v1903
        %v1935 = vpop.xlane.xlu0 %1934
        %1936 = vadd.xlane.f32.xlu0 %v1905
        %v1937 = vpop.xlane.xlu0 %1936
        %1938 = vadd.xlane.f32.xlu0 %v1907
        %v1939 = vpop.xlane.xlu0 %1938
        %1940 = vadd.xlane.f32.xlu0 %v1909
        %v1941 = vpop.xlane.xlu0 %1940
        %1942 = vadd.xlane.f32.xlu0 %v1911
        %v1943 = vpop.xlane.xlu0 %1942
        %1944 = vadd.xlane.f32.xlu0 %v1913
        %v1945 = vpop.xlane.xlu0 %1944
        %1946 = vadd.xlane.f32.xlu0 %v1915
        %v1947 = vpop.xlane.xlu0 %1946
        %1948 = vadd.xlane.f32.xlu0 %v1917
        %v1949 = vpop.xlane.xlu0 %1948
        %1950 = vadd.xlane.f32.xlu0 %v1919
        %v1951 = vpop.xlane.xlu0 %1950
        %1952 = vadd.xlane.f32.xlu0 %v1921
        %v1953 = vpop.xlane.xlu0 %1952
        %1954 = vadd.xlane.f32.xlu0 %v1923
        %v1955 = vpop.xlane.xlu0 %1954
        %1956 = vadd.xlane.f32.xlu0 %v1925
        %v1957 = vpop.xlane.xlu0 %1956
        %v1958 = vrcp.pop %v1927
        %v1959 = vrcp.pop %v1929
        %v1960 = vrcp.pop %v1931
        %v1961 = vrcp.pop %v1933
        %v1962 = vrcp.pop %v1935
        %v1963 = vrcp.pop %v1937
        %v1964 = vrcp.pop %v1939
        %v1965 = vrcp.pop %v1941
        %v1966 = vrcp.pop %v1943
        %v1967 = vrcp.pop %v1945
        %v1968 = vrcp.pop %v1947
        %v1969 = vrcp.pop %v1949
        %v1970 = vrcp.pop %v1951
        %v1971 = vrcp.pop %v1953
        %v1972 = vrcp.pop %v1955
        %v1973 = vrcp.pop %v1957
        %v1974 = vmul.f32 %v1895, %v1958
        %v1975 = vmul.f32 %v1897, %v1959
        %v1976 = vmul.f32 %v1899, %v1960
        %v1977 = vmul.f32 %v1901, %v1961
        %v1978 = vmul.f32 %v1903, %v1962
        %v1979 = vmul.f32 %v1905, %v1963
        %v1980 = vmul.f32 %v1907, %v1964
        %v1981 = vmul.f32 %v1909, %v1965
        %v1982 = vmul.f32 %v1911, %v1966
        %v1983 = vmul.f32 %v1913, %v1967
        %v1984 = vmul.f32 %v1915, %v1968
        %v1985 = vmul.f32 %v1917, %v1969
        %v1986 = vmul.f32 %v1919, %v1970
        %v1987 = vmul.f32 %v1921, %v1971
        %v1988 = vmul.f32 %v1923, %v1972
        %v1989 = vmul.f32 %v1925, %v1973
        %v1990 = vpack.c.bf16 %v1975, %v1974
        %v1991 = vpack.c.bf16 %v1977, %v1976
        %v1992 = vpack.c.bf16 %v1979, %v1978
        %v1993 = vpack.c.bf16 %v1981, %v1980
        %v1994 = vpack.c.bf16 %v1983, %v1982
        %v1995 = vpack.c.bf16 %v1985, %v1984
        %v1996 = vpack.c.bf16 %v1987, %v1986
        %v1997 = vpack.c.bf16 %v1989, %v1988
        %v2014 = vunpack.c.l.b16 %v1661
        %v2015 = vunpack.c.l.b16 %v1662
        %v2016 = vunpack.c.l.b16 %v1663
        %v2017 = vunpack.c.l.b16 %v1664
        %v2018 = vunpack.c.l.b16 %v1665
        %v2019 = vunpack.c.l.b16 %v1666
        %v2020 = vunpack.c.l.b16 %v1667
        %v2021 = vunpack.c.l.b16 %v1668
        %v2022 = vunpack.c.l.b16 %v1669
        %v2023 = vunpack.c.l.b16 %v1670
        %v2024 = vunpack.c.l.b16 %v1671
        %v2025 = vunpack.c.l.b16 %v1672
        %v2026 = vunpack.c.l.b16 %v1673
        %v2027 = vunpack.c.l.b16 %v1674
        %v2028 = vunpack.c.l.b16 %v1675
        %v2029 = vunpack.c.l.b16 %v1676
        %v2030 = vpack.c.b16 %v2015, %v2014
        %v2031 = vpack.c.b16 %v2017, %v2016
        %v2032 = vpack.c.b16 %v2019, %v2018
        %v2033 = vpack.c.b16 %v2021, %v2020
        %v2034 = vpack.c.b16 %v2023, %v2022
        %v2035 = vpack.c.b16 %v2025, %v2024
        %v2036 = vpack.c.b16 %v2027, %v2026
        %v2037 = vpack.c.b16 %v2029, %v2028
        %2038 = vrot.lane.b32.xlu0 %v2030, 112
        %v2039 = vpop.permute.xlu0 %2038
        %2040 = vrot.lane.b32.xlu0 %v2031, 112
        %v2041 = vpop.permute.xlu0 %2040
        %2042 = vrot.lane.b32.xlu0 %v2032, 112
        %v2043 = vpop.permute.xlu0 %2042
        %2044 = vrot.lane.b32.xlu0 %v2033, 112
        %v2045 = vpop.permute.xlu0 %2044
        %2046 = vrot.lane.b32.xlu0 %v2034, 112
        %v2047 = vpop.permute.xlu0 %2046
        %2048 = vrot.lane.b32.xlu0 %v2035, 112
        %v2049 = vpop.permute.xlu0 %2048
        %2050 = vrot.lane.b32.xlu0 %v2036, 112
        %v2051 = vpop.permute.xlu0 %2050
        %2052 = vrot.lane.b32.xlu0 %v2037, 112
        %v2053 = vpop.permute.xlu0 %2052
        %2062 = vmatpush.bf16.msra.mxu0 %v2053
        %2063 = vmatpush.bf16.msra.mxu0 %v2051
        %2064 = vmatpush.bf16.msra.mxu0 %v2049
        %2065 = vmatpush.bf16.msra.mxu0 %v2047
        %2066 = vmatpush.bf16.msra.mxu0 %v2045
        %2067 = vmatpush.bf16.msra.mxu0 %v2043
        %2068 = vmatpush.bf16.msra.mxu0 %v2041
        %2069 = vmatpush.bf16.msra.mxu0 %v2039
        %2070 = vmatmul.bf16.gmra.mxu0 %v1990
        %v2071 = vpop.f32.mrf.mxu0
        %v2072 = vadd.f32 0.0, %v2071
        %v2073 = vpop.f32.mrf.mxu0
        %v2074 = vadd.f32 0.0, %v2073
        %2075 = vmatmul.bf16.gmra.mxu0 %v1991
        %v2076 = vpop.f32.mrf.mxu0
        %v2077 = vadd.f32 0.0, %v2076
        %v2078 = vpop.f32.mrf.mxu0
        %v2079 = vadd.f32 0.0, %v2078
        %2080 = vmatmul.bf16.gmra.mxu0 %v1992
        %v2081 = vpop.f32.mrf.mxu0
        %v2082 = vadd.f32 0.0, %v2081
        %v2083 = vpop.f32.mrf.mxu0
        %v2084 = vadd.f32 0.0, %v2083
        %2085 = vmatmul.bf16.gmra.mxu0 %v1993
        %v2086 = vpop.f32.mrf.mxu0
        %v2087 = vadd.f32 0.0, %v2086
        %v2088 = vpop.f32.mrf.mxu0
        %v2089 = vadd.f32 0.0, %v2088
        %2090 = vmatmul.bf16.gmra.mxu0 %v1994
        %v2091 = vpop.f32.mrf.mxu0
        %v2092 = vadd.f32 0.0, %v2091
        %v2093 = vpop.f32.mrf.mxu0
        %v2094 = vadd.f32 0.0, %v2093
        %2095 = vmatmul.bf16.gmra.mxu0 %v1995
        %v2096 = vpop.f32.mrf.mxu0
        %v2097 = vadd.f32 0.0, %v2096
        %v2098 = vpop.f32.mrf.mxu0
        %v2099 = vadd.f32 0.0, %v2098
        %2100 = vmatmul.bf16.gmra.mxu0 %v1996
        %v2101 = vpop.f32.mrf.mxu0
        %v2102 = vadd.f32 0.0, %v2101
        %v2103 = vpop.f32.mrf.mxu0
        %v2104 = vadd.f32 0.0, %v2103
        %2105 = vmatmul.bf16.gmra.mxu0 %v1997
        %v2106 = vpop.f32.mrf.mxu0
        %v2107 = vadd.f32 0.0, %v2106
        %v2108 = vpop.f32.mrf.mxu0
        %v2109 = vadd.f32 0.0, %v2108
        %2110 = vdwg.mxu0
        %v2111 = vpack.c.bf16 %v2072, %v2072
        %v2112 = vpack.c.bf16 %v2074, %v2074
        %v2113 = vpack.c.bf16 %v2077, %v2077
        %v2114 = vpack.c.bf16 %v2079, %v2079
        %v2115 = vpack.c.bf16 %v2082, %v2082
        %v2116 = vpack.c.bf16 %v2084, %v2084
        %v2117 = vpack.c.bf16 %v2087, %v2087
        %v2118 = vpack.c.bf16 %v2089, %v2089
        %v2119 = vpack.c.bf16 %v2092, %v2092
        %v2120 = vpack.c.bf16 %v2094, %v2094
        %v2121 = vpack.c.bf16 %v2097, %v2097
        %v2122 = vpack.c.bf16 %v2099, %v2099
        %v2123 = vpack.c.bf16 %v2102, %v2102
        %v2124 = vpack.c.bf16 %v2104, %v2104
        %v2125 = vpack.c.bf16 %v2107, %v2107
        %v2126 = vpack.c.bf16 %v2109, %v2109
        %2143 = vrot.lane.b32.xlu0 %v2111, 16
        %v2144 = vpop.permute.xlu0 %2143
        %2145 = vrot.lane.b32.xlu0 %v2112, 16
        %v2146 = vpop.permute.xlu0 %2145
        %2147 = vrot.lane.b32.xlu0 %v2113, 16
        %v2148 = vpop.permute.xlu0 %2147
        %2149 = vrot.lane.b32.xlu0 %v2114, 16
        %v2150 = vpop.permute.xlu0 %2149
        %2151 = vrot.lane.b32.xlu0 %v2115, 16
        %v2152 = vpop.permute.xlu0 %2151
        %2153 = vrot.lane.b32.xlu0 %v2116, 16
        %v2154 = vpop.permute.xlu0 %2153
        %2155 = vrot.lane.b32.xlu0 %v2117, 16
        %v2156 = vpop.permute.xlu0 %2155
        %2157 = vrot.lane.b32.xlu0 %v2118, 16
        %v2158 = vpop.permute.xlu0 %2157
        %2159 = vrot.lane.b32.xlu0 %v2119, 16
        %v2160 = vpop.permute.xlu0 %2159
        %2161 = vrot.lane.b32.xlu0 %v2120, 16
        %v2162 = vpop.permute.xlu0 %2161
        %2163 = vrot.lane.b32.xlu0 %v2121, 16
        %v2164 = vpop.permute.xlu0 %2163
        %2165 = vrot.lane.b32.xlu0 %v2122, 16
        %v2166 = vpop.permute.xlu0 %2165
        %2167 = vrot.lane.b32.xlu0 %v2123, 16
        %v2168 = vpop.permute.xlu0 %2167
        %2169 = vrot.lane.b32.xlu0 %v2124, 16
        %v2170 = vpop.permute.xlu0 %2169
        %2171 = vrot.lane.b32.xlu0 %v2125, 16
        %v2172 = vpop.permute.xlu0 %2171
        %2173 = vrot.lane.b32.xlu0 %v2126, 16
        %v2174 = vpop.permute.xlu0 %2173
        %vm2191 = vcmask 191616
        %2192 = vst.msk [vmem:[#allocation3] sm:$0xf] %vm2191, %v2144
        %2193 = vst.msk [vmem:[#allocation3 + $0x4] sm:$0xf] %vm2191, %v2146
        %2194 = vst.msk [vmem:[#allocation3 + $0x8] sm:$0xf] %vm2191, %v2148
        %2195 = vst.msk [vmem:[#allocation3 + $0xc] sm:$0xf] %vm2191, %v2150
        %2196 = vst.msk [vmem:[#allocation3 + $0x10] sm:$0xf] %vm2191, %v2152
        %2197 = vst.msk [vmem:[#allocation3 + $0x14] sm:$0xf] %vm2191, %v2154
        %2198 = vst.msk [vmem:[#allocation3 + $0x18] sm:$0xf] %vm2191, %v2156
        %2199 = vst.msk [vmem:[#allocation3 + $0x1c] sm:$0xf] %vm2191, %v2158
        %2200 = vst.msk [vmem:[#allocation3 + $0x20] sm:$0xf] %vm2191, %v2160
        %2201 = vst.msk [vmem:[#allocation3 + $0x24] sm:$0xf] %vm2191, %v2162
        %2202 = vst.msk [vmem:[#allocation3 + $0x28] sm:$0xf] %vm2191, %v2164
        %2203 = vst.msk [vmem:[#allocation3 + $0x2c] sm:$0xf] %vm2191, %v2166
        %2204 = vst.msk [vmem:[#allocation3 + $0x30] sm:$0xf] %vm2191, %v2168
        %2205 = vst.msk [vmem:[#allocation3 + $0x34] sm:$0xf] %vm2191, %v2170
        %2206 = vst.msk [vmem:[#allocation3 + $0x38] sm:$0xf] %vm2191, %v2172
        %2207 = vst.msk [vmem:[#allocation3 + $0x3c] sm:$0xf] %vm2191, %v2174
        %v2208 = vld [vmem:[#allocation2] sm:$0xf]
        %v2209 = vld [vmem:[#allocation2 + $0x8] sm:$0xf]
        %v2210 = vld [vmem:[#allocation2 + $0x10] sm:$0xf]
        %v2211 = vld [vmem:[#allocation2 + $0x18] sm:$0xf]
        %v2212 = vld [vmem:[#allocation2 + $0x20] sm:$0xf]
        %v2213 = vld [vmem:[#allocation2 + $0x28] sm:$0xf]
        %v2214 = vld [vmem:[#allocation2 + $0x30] sm:$0xf]
        %v2215 = vld [vmem:[#allocation2 + $0x38] sm:$0xf]
        %v2216 = vld [vmem:[#allocation2 + $0x40] sm:$0xf]
        %v2217 = vld [vmem:[#allocation2 + $0x48] sm:$0xf]
        %v2218 = vld [vmem:[#allocation2 + $0x50] sm:$0xf]
        %v2219 = vld [vmem:[#allocation2 + $0x58] sm:$0xf]
        %v2220 = vld [vmem:[#allocation2 + $0x60] sm:$0xf]
        %v2221 = vld [vmem:[#allocation2 + $0x68] sm:$0xf]
        %v2222 = vld [vmem:[#allocation2 + $0x70] sm:$0xf]
        %v2223 = vld [vmem:[#allocation2 + $0x78] sm:$0xf]
        %v2224 = vld [vmem:[#allocation2 + $0x4] sm:$0xf]
        %v2225 = vld [vmem:[#allocation2 + $0xc] sm:$0xf]
        %v2226 = vld [vmem:[#allocation2 + $0x14] sm:$0xf]
        %v2227 = vld [vmem:[#allocation2 + $0x1c] sm:$0xf]
        %v2228 = vld [vmem:[#allocation2 + $0x24] sm:$0xf]
        %v2229 = vld [vmem:[#allocation2 + $0x2c] sm:$0xf]
        %v2230 = vld [vmem:[#allocation2 + $0x34] sm:$0xf]
        %v2231 = vld [vmem:[#allocation2 + $0x3c] sm:$0xf]
        %v2232 = vld [vmem:[#allocation2 + $0x44] sm:$0xf]
        %v2233 = vld [vmem:[#allocation2 + $0x4c] sm:$0xf]
        %v2234 = vld [vmem:[#allocation2 + $0x54] sm:$0xf]
        %v2235 = vld [vmem:[#allocation2 + $0x5c] sm:$0xf]
        %v2236 = vld [vmem:[#allocation2 + $0x64] sm:$0xf]
        %v2237 = vld [vmem:[#allocation2 + $0x6c] sm:$0xf]
        %v2238 = vld [vmem:[#allocation2 + $0x74] sm:$0xf]
        %v2239 = vld [vmem:[#allocation2 + $0x7c] sm:$0xf]
        %v2256 = vunpack.c.l.b16 %v2208
        %v2257 = vunpack.c.l.b16 %v2209
        %v2258 = vunpack.c.l.b16 %v2210
        %v2259 = vunpack.c.l.b16 %v2211
        %v2260 = vunpack.c.l.b16 %v2212
        %v2261 = vunpack.c.l.b16 %v2213
        %v2262 = vunpack.c.l.b16 %v2214
        %v2263 = vunpack.c.l.b16 %v2215
        %v2264 = vunpack.c.l.b16 %v2216
        %v2265 = vunpack.c.l.b16 %v2217
        %v2266 = vunpack.c.l.b16 %v2218
        %v2267 = vunpack.c.l.b16 %v2219
        %v2268 = vunpack.c.l.b16 %v2220
        %v2269 = vunpack.c.l.b16 %v2221
        %v2270 = vunpack.c.l.b16 %v2222
        %v2271 = vunpack.c.l.b16 %v2223
        %v2272 = vpack.c.b16 %v2257, %v2256
        %v2273 = vpack.c.b16 %v2259, %v2258
        %v2274 = vpack.c.b16 %v2261, %v2260
        %v2275 = vpack.c.b16 %v2263, %v2262
        %v2276 = vpack.c.b16 %v2265, %v2264
        %v2277 = vpack.c.b16 %v2267, %v2266
        %v2278 = vpack.c.b16 %v2269, %v2268
        %v2279 = vpack.c.b16 %v2271, %v2270
        %2280 = vrot.lane.b32.xlu0 %v2272, 104
        %v2281 = vpop.permute.xlu0 %2280
        %2282 = vrot.lane.b32.xlu0 %v2273, 104
        %v2283 = vpop.permute.xlu0 %2282
        %2284 = vrot.lane.b32.xlu0 %v2274, 104
        %v2285 = vpop.permute.xlu0 %2284
        %2286 = vrot.lane.b32.xlu0 %v2275, 104
        %v2287 = vpop.permute.xlu0 %2286
        %2288 = vrot.lane.b32.xlu0 %v2276, 104
        %v2289 = vpop.permute.xlu0 %2288
        %2290 = vrot.lane.b32.xlu0 %v2277, 104
        %v2291 = vpop.permute.xlu0 %2290
        %2292 = vrot.lane.b32.xlu0 %v2278, 104
        %v2293 = vpop.permute.xlu0 %2292
        %2294 = vrot.lane.b32.xlu0 %v2279, 104
        %v2295 = vpop.permute.xlu0 %2294
        %2296 = vrot.lane.b32.xlu0 %v2272, 40
        %v2297 = vpop.permute.xlu0 %2296
        %2298 = vrot.lane.b32.xlu0 %v2273, 40
        %v2299 = vpop.permute.xlu0 %2298
        %2300 = vrot.lane.b32.xlu0 %v2274, 40
        %v2301 = vpop.permute.xlu0 %2300
        %2302 = vrot.lane.b32.xlu0 %v2275, 40
        %v2303 = vpop.permute.xlu0 %2302
        %2304 = vrot.lane.b32.xlu0 %v2276, 40
        %v2305 = vpop.permute.xlu0 %2304
        %2306 = vrot.lane.b32.xlu0 %v2277, 40
        %v2307 = vpop.permute.xlu0 %2306
        %2308 = vrot.lane.b32.xlu0 %v2278, 40
        %v2309 = vpop.permute.xlu0 %2308
        %2310 = vrot.lane.b32.xlu0 %v2279, 40
        %v2311 = vpop.permute.xlu0 %2310
        %v2313 = vsel %vm702, %v2281, 0
        %v2316 = vsel %vm702, %v2283, 0
        %v2319 = vsel %vm702, %v2285, 0
        %v2322 = vsel %vm702, %v2287, 0
        %v2325 = vsel %vm702, %v2289, 0
        %v2328 = vsel %vm702, %v2291, 0
        %v2331 = vsel %vm702, %v2293, 0
        %v2334 = vsel %vm702, %v2295, 0
        %v2337 = vsel %vm702, %v2297, 0
        %v2340 = vsel %vm702, %v2299, 0
        %v2343 = vsel %vm702, %v2301, 0
        %v2346 = vsel %vm702, %v2303, 0
        %v2349 = vsel %vm702, %v2305, 0
        %v2352 = vsel %vm702, %v2307, 0
        %v2355 = vsel %vm702, %v2309, 0
        %v2358 = vsel %vm702, %v2311, 0
        %2360 = vmatpush.bf16.xpose.msra.mxu0 %v2358
        %2361 = vmatpush.bf16.xpose.msra.mxu0 %v2355
        %2362 = vmatpush.bf16.xpose.msra.mxu0 %v2352
        %2363 = vmatpush.bf16.xpose.msra.mxu0 %v2349
        %2364 = vmatpush.bf16.xpose.msra.mxu0 %v2346
        %2365 = vmatpush.bf16.xpose.msra.mxu0 %v2343
        %2366 = vmatpush.bf16.xpose.msra.mxu0 %v2340
        %2367 = vmatpush.bf16.xpose.msra.mxu0 %v2337
        %2368 = vmatmul.bf16.gmra.mxu0 %v2313
        %v2369 = vpop.f32.mrf.mxu0
        %v2370 = vadd.f32 %v598, %v2369
        %v2371 = vpop.f32.mrf.mxu0
        %v2372 = vadd.f32 %v599, %v2371
        %2373 = vmatmul.bf16.gmra.mxu0 %v2316
        %v2374 = vpop.f32.mrf.mxu0
        %v2375 = vadd.f32 %v600, %v2374
        %v2376 = vpop.f32.mrf.mxu0
        %v2377 = vadd.f32 %v601, %v2376
        %2378 = vmatmul.bf16.gmra.mxu0 %v2319
        %v2379 = vpop.f32.mrf.mxu0
        %v2380 = vadd.f32 %v602, %v2379
        %v2381 = vpop.f32.mrf.mxu0
        %v2382 = vadd.f32 %v603, %v2381
        %2383 = vmatmul.bf16.gmra.mxu0 %v2322
        %v2384 = vpop.f32.mrf.mxu0
        %v2385 = vadd.f32 %v604, %v2384
        %v2386 = vpop.f32.mrf.mxu0
        %v2387 = vadd.f32 %v605, %v2386
        %2388 = vmatmul.bf16.gmra.mxu0 %v2325
        %v2389 = vpop.f32.mrf.mxu0
        %v2390 = vadd.f32 %v606, %v2389
        %v2391 = vpop.f32.mrf.mxu0
        %v2392 = vadd.f32 %v607, %v2391
        %2393 = vmatmul.bf16.gmra.mxu0 %v2328
        %v2394 = vpop.f32.mrf.mxu0
        %v2395 = vadd.f32 %v608, %v2394
        %v2396 = vpop.f32.mrf.mxu0
        %v2397 = vadd.f32 %v609, %v2396
        %2398 = vmatmul.bf16.gmra.mxu0 %v2331
        %v2399 = vpop.f32.mrf.mxu0
        %v2400 = vadd.f32 %v610, %v2399
        %v2401 = vpop.f32.mrf.mxu0
        %v2402 = vadd.f32 %v611, %v2401
        %2403 = vmatmul.bf16.gmra.mxu0 %v2334
        %v2404 = vpop.f32.mrf.mxu0
        %v2405 = vadd.f32 %v612, %v2404
        %v2406 = vpop.f32.mrf.mxu0
        %v2407 = vadd.f32 %v613, %v2406
        %2408 = vdwg.mxu0
        %2409 = vmax.xlane.f32.xlu0 %v2370
        %v2410 = vpop.xlane.xlu0 %2409
        %2411 = vmax.xlane.f32.xlu0 %v2372
        %v2412 = vpop.xlane.xlu0 %2411
        %2413 = vmax.xlane.f32.xlu0 %v2375
        %v2414 = vpop.xlane.xlu0 %2413
        %2415 = vmax.xlane.f32.xlu0 %v2377
        %v2416 = vpop.xlane.xlu0 %2415
        %2417 = vmax.xlane.f32.xlu0 %v2380
        %v2418 = vpop.xlane.xlu0 %2417
        %2419 = vmax.xlane.f32.xlu0 %v2382
        %v2420 = vpop.xlane.xlu0 %2419
        %2421 = vmax.xlane.f32.xlu0 %v2385
        %v2422 = vpop.xlane.xlu0 %2421
        %2423 = vmax.xlane.f32.xlu0 %v2387
        %v2424 = vpop.xlane.xlu0 %2423
        %2425 = vmax.xlane.f32.xlu0 %v2390
        %v2426 = vpop.xlane.xlu0 %2425
        %2427 = vmax.xlane.f32.xlu0 %v2392
        %v2428 = vpop.xlane.xlu0 %2427
        %2429 = vmax.xlane.f32.xlu0 %v2395
        %v2430 = vpop.xlane.xlu0 %2429
        %2431 = vmax.xlane.f32.xlu0 %v2397
        %v2432 = vpop.xlane.xlu0 %2431
        %2433 = vmax.xlane.f32.xlu0 %v2400
        %v2434 = vpop.xlane.xlu0 %2433
        %2435 = vmax.xlane.f32.xlu0 %v2402
        %v2436 = vpop.xlane.xlu0 %2435
        %2437 = vmax.xlane.f32.xlu0 %v2405
        %v2438 = vpop.xlane.xlu0 %2437
        %2439 = vmax.xlane.f32.xlu0 %v2407
        %v2440 = vpop.xlane.xlu0 %2439
        %v2441 = vsub.f32 %v2370, %v2410
        %v2442 = vsub.f32 %v2372, %v2412
        %v2443 = vsub.f32 %v2375, %v2414
        %v2444 = vsub.f32 %v2377, %v2416
        %v2445 = vsub.f32 %v2380, %v2418
        %v2446 = vsub.f32 %v2382, %v2420
        %v2447 = vsub.f32 %v2385, %v2422
        %v2448 = vsub.f32 %v2387, %v2424
        %v2449 = vsub.f32 %v2390, %v2426
        %v2450 = vsub.f32 %v2392, %v2428
        %v2451 = vsub.f32 %v2395, %v2430
        %v2452 = vsub.f32 %v2397, %v2432
        %v2453 = vsub.f32 %v2400, %v2434
        %v2454 = vsub.f32 %v2402, %v2436
        %v2455 = vsub.f32 %v2405, %v2438
        %v2456 = vsub.f32 %v2407, %v2440
        %v2457 = vmul.f32 %v2441, 1.442695
        %v2458 = vpow.pop %v2457
        %v2459 = vmul.f32 %v2442, 1.442695
        %v2460 = vpow.pop %v2459
        %v2461 = vmul.f32 %v2443, 1.442695
        %v2462 = vpow.pop %v2461
        %v2463 = vmul.f32 %v2444, 1.442695
        %v2464 = vpow.pop %v2463
        %v2465 = vmul.f32 %v2445, 1.442695
        %v2466 = vpow.pop %v2465
        %v2467 = vmul.f32 %v2446, 1.442695
        %v2468 = vpow.pop %v2467
        %v2469 = vmul.f32 %v2447, 1.442695
        %v2470 = vpow.pop %v2469
        %v2471 = vmul.f32 %v2448, 1.442695
        %v2472 = vpow.pop %v2471
        %v2473 = vmul.f32 %v2449, 1.442695
        %v2474 = vpow.pop %v2473
        %v2475 = vmul.f32 %v2450, 1.442695
        %v2476 = vpow.pop %v2475
        %v2477 = vmul.f32 %v2451, 1.442695
        %v2478 = vpow.pop %v2477
        %v2479 = vmul.f32 %v2452, 1.442695
        %v2480 = vpow.pop %v2479
        %v2481 = vmul.f32 %v2453, 1.442695
        %v2482 = vpow.pop %v2481
        %v2483 = vmul.f32 %v2454, 1.442695
        %v2484 = vpow.pop %v2483
        %v2485 = vmul.f32 %v2455, 1.442695
        %v2486 = vpow.pop %v2485
        %v2487 = vmul.f32 %v2456, 1.442695
        %v2488 = vpow.pop %v2487
        %2489 = vadd.xlane.f32.xlu0 %v2458
        %v2490 = vpop.xlane.xlu0 %2489
        %2491 = vadd.xlane.f32.xlu0 %v2460
        %v2492 = vpop.xlane.xlu0 %2491
        %2493 = vadd.xlane.f32.xlu0 %v2462
        %v2494 = vpop.xlane.xlu0 %2493
        %2495 = vadd.xlane.f32.xlu0 %v2464
        %v2496 = vpop.xlane.xlu0 %2495
        %2497 = vadd.xlane.f32.xlu0 %v2466
        %v2498 = vpop.xlane.xlu0 %2497
        %2499 = vadd.xlane.f32.xlu0 %v2468
        %v2500 = vpop.xlane.xlu0 %2499
        %2501 = vadd.xlane.f32.xlu0 %v2470
        %v2502 = vpop.xlane.xlu0 %2501
        %2503 = vadd.xlane.f32.xlu0 %v2472
        %v2504 = vpop.xlane.xlu0 %2503
        %2505 = vadd.xlane.f32.xlu0 %v2474
        %v2506 = vpop.xlane.xlu0 %2505
        %2507 = vadd.xlane.f32.xlu0 %v2476
        %v2508 = vpop.xlane.xlu0 %2507
        %2509 = vadd.xlane.f32.xlu0 %v2478
        %v2510 = vpop.xlane.xlu0 %2509
        %2511 = vadd.xlane.f32.xlu0 %v2480
        %v2512 = vpop.xlane.xlu0 %2511
        %2513 = vadd.xlane.f32.xlu0 %v2482
        %v2514 = vpop.xlane.xlu0 %2513
        %2515 = vadd.xlane.f32.xlu0 %v2484
        %v2516 = vpop.xlane.xlu0 %2515
        %2517 = vadd.xlane.f32.xlu0 %v2486
        %v2518 = vpop.xlane.xlu0 %2517
        %2519 = vadd.xlane.f32.xlu0 %v2488
        %v2520 = vpop.xlane.xlu0 %2519
        %v2521 = vrcp.pop %v2490
        %v2522 = vrcp.pop %v2492
        %v2523 = vrcp.pop %v2494
        %v2524 = vrcp.pop %v2496
        %v2525 = vrcp.pop %v2498
        %v2526 = vrcp.pop %v2500
        %v2527 = vrcp.pop %v2502
        %v2528 = vrcp.pop %v2504
        %v2529 = vrcp.pop %v2506
        %v2530 = vrcp.pop %v2508
        %v2531 = vrcp.pop %v2510
        %v2532 = vrcp.pop %v2512
        %v2533 = vrcp.pop %v2514
        %v2534 = vrcp.pop %v2516
        %v2535 = vrcp.pop %v2518
        %v2536 = vrcp.pop %v2520
        %v2537 = vmul.f32 %v2458, %v2521
        %v2538 = vmul.f32 %v2460, %v2522
        %v2539 = vmul.f32 %v2462, %v2523
        %v2540 = vmul.f32 %v2464, %v2524
        %v2541 = vmul.f32 %v2466, %v2525
        %v2542 = vmul.f32 %v2468, %v2526
        %v2543 = vmul.f32 %v2470, %v2527
        %v2544 = vmul.f32 %v2472, %v2528
        %v2545 = vmul.f32 %v2474, %v2529
        %v2546 = vmul.f32 %v2476, %v2530
        %v2547 = vmul.f32 %v2478, %v2531
        %v2548 = vmul.f32 %v2480, %v2532
        %v2549 = vmul.f32 %v2482, %v2533
        %v2550 = vmul.f32 %v2484, %v2534
        %v2551 = vmul.f32 %v2486, %v2535
        %v2552 = vmul.f32 %v2488, %v2536
        %v2553 = vpack.c.bf16 %v2538, %v2537
        %v2554 = vpack.c.bf16 %v2540, %v2539
        %v2555 = vpack.c.bf16 %v2542, %v2541
        %v2556 = vpack.c.bf16 %v2544, %v2543
        %v2557 = vpack.c.bf16 %v2546, %v2545
        %v2558 = vpack.c.bf16 %v2548, %v2547
        %v2559 = vpack.c.bf16 %v2550, %v2549
        %v2560 = vpack.c.bf16 %v2552, %v2551
        %v2577 = vunpack.c.l.b16 %v2224
        %v2578 = vunpack.c.l.b16 %v2225
        %v2579 = vunpack.c.l.b16 %v2226
        %v2580 = vunpack.c.l.b16 %v2227
        %v2581 = vunpack.c.l.b16 %v2228
        %v2582 = vunpack.c.l.b16 %v2229
        %v2583 = vunpack.c.l.b16 %v2230
        %v2584 = vunpack.c.l.b16 %v2231
        %v2585 = vunpack.c.l.b16 %v2232
        %v2586 = vunpack.c.l.b16 %v2233
        %v2587 = vunpack.c.l.b16 %v2234
        %v2588 = vunpack.c.l.b16 %v2235
        %v2589 = vunpack.c.l.b16 %v2236
        %v2590 = vunpack.c.l.b16 %v2237
        %v2591 = vunpack.c.l.b16 %v2238
        %v2592 = vunpack.c.l.b16 %v2239
        %v2593 = vpack.c.b16 %v2578, %v2577
        %v2594 = vpack.c.b16 %v2580, %v2579
        %v2595 = vpack.c.b16 %v2582, %v2581
        %v2596 = vpack.c.b16 %v2584, %v2583
        %v2597 = vpack.c.b16 %v2586, %v2585
        %v2598 = vpack.c.b16 %v2588, %v2587
        %v2599 = vpack.c.b16 %v2590, %v2589
        %v2600 = vpack.c.b16 %v2592, %v2591
        %2601 = vrot.lane.b32.xlu0 %v2593, 104
        %v2602 = vpop.permute.xlu0 %2601
        %2603 = vrot.lane.b32.xlu0 %v2594, 104
        %v2604 = vpop.permute.xlu0 %2603
        %2605 = vrot.lane.b32.xlu0 %v2595, 104
        %v2606 = vpop.permute.xlu0 %2605
        %2607 = vrot.lane.b32.xlu0 %v2596, 104
        %v2608 = vpop.permute.xlu0 %2607
        %2609 = vrot.lane.b32.xlu0 %v2597, 104
        %v2610 = vpop.permute.xlu0 %2609
        %2611 = vrot.lane.b32.xlu0 %v2598, 104
        %v2612 = vpop.permute.xlu0 %2611
        %2613 = vrot.lane.b32.xlu0 %v2599, 104
        %v2614 = vpop.permute.xlu0 %2613
        %2615 = vrot.lane.b32.xlu0 %v2600, 104
        %v2616 = vpop.permute.xlu0 %2615
        %2625 = vmatpush.bf16.msra.mxu0 %v2616
        %2626 = vmatpush.bf16.msra.mxu0 %v2614
        %2627 = vmatpush.bf16.msra.mxu0 %v2612
        %2628 = vmatpush.bf16.msra.mxu0 %v2610
        %2629 = vmatpush.bf16.msra.mxu0 %v2608
        %2630 = vmatpush.bf16.msra.mxu0 %v2606
        %2631 = vmatpush.bf16.msra.mxu0 %v2604
        %2632 = vmatpush.bf16.msra.mxu0 %v2602
        %2633 = vmatmul.bf16.gmra.mxu0 %v2553
        %v2634 = vpop.f32.mrf.mxu0
        %v2635 = vadd.f32 0.0, %v2634
        %v2636 = vpop.f32.mrf.mxu0
        %v2637 = vadd.f32 0.0, %v2636
        %2638 = vmatmul.bf16.gmra.mxu0 %v2554
        %v2639 = vpop.f32.mrf.mxu0
        %v2640 = vadd.f32 0.0, %v2639
        %v2641 = vpop.f32.mrf.mxu0
        %v2642 = vadd.f32 0.0, %v2641
        %2643 = vmatmul.bf16.gmra.mxu0 %v2555
        %v2644 = vpop.f32.mrf.mxu0
        %v2645 = vadd.f32 0.0, %v2644
        %v2646 = vpop.f32.mrf.mxu0
        %v2647 = vadd.f32 0.0, %v2646
        %2648 = vmatmul.bf16.gmra.mxu0 %v2556
        %v2649 = vpop.f32.mrf.mxu0
        %v2650 = vadd.f32 0.0, %v2649
        %v2651 = vpop.f32.mrf.mxu0
        %v2652 = vadd.f32 0.0, %v2651
        %2653 = vmatmul.bf16.gmra.mxu0 %v2557
        %v2654 = vpop.f32.mrf.mxu0
        %v2655 = vadd.f32 0.0, %v2654
        %v2656 = vpop.f32.mrf.mxu0
        %v2657 = vadd.f32 0.0, %v2656
        %2658 = vmatmul.bf16.gmra.mxu0 %v2558
        %v2659 = vpop.f32.mrf.mxu0
        %v2660 = vadd.f32 0.0, %v2659
        %v2661 = vpop.f32.mrf.mxu0
        %v2662 = vadd.f32 0.0, %v2661
        %2663 = vmatmul.bf16.gmra.mxu0 %v2559
        %v2664 = vpop.f32.mrf.mxu0
        %v2665 = vadd.f32 0.0, %v2664
        %v2666 = vpop.f32.mrf.mxu0
        %v2667 = vadd.f32 0.0, %v2666
        %2668 = vmatmul.bf16.gmra.mxu0 %v2560
        %v2669 = vpop.f32.mrf.mxu0
        %v2670 = vadd.f32 0.0, %v2669
        %v2671 = vpop.f32.mrf.mxu0
        %v2672 = vadd.f32 0.0, %v2671
        %2673 = vdwg.mxu0
        %v2674 = vpack.c.bf16 %v2635, %v2635
        %v2675 = vpack.c.bf16 %v2637, %v2637
        %v2676 = vpack.c.bf16 %v2640, %v2640
        %v2677 = vpack.c.bf16 %v2642, %v2642
        %v2678 = vpack.c.bf16 %v2645, %v2645
        %v2679 = vpack.c.bf16 %v2647, %v2647
        %v2680 = vpack.c.bf16 %v2650, %v2650
        %v2681 = vpack.c.bf16 %v2652, %v2652
        %v2682 = vpack.c.bf16 %v2655, %v2655
        %v2683 = vpack.c.bf16 %v2657, %v2657
        %v2684 = vpack.c.bf16 %v2660, %v2660
        %v2685 = vpack.c.bf16 %v2662, %v2662
        %v2686 = vpack.c.bf16 %v2665, %v2665
        %v2687 = vpack.c.bf16 %v2667, %v2667
        %v2688 = vpack.c.bf16 %v2670, %v2670
        %v2689 = vpack.c.bf16 %v2672, %v2672
        %2706 = vrot.lane.b32.xlu0 %v2674, 24
        %v2707 = vpop.permute.xlu0 %2706
        %2708 = vrot.lane.b32.xlu0 %v2675, 24
        %v2709 = vpop.permute.xlu0 %2708
        %2710 = vrot.lane.b32.xlu0 %v2676, 24
        %v2711 = vpop.permute.xlu0 %2710
        %2712 = vrot.lane.b32.xlu0 %v2677, 24
        %v2713 = vpop.permute.xlu0 %2712
        %2714 = vrot.lane.b32.xlu0 %v2678, 24
        %v2715 = vpop.permute.xlu0 %2714
        %2716 = vrot.lane.b32.xlu0 %v2679, 24
        %v2717 = vpop.permute.xlu0 %2716
        %2718 = vrot.lane.b32.xlu0 %v2680, 24
        %v2719 = vpop.permute.xlu0 %2718
        %2720 = vrot.lane.b32.xlu0 %v2681, 24
        %v2721 = vpop.permute.xlu0 %2720
        %2722 = vrot.lane.b32.xlu0 %v2682, 24
        %v2723 = vpop.permute.xlu0 %2722
        %2724 = vrot.lane.b32.xlu0 %v2683, 24
        %v2725 = vpop.permute.xlu0 %2724
        %2726 = vrot.lane.b32.xlu0 %v2684, 24
        %v2727 = vpop.permute.xlu0 %2726
        %2728 = vrot.lane.b32.xlu0 %v2685, 24
        %v2729 = vpop.permute.xlu0 %2728
        %2730 = vrot.lane.b32.xlu0 %v2686, 24
        %v2731 = vpop.permute.xlu0 %2730
        %2732 = vrot.lane.b32.xlu0 %v2687, 24
        %v2733 = vpop.permute.xlu0 %2732
        %2734 = vrot.lane.b32.xlu0 %v2688, 24
        %v2735 = vpop.permute.xlu0 %2734
        %2736 = vrot.lane.b32.xlu0 %v2689, 24
        %v2737 = vpop.permute.xlu0 %2736
        %vm2754 = vcmask 257216
        %2755 = vst.msk [vmem:[#allocation3] sm:$0xf] %vm2754, %v2707
        %2756 = vst.msk [vmem:[#allocation3 + $0x4] sm:$0xf] %vm2754, %v2709
        %2757 = vst.msk [vmem:[#allocation3 + $0x8] sm:$0xf] %vm2754, %v2711
        %2758 = vst.msk [vmem:[#allocation3 + $0xc] sm:$0xf] %vm2754, %v2713
        %2759 = vst.msk [vmem:[#allocation3 + $0x10] sm:$0xf] %vm2754, %v2715
        %2760 = vst.msk [vmem:[#allocation3 + $0x14] sm:$0xf] %vm2754, %v2717
        %2761 = vst.msk [vmem:[#allocation3 + $0x18] sm:$0xf] %vm2754, %v2719
        %2762 = vst.msk [vmem:[#allocation3 + $0x1c] sm:$0xf] %vm2754, %v2721
        %2763 = vst.msk [vmem:[#allocation3 + $0x20] sm:$0xf] %vm2754, %v2723
        %2764 = vst.msk [vmem:[#allocation3 + $0x24] sm:$0xf] %vm2754, %v2725
        %2765 = vst.msk [vmem:[#allocation3 + $0x28] sm:$0xf] %vm2754, %v2727
        %2766 = vst.msk [vmem:[#allocation3 + $0x2c] sm:$0xf] %vm2754, %v2729
        %2767 = vst.msk [vmem:[#allocation3 + $0x30] sm:$0xf] %vm2754, %v2731
        %2768 = vst.msk [vmem:[#allocation3 + $0x34] sm:$0xf] %vm2754, %v2733
        %2769 = vst.msk [vmem:[#allocation3 + $0x38] sm:$0xf] %vm2754, %v2735
        %2770 = vst.msk [vmem:[#allocation3 + $0x3c] sm:$0xf] %vm2754, %v2737
        %v2771 = vld [vmem:[#allocation2] sm:$0xf]
        %v2772 = vld [vmem:[#allocation2 + $0x8] sm:$0xf]
        %v2773 = vld [vmem:[#allocation2 + $0x10] sm:$0xf]
        %v2774 = vld [vmem:[#allocation2 + $0x18] sm:$0xf]
        %v2775 = vld [vmem:[#allocation2 + $0x20] sm:$0xf]
        %v2776 = vld [vmem:[#allocation2 + $0x28] sm:$0xf]
        %v2777 = vld [vmem:[#allocation2 + $0x30] sm:$0xf]
        %v2778 = vld [vmem:[#allocation2 + $0x38] sm:$0xf]
        %v2779 = vld [vmem:[#allocation2 + $0x40] sm:$0xf]
        %v2780 = vld [vmem:[#allocation2 + $0x48] sm:$0xf]
        %v2781 = vld [vmem:[#allocation2 + $0x50] sm:$0xf]
        %v2782 = vld [vmem:[#allocation2 + $0x58] sm:$0xf]
        %v2783 = vld [vmem:[#allocation2 + $0x60] sm:$0xf]
        %v2784 = vld [vmem:[#allocation2 + $0x68] sm:$0xf]
        %v2785 = vld [vmem:[#allocation2 + $0x70] sm:$0xf]
        %v2786 = vld [vmem:[#allocation2 + $0x78] sm:$0xf]
        %v2787 = vld [vmem:[#allocation2 + $0x4] sm:$0xf]
        %v2788 = vld [vmem:[#allocation2 + $0xc] sm:$0xf]
        %v2789 = vld [vmem:[#allocation2 + $0x14] sm:$0xf]
        %v2790 = vld [vmem:[#allocation2 + $0x1c] sm:$0xf]
        %v2791 = vld [vmem:[#allocation2 + $0x24] sm:$0xf]
        %v2792 = vld [vmem:[#allocation2 + $0x2c] sm:$0xf]
        %v2793 = vld [vmem:[#allocation2 + $0x34] sm:$0xf]
        %v2794 = vld [vmem:[#allocation2 + $0x3c] sm:$0xf]
        %v2795 = vld [vmem:[#allocation2 + $0x44] sm:$0xf]
        %v2796 = vld [vmem:[#allocation2 + $0x4c] sm:$0xf]
        %v2797 = vld [vmem:[#allocation2 + $0x54] sm:$0xf]
        %v2798 = vld [vmem:[#allocation2 + $0x5c] sm:$0xf]
        %v2799 = vld [vmem:[#allocation2 + $0x64] sm:$0xf]
        %v2800 = vld [vmem:[#allocation2 + $0x6c] sm:$0xf]
        %v2801 = vld [vmem:[#allocation2 + $0x74] sm:$0xf]
        %v2802 = vld [vmem:[#allocation2 + $0x7c] sm:$0xf]
        %v2819 = vunpack.c.l.b16 %v2771
        %v2820 = vunpack.c.l.b16 %v2772
        %v2821 = vunpack.c.l.b16 %v2773
        %v2822 = vunpack.c.l.b16 %v2774
        %v2823 = vunpack.c.l.b16 %v2775
        %v2824 = vunpack.c.l.b16 %v2776
        %v2825 = vunpack.c.l.b16 %v2777
        %v2826 = vunpack.c.l.b16 %v2778
        %v2827 = vunpack.c.l.b16 %v2779
        %v2828 = vunpack.c.l.b16 %v2780
        %v2829 = vunpack.c.l.b16 %v2781
        %v2830 = vunpack.c.l.b16 %v2782
        %v2831 = vunpack.c.l.b16 %v2783
        %v2832 = vunpack.c.l.b16 %v2784
        %v2833 = vunpack.c.l.b16 %v2785
        %v2834 = vunpack.c.l.b16 %v2786
        %v2835 = vpack.c.b16 %v2820, %v2819
        %v2836 = vpack.c.b16 %v2822, %v2821
        %v2837 = vpack.c.b16 %v2824, %v2823
        %v2838 = vpack.c.b16 %v2826, %v2825
        %v2839 = vpack.c.b16 %v2828, %v2827
        %v2840 = vpack.c.b16 %v2830, %v2829
        %v2841 = vpack.c.b16 %v2832, %v2831
        %v2842 = vpack.c.b16 %v2834, %v2833
        %2843 = vrot.lane.b32.xlu0 %v2835, 96
        %v2844 = vpop.permute.xlu0 %2843
        %2845 = vrot.lane.b32.xlu0 %v2836, 96
        %v2846 = vpop.permute.xlu0 %2845
        %2847 = vrot.lane.b32.xlu0 %v2837, 96
        %v2848 = vpop.permute.xlu0 %2847
        %2849 = vrot.lane.b32.xlu0 %v2838, 96
        %v2850 = vpop.permute.xlu0 %2849
        %2851 = vrot.lane.b32.xlu0 %v2839, 96
        %v2852 = vpop.permute.xlu0 %2851
        %2853 = vrot.lane.b32.xlu0 %v2840, 96
        %v2854 = vpop.permute.xlu0 %2853
        %2855 = vrot.lane.b32.xlu0 %v2841, 96
        %v2856 = vpop.permute.xlu0 %2855
        %2857 = vrot.lane.b32.xlu0 %v2842, 96
        %v2858 = vpop.permute.xlu0 %2857
        %2859 = vrot.lane.b32.xlu0 %v2835, 32
        %v2860 = vpop.permute.xlu0 %2859
        %2861 = vrot.lane.b32.xlu0 %v2836, 32
        %v2862 = vpop.permute.xlu0 %2861
        %2863 = vrot.lane.b32.xlu0 %v2837, 32
        %v2864 = vpop.permute.xlu0 %2863
        %2865 = vrot.lane.b32.xlu0 %v2838, 32
        %v2866 = vpop.permute.xlu0 %2865
        %2867 = vrot.lane.b32.xlu0 %v2839, 32
        %v2868 = vpop.permute.xlu0 %2867
        %2869 = vrot.lane.b32.xlu0 %v2840, 32
        %v2870 = vpop.permute.xlu0 %2869
        %2871 = vrot.lane.b32.xlu0 %v2841, 32
        %v2872 = vpop.permute.xlu0 %2871
        %2873 = vrot.lane.b32.xlu0 %v2842, 32
        %v2874 = vpop.permute.xlu0 %2873
        %v2876 = vsel %vm702, %v2844, 0
        %v2879 = vsel %vm702, %v2846, 0
        %v2882 = vsel %vm702, %v2848, 0
        %v2885 = vsel %vm702, %v2850, 0
        %v2888 = vsel %vm702, %v2852, 0
        %v2891 = vsel %vm702, %v2854, 0
        %v2894 = vsel %vm702, %v2856, 0
        %v2897 = vsel %vm702, %v2858, 0
        %v2900 = vsel %vm702, %v2860, 0
        %v2903 = vsel %vm702, %v2862, 0
        %v2906 = vsel %vm702, %v2864, 0
        %v2909 = vsel %vm702, %v2866, 0
        %v2912 = vsel %vm702, %v2868, 0
        %v2915 = vsel %vm702, %v2870, 0
        %v2918 = vsel %vm702, %v2872, 0
        %v2921 = vsel %vm702, %v2874, 0
        %2923 = vmatpush.bf16.xpose.msra.mxu0 %v2921
        %2924 = vmatpush.bf16.xpose.msra.mxu0 %v2918
        %2925 = vmatpush.bf16.xpose.msra.mxu0 %v2915
        %2926 = vmatpush.bf16.xpose.msra.mxu0 %v2912
        %2927 = vmatpush.bf16.xpose.msra.mxu0 %v2909
        %2928 = vmatpush.bf16.xpose.msra.mxu0 %v2906
        %2929 = vmatpush.bf16.xpose.msra.mxu0 %v2903
        %2930 = vmatpush.bf16.xpose.msra.mxu0 %v2900
        %2931 = vmatmul.bf16.gmra.mxu0 %v2876
        %v2932 = vpop.f32.mrf.mxu0
        %v2933 = vadd.f32 %v598, %v2932
        %v2934 = vpop.f32.mrf.mxu0
        %v2935 = vadd.f32 %v599, %v2934
        %2936 = vmatmul.bf16.gmra.mxu0 %v2879
        %v2937 = vpop.f32.mrf.mxu0
        %v2938 = vadd.f32 %v600, %v2937
        %v2939 = vpop.f32.mrf.mxu0
        %v2940 = vadd.f32 %v601, %v2939
        %2941 = vmatmul.bf16.gmra.mxu0 %v2882
        %v2942 = vpop.f32.mrf.mxu0
        %v2943 = vadd.f32 %v602, %v2942
        %v2944 = vpop.f32.mrf.mxu0
        %v2945 = vadd.f32 %v603, %v2944
        %2946 = vmatmul.bf16.gmra.mxu0 %v2885
        %v2947 = vpop.f32.mrf.mxu0
        %v2948 = vadd.f32 %v604, %v2947
        %v2949 = vpop.f32.mrf.mxu0
        %v2950 = vadd.f32 %v605, %v2949
        %2951 = vmatmul.bf16.gmra.mxu0 %v2888
        %v2952 = vpop.f32.mrf.mxu0
        %v2953 = vadd.f32 %v606, %v2952
        %v2954 = vpop.f32.mrf.mxu0
        %v2955 = vadd.f32 %v607, %v2954
        %2956 = vmatmul.bf16.gmra.mxu0 %v2891
        %v2957 = vpop.f32.mrf.mxu0
        %v2958 = vadd.f32 %v608, %v2957
        %v2959 = vpop.f32.mrf.mxu0
        %v2960 = vadd.f32 %v609, %v2959
        %2961 = vmatmul.bf16.gmra.mxu0 %v2894
        %v2962 = vpop.f32.mrf.mxu0
        %v2963 = vadd.f32 %v610, %v2962
        %v2964 = vpop.f32.mrf.mxu0
        %v2965 = vadd.f32 %v611, %v2964
        %2966 = vmatmul.bf16.gmra.mxu0 %v2897
        %v2967 = vpop.f32.mrf.mxu0
        %v2968 = vadd.f32 %v612, %v2967
        %v2969 = vpop.f32.mrf.mxu0
        %v2970 = vadd.f32 %v613, %v2969
        %2971 = vdwg.mxu0
        %2972 = vmax.xlane.f32.xlu0 %v2933
        %v2973 = vpop.xlane.xlu0 %2972
        %2974 = vmax.xlane.f32.xlu0 %v2935
        %v2975 = vpop.xlane.xlu0 %2974
        %2976 = vmax.xlane.f32.xlu0 %v2938
        %v2977 = vpop.xlane.xlu0 %2976
        %2978 = vmax.xlane.f32.xlu0 %v2940
        %v2979 = vpop.xlane.xlu0 %2978
        %2980 = vmax.xlane.f32.xlu0 %v2943
        %v2981 = vpop.xlane.xlu0 %2980
        %2982 = vmax.xlane.f32.xlu0 %v2945
        %v2983 = vpop.xlane.xlu0 %2982
        %2984 = vmax.xlane.f32.xlu0 %v2948
        %v2985 = vpop.xlane.xlu0 %2984
        %2986 = vmax.xlane.f32.xlu0 %v2950
        %v2987 = vpop.xlane.xlu0 %2986
        %2988 = vmax.xlane.f32.xlu0 %v2953
        %v2989 = vpop.xlane.xlu0 %2988
        %2990 = vmax.xlane.f32.xlu0 %v2955
        %v2991 = vpop.xlane.xlu0 %2990
        %2992 = vmax.xlane.f32.xlu0 %v2958
        %v2993 = vpop.xlane.xlu0 %2992
        %2994 = vmax.xlane.f32.xlu0 %v2960
        %v2995 = vpop.xlane.xlu0 %2994
        %2996 = vmax.xlane.f32.xlu0 %v2963
        %v2997 = vpop.xlane.xlu0 %2996
        %2998 = vmax.xlane.f32.xlu0 %v2965
        %v2999 = vpop.xlane.xlu0 %2998
        %3000 = vmax.xlane.f32.xlu0 %v2968
        %v3001 = vpop.xlane.xlu0 %3000
        %3002 = vmax.xlane.f32.xlu0 %v2970
        %v3003 = vpop.xlane.xlu0 %3002
        %v3004 = vsub.f32 %v2933, %v2973
        %v3005 = vsub.f32 %v2935, %v2975
        %v3006 = vsub.f32 %v2938, %v2977
        %v3007 = vsub.f32 %v2940, %v2979
        %v3008 = vsub.f32 %v2943, %v2981
        %v3009 = vsub.f32 %v2945, %v2983
        %v3010 = vsub.f32 %v2948, %v2985
        %v3011 = vsub.f32 %v2950, %v2987
        %v3012 = vsub.f32 %v2953, %v2989
        %v3013 = vsub.f32 %v2955, %v2991
        %v3014 = vsub.f32 %v2958, %v2993
        %v3015 = vsub.f32 %v2960, %v2995
        %v3016 = vsub.f32 %v2963, %v2997
        %v3017 = vsub.f32 %v2965, %v2999
        %v3018 = vsub.f32 %v2968, %v3001
        %v3019 = vsub.f32 %v2970, %v3003
        %v3020 = vmul.f32 %v3004, 1.442695
        %v3021 = vpow.pop %v3020
        %v3022 = vmul.f32 %v3005, 1.442695
        %v3023 = vpow.pop %v3022
        %v3024 = vmul.f32 %v3006, 1.442695
        %v3025 = vpow.pop %v3024
        %v3026 = vmul.f32 %v3007, 1.442695
        %v3027 = vpow.pop %v3026
        %v3028 = vmul.f32 %v3008, 1.442695
        %v3029 = vpow.pop %v3028
        %v3030 = vmul.f32 %v3009, 1.442695
        %v3031 = vpow.pop %v3030
        %v3032 = vmul.f32 %v3010, 1.442695
        %v3033 = vpow.pop %v3032
        %v3034 = vmul.f32 %v3011, 1.442695
        %v3035 = vpow.pop %v3034
        %v3036 = vmul.f32 %v3012, 1.442695
        %v3037 = vpow.pop %v3036
        %v3038 = vmul.f32 %v3013, 1.442695
        %v3039 = vpow.pop %v3038
        %v3040 = vmul.f32 %v3014, 1.442695
        %v3041 = vpow.pop %v3040
        %v3042 = vmul.f32 %v3015, 1.442695
        %v3043 = vpow.pop %v3042
        %v3044 = vmul.f32 %v3016, 1.442695
        %v3045 = vpow.pop %v3044
        %v3046 = vmul.f32 %v3017, 1.442695
        %v3047 = vpow.pop %v3046
        %v3048 = vmul.f32 %v3018, 1.442695
        %v3049 = vpow.pop %v3048
        %v3050 = vmul.f32 %v3019, 1.442695
        %v3051 = vpow.pop %v3050
        %3052 = vadd.xlane.f32.xlu0 %v3021
        %v3053 = vpop.xlane.xlu0 %3052
        %3054 = vadd.xlane.f32.xlu0 %v3023
        %v3055 = vpop.xlane.xlu0 %3054
        %3056 = vadd.xlane.f32.xlu0 %v3025
        %v3057 = vpop.xlane.xlu0 %3056
        %3058 = vadd.xlane.f32.xlu0 %v3027
        %v3059 = vpop.xlane.xlu0 %3058
        %3060 = vadd.xlane.f32.xlu0 %v3029
        %v3061 = vpop.xlane.xlu0 %3060
        %3062 = vadd.xlane.f32.xlu0 %v3031
        %v3063 = vpop.xlane.xlu0 %3062
        %3064 = vadd.xlane.f32.xlu0 %v3033
        %v3065 = vpop.xlane.xlu0 %3064
        %3066 = vadd.xlane.f32.xlu0 %v3035
        %v3067 = vpop.xlane.xlu0 %3066
        %3068 = vadd.xlane.f32.xlu0 %v3037
        %v3069 = vpop.xlane.xlu0 %3068
        %3070 = vadd.xlane.f32.xlu0 %v3039
        %v3071 = vpop.xlane.xlu0 %3070
        %3072 = vadd.xlane.f32.xlu0 %v3041
        %v3073 = vpop.xlane.xlu0 %3072
        %3074 = vadd.xlane.f32.xlu0 %v3043
        %v3075 = vpop.xlane.xlu0 %3074
        %3076 = vadd.xlane.f32.xlu0 %v3045
        %v3077 = vpop.xlane.xlu0 %3076
        %3078 = vadd.xlane.f32.xlu0 %v3047
        %v3079 = vpop.xlane.xlu0 %3078
        %3080 = vadd.xlane.f32.xlu0 %v3049
        %v3081 = vpop.xlane.xlu0 %3080
        %3082 = vadd.xlane.f32.xlu0 %v3051
        %v3083 = vpop.xlane.xlu0 %3082
        %v3084 = vrcp.pop %v3053
        %v3085 = vrcp.pop %v3055
        %v3086 = vrcp.pop %v3057
        %v3087 = vrcp.pop %v3059
        %v3088 = vrcp.pop %v3061
        %v3089 = vrcp.pop %v3063
        %v3090 = vrcp.pop %v3065
        %v3091 = vrcp.pop %v3067
        %v3092 = vrcp.pop %v3069
        %v3093 = vrcp.pop %v3071
        %v3094 = vrcp.pop %v3073
        %v3095 = vrcp.pop %v3075
        %v3096 = vrcp.pop %v3077
        %v3097 = vrcp.pop %v3079
        %v3098 = vrcp.pop %v3081
        %v3099 = vrcp.pop %v3083
        %v3100 = vmul.f32 %v3021, %v3084
        %v3101 = vmul.f32 %v3023, %v3085
        %v3102 = vmul.f32 %v3025, %v3086
        %v3103 = vmul.f32 %v3027, %v3087
        %v3104 = vmul.f32 %v3029, %v3088
        %v3105 = vmul.f32 %v3031, %v3089
        %v3106 = vmul.f32 %v3033, %v3090
        %v3107 = vmul.f32 %v3035, %v3091
        %v3108 = vmul.f32 %v3037, %v3092
        %v3109 = vmul.f32 %v3039, %v3093
        %v3110 = vmul.f32 %v3041, %v3094
        %v3111 = vmul.f32 %v3043, %v3095
        %v3112 = vmul.f32 %v3045, %v3096
        %v3113 = vmul.f32 %v3047, %v3097
        %v3114 = vmul.f32 %v3049, %v3098
        %v3115 = vmul.f32 %v3051, %v3099
        %v3116 = vpack.c.bf16 %v3101, %v3100
        %v3117 = vpack.c.bf16 %v3103, %v3102
        %v3118 = vpack.c.bf16 %v3105, %v3104
        %v3119 = vpack.c.bf16 %v3107, %v3106
        %v3120 = vpack.c.bf16 %v3109, %v3108
        %v3121 = vpack.c.bf16 %v3111, %v3110
        %v3122 = vpack.c.bf16 %v3113, %v3112
        %v3123 = vpack.c.bf16 %v3115, %v3114
        %v3140 = vunpack.c.l.b16 %v2787
        %v3141 = vunpack.c.l.b16 %v2788
        %v3142 = vunpack.c.l.b16 %v2789
        %v3143 = vunpack.c.l.b16 %v2790
        %v3144 = vunpack.c.l.b16 %v2791
        %v3145 = vunpack.c.l.b16 %v2792
        %v3146 = vunpack.c.l.b16 %v2793
        %v3147 = vunpack.c.l.b16 %v2794
        %v3148 = vunpack.c.l.b16 %v2795
        %v3149 = vunpack.c.l.b16 %v2796
        %v3150 = vunpack.c.l.b16 %v2797
        %v3151 = vunpack.c.l.b16 %v2798
        %v3152 = vunpack.c.l.b16 %v2799
        %v3153 = vunpack.c.l.b16 %v2800
        %v3154 = vunpack.c.l.b16 %v2801
        %v3155 = vunpack.c.l.b16 %v2802
        %v3156 = vpack.c.b16 %v3141, %v3140
        %v3157 = vpack.c.b16 %v3143, %v3142
        %v3158 = vpack.c.b16 %v3145, %v3144
        %v3159 = vpack.c.b16 %v3147, %v3146
        %v3160 = vpack.c.b16 %v3149, %v3148
        %v3161 = vpack.c.b16 %v3151, %v3150
        %v3162 = vpack.c.b16 %v3153, %v3152
        %v3163 = vpack.c.b16 %v3155, %v3154
        %3164 = vrot.lane.b32.xlu0 %v3156, 96
        %v3165 = vpop.permute.xlu0 %3164
        %3166 = vrot.lane.b32.xlu0 %v3157, 96
        %v3167 = vpop.permute.xlu0 %3166
        %3168 = vrot.lane.b32.xlu0 %v3158, 96
        %v3169 = vpop.permute.xlu0 %3168
        %3170 = vrot.lane.b32.xlu0 %v3159, 96
        %v3171 = vpop.permute.xlu0 %3170
        %3172 = vrot.lane.b32.xlu0 %v3160, 96
        %v3173 = vpop.permute.xlu0 %3172
        %3174 = vrot.lane.b32.xlu0 %v3161, 96
        %v3175 = vpop.permute.xlu0 %3174
        %3176 = vrot.lane.b32.xlu0 %v3162, 96
        %v3177 = vpop.permute.xlu0 %3176
        %3178 = vrot.lane.b32.xlu0 %v3163, 96
        %v3179 = vpop.permute.xlu0 %3178
        %3188 = vmatpush.bf16.msra.mxu0 %v3179
        %3189 = vmatpush.bf16.msra.mxu0 %v3177
        %3190 = vmatpush.bf16.msra.mxu0 %v3175
        %3191 = vmatpush.bf16.msra.mxu0 %v3173
        %3192 = vmatpush.bf16.msra.mxu0 %v3171
        %3193 = vmatpush.bf16.msra.mxu0 %v3169
        %3194 = vmatpush.bf16.msra.mxu0 %v3167
        %3195 = vmatpush.bf16.msra.mxu0 %v3165
        %3196 = vmatmul.bf16.gmra.mxu0 %v3116
        %v3197 = vpop.f32.mrf.mxu0
        %v3198 = vadd.f32 0.0, %v3197
        %v3199 = vpop.f32.mrf.mxu0
        %v3200 = vadd.f32 0.0, %v3199
        %3201 = vmatmul.bf16.gmra.mxu0 %v3117
        %v3202 = vpop.f32.mrf.mxu0
        %v3203 = vadd.f32 0.0, %v3202
        %v3204 = vpop.f32.mrf.mxu0
        %v3205 = vadd.f32 0.0, %v3204
        %3206 = vmatmul.bf16.gmra.mxu0 %v3118
        %v3207 = vpop.f32.mrf.mxu0
        %v3208 = vadd.f32 0.0, %v3207
        %v3209 = vpop.f32.mrf.mxu0
        %v3210 = vadd.f32 0.0, %v3209
        %3211 = vmatmul.bf16.gmra.mxu0 %v3119
        %v3212 = vpop.f32.mrf.mxu0
        %v3213 = vadd.f32 0.0, %v3212
        %v3214 = vpop.f32.mrf.mxu0
        %v3215 = vadd.f32 0.0, %v3214
        %3216 = vmatmul.bf16.gmra.mxu0 %v3120
        %v3217 = vpop.f32.mrf.mxu0
        %v3218 = vadd.f32 0.0, %v3217
        %v3219 = vpop.f32.mrf.mxu0
        %v3220 = vadd.f32 0.0, %v3219
        %3221 = vmatmul.bf16.gmra.mxu0 %v3121
        %v3222 = vpop.f32.mrf.mxu0
        %v3223 = vadd.f32 0.0, %v3222
        %v3224 = vpop.f32.mrf.mxu0
        %v3225 = vadd.f32 0.0, %v3224
        %3226 = vmatmul.bf16.gmra.mxu0 %v3122
        %v3227 = vpop.f32.mrf.mxu0
        %v3228 = vadd.f32 0.0, %v3227
        %v3229 = vpop.f32.mrf.mxu0
        %v3230 = vadd.f32 0.0, %v3229
        %3231 = vmatmul.bf16.gmra.mxu0 %v3123
        %v3232 = vpop.f32.mrf.mxu0
        %v3233 = vadd.f32 0.0, %v3232
        %v3234 = vpop.f32.mrf.mxu0
        %v3235 = vadd.f32 0.0, %v3234
        %3236 = vdwg.mxu0
        %v3237 = vpack.c.bf16 %v3198, %v3198
        %v3238 = vpack.c.bf16 %v3200, %v3200
        %v3239 = vpack.c.bf16 %v3203, %v3203
        %v3240 = vpack.c.bf16 %v3205, %v3205
        %v3241 = vpack.c.bf16 %v3208, %v3208
        %v3242 = vpack.c.bf16 %v3210, %v3210
        %v3243 = vpack.c.bf16 %v3213, %v3213
        %v3244 = vpack.c.bf16 %v3215, %v3215
        %v3245 = vpack.c.bf16 %v3218, %v3218
        %v3246 = vpack.c.bf16 %v3220, %v3220
        %v3247 = vpack.c.bf16 %v3223, %v3223
        %v3248 = vpack.c.bf16 %v3225, %v3225
        %v3249 = vpack.c.bf16 %v3228, %v3228
        %v3250 = vpack.c.bf16 %v3230, %v3230
        %v3251 = vpack.c.bf16 %v3233, %v3233
        %v3252 = vpack.c.bf16 %v3235, %v3235
        %3269 = vrot.lane.b32.xlu0 %v3237, 32
        %v3270 = vpop.permute.xlu0 %3269
        %3271 = vrot.lane.b32.xlu0 %v3238, 32
        %v3272 = vpop.permute.xlu0 %3271
        %3273 = vrot.lane.b32.xlu0 %v3239, 32
        %v3274 = vpop.permute.xlu0 %3273
        %3275 = vrot.lane.b32.xlu0 %v3240, 32
        %v3276 = vpop.permute.xlu0 %3275
        %3277 = vrot.lane.b32.xlu0 %v3241, 32
        %v3278 = vpop.permute.xlu0 %3277
        %3279 = vrot.lane.b32.xlu0 %v3242, 32
        %v3280 = vpop.permute.xlu0 %3279
        %3281 = vrot.lane.b32.xlu0 %v3243, 32
        %v3282 = vpop.permute.xlu0 %3281
        %3283 = vrot.lane.b32.xlu0 %v3244, 32
        %v3284 = vpop.permute.xlu0 %3283
        %3285 = vrot.lane.b32.xlu0 %v3245, 32
        %v3286 = vpop.permute.xlu0 %3285
        %3287 = vrot.lane.b32.xlu0 %v3246, 32
        %v3288 = vpop.permute.xlu0 %3287
        %3289 = vrot.lane.b32.xlu0 %v3247, 32
        %v3290 = vpop.permute.xlu0 %3289
        %3291 = vrot.lane.b32.xlu0 %v3248, 32
        %v3292 = vpop.permute.xlu0 %3291
        %3293 = vrot.lane.b32.xlu0 %v3249, 32
        %v3294 = vpop.permute.xlu0 %3293
        %3295 = vrot.lane.b32.xlu0 %v3250, 32
        %v3296 = vpop.permute.xlu0 %3295
        %3297 = vrot.lane.b32.xlu0 %v3251, 32
        %v3298 = vpop.permute.xlu0 %3297
        %3299 = vrot.lane.b32.xlu0 %v3252, 32
        %v3300 = vpop.permute.xlu0 %3299
        %vm3317 = vcmask 322816
        %3318 = vst.msk [vmem:[#allocation3] sm:$0xf] %vm3317, %v3270
        %3319 = vst.msk [vmem:[#allocation3 + $0x4] sm:$0xf] %vm3317, %v3272
        %3320 = vst.msk [vmem:[#allocation3 + $0x8] sm:$0xf] %vm3317, %v3274
        %3321 = vst.msk [vmem:[#allocation3 + $0xc] sm:$0xf] %vm3317, %v3276
        %3322 = vst.msk [vmem:[#allocation3 + $0x10] sm:$0xf] %vm3317, %v3278
        %3323 = vst.msk [vmem:[#allocation3 + $0x14] sm:$0xf] %vm3317, %v3280
        %3324 = vst.msk [vmem:[#allocation3 + $0x18] sm:$0xf] %vm3317, %v3282
        %3325 = vst.msk [vmem:[#allocation3 + $0x1c] sm:$0xf] %vm3317, %v3284
        %3326 = vst.msk [vmem:[#allocation3 + $0x20] sm:$0xf] %vm3317, %v3286
        %3327 = vst.msk [vmem:[#allocation3 + $0x24] sm:$0xf] %vm3317, %v3288
        %3328 = vst.msk [vmem:[#allocation3 + $0x28] sm:$0xf] %vm3317, %v3290
        %3329 = vst.msk [vmem:[#allocation3 + $0x2c] sm:$0xf] %vm3317, %v3292
        %3330 = vst.msk [vmem:[#allocation3 + $0x30] sm:$0xf] %vm3317, %v3294
        %3331 = vst.msk [vmem:[#allocation3 + $0x34] sm:$0xf] %vm3317, %v3296
        %3332 = vst.msk [vmem:[#allocation3 + $0x38] sm:$0xf] %vm3317, %v3298
        %3333 = vst.msk [vmem:[#allocation3 + $0x3c] sm:$0xf] %vm3317, %v3300
        %v3334 = vld [vmem:[#allocation2] sm:$0xf]
        %v3335 = vld [vmem:[#allocation2 + $0x8] sm:$0xf]
        %v3336 = vld [vmem:[#allocation2 + $0x10] sm:$0xf]
        %v3337 = vld [vmem:[#allocation2 + $0x18] sm:$0xf]
        %v3338 = vld [vmem:[#allocation2 + $0x20] sm:$0xf]
        %v3339 = vld [vmem:[#allocation2 + $0x28] sm:$0xf]
        %v3340 = vld [vmem:[#allocation2 + $0x30] sm:$0xf]
        %v3341 = vld [vmem:[#allocation2 + $0x38] sm:$0xf]
        %v3342 = vld [vmem:[#allocation2 + $0x40] sm:$0xf]
        %v3343 = vld [vmem:[#allocation2 + $0x48] sm:$0xf]
        %v3344 = vld [vmem:[#allocation2 + $0x50] sm:$0xf]
        %v3345 = vld [vmem:[#allocation2 + $0x58] sm:$0xf]
        %v3346 = vld [vmem:[#allocation2 + $0x60] sm:$0xf]
        %v3347 = vld [vmem:[#allocation2 + $0x68] sm:$0xf]
        %v3348 = vld [vmem:[#allocation2 + $0x70] sm:$0xf]
        %v3349 = vld [vmem:[#allocation2 + $0x78] sm:$0xf]
        %v3350 = vld [vmem:[#allocation2 + $0x4] sm:$0xf]
        %v3351 = vld [vmem:[#allocation2 + $0xc] sm:$0xf]
        %v3352 = vld [vmem:[#allocation2 + $0x14] sm:$0xf]
        %v3353 = vld [vmem:[#allocation2 + $0x1c] sm:$0xf]
        %v3354 = vld [vmem:[#allocation2 + $0x24] sm:$0xf]
        %v3355 = vld [vmem:[#allocation2 + $0x2c] sm:$0xf]
        %v3356 = vld [vmem:[#allocation2 + $0x34] sm:$0xf]
        %v3357 = vld [vmem:[#allocation2 + $0x3c] sm:$0xf]
        %v3358 = vld [vmem:[#allocation2 + $0x44] sm:$0xf]
        %v3359 = vld [vmem:[#allocation2 + $0x4c] sm:$0xf]
        %v3360 = vld [vmem:[#allocation2 + $0x54] sm:$0xf]
        %v3361 = vld [vmem:[#allocation2 + $0x5c] sm:$0xf]
        %v3362 = vld [vmem:[#allocation2 + $0x64] sm:$0xf]
        %v3363 = vld [vmem:[#allocation2 + $0x6c] sm:$0xf]
        %v3364 = vld [vmem:[#allocation2 + $0x74] sm:$0xf]
        %v3365 = vld [vmem:[#allocation2 + $0x7c] sm:$0xf]
        %v3382 = vunpack.c.l.b16 %v3334
        %v3383 = vunpack.c.l.b16 %v3335
        %v3384 = vunpack.c.l.b16 %v3336
        %v3385 = vunpack.c.l.b16 %v3337
        %v3386 = vunpack.c.l.b16 %v3338
        %v3387 = vunpack.c.l.b16 %v3339
        %v3388 = vunpack.c.l.b16 %v3340
        %v3389 = vunpack.c.l.b16 %v3341
        %v3390 = vunpack.c.l.b16 %v3342
        %v3391 = vunpack.c.l.b16 %v3343
        %v3392 = vunpack.c.l.b16 %v3344
        %v3393 = vunpack.c.l.b16 %v3345
        %v3394 = vunpack.c.l.b16 %v3346
        %v3395 = vunpack.c.l.b16 %v3347
        %v3396 = vunpack.c.l.b16 %v3348
        %v3397 = vunpack.c.l.b16 %v3349
        %v3398 = vpack.c.b16 %v3383, %v3382
        %v3399 = vpack.c.b16 %v3385, %v3384
        %v3400 = vpack.c.b16 %v3387, %v3386
        %v3401 = vpack.c.b16 %v3389, %v3388
        %v3402 = vpack.c.b16 %v3391, %v3390
        %v3403 = vpack.c.b16 %v3393, %v3392
        %v3404 = vpack.c.b16 %v3395, %v3394
        %v3405 = vpack.c.b16 %v3397, %v3396
        %3406 = vrot.lane.b32.xlu0 %v3398, 88
        %v3407 = vpop.permute.xlu0 %3406
        %3408 = vrot.lane.b32.xlu0 %v3399, 88
        %v3409 = vpop.permute.xlu0 %3408
        %3410 = vrot.lane.b32.xlu0 %v3400, 88
        %v3411 = vpop.permute.xlu0 %3410
        %3412 = vrot.lane.b32.xlu0 %v3401, 88
        %v3413 = vpop.permute.xlu0 %3412
        %3414 = vrot.lane.b32.xlu0 %v3402, 88
        %v3415 = vpop.permute.xlu0 %3414
        %3416 = vrot.lane.b32.xlu0 %v3403, 88
        %v3417 = vpop.permute.xlu0 %3416
        %3418 = vrot.lane.b32.xlu0 %v3404, 88
        %v3419 = vpop.permute.xlu0 %3418
        %3420 = vrot.lane.b32.xlu0 %v3405, 88
        %v3421 = vpop.permute.xlu0 %3420
        %3422 = vrot.lane.b32.xlu0 %v3398, 24
        %v3423 = vpop.permute.xlu0 %3422
        %3424 = vrot.lane.b32.xlu0 %v3399, 24
        %v3425 = vpop.permute.xlu0 %3424
        %3426 = vrot.lane.b32.xlu0 %v3400, 24
        %v3427 = vpop.permute.xlu0 %3426
        %3428 = vrot.lane.b32.xlu0 %v3401, 24
        %v3429 = vpop.permute.xlu0 %3428
        %3430 = vrot.lane.b32.xlu0 %v3402, 24
        %v3431 = vpop.permute.xlu0 %3430
        %3432 = vrot.lane.b32.xlu0 %v3403, 24
        %v3433 = vpop.permute.xlu0 %3432
        %3434 = vrot.lane.b32.xlu0 %v3404, 24
        %v3435 = vpop.permute.xlu0 %3434
        %3436 = vrot.lane.b32.xlu0 %v3405, 24
        %v3437 = vpop.permute.xlu0 %3436
        %v3439 = vsel %vm702, %v3407, 0
        %v3442 = vsel %vm702, %v3409, 0
        %v3445 = vsel %vm702, %v3411, 0
        %v3448 = vsel %vm702, %v3413, 0
        %v3451 = vsel %vm702, %v3415, 0
        %v3454 = vsel %vm702, %v3417, 0
        %v3457 = vsel %vm702, %v3419, 0
        %v3460 = vsel %vm702, %v3421, 0
        %v3463 = vsel %vm702, %v3423, 0
        %v3466 = vsel %vm702, %v3425, 0
        %v3469 = vsel %vm702, %v3427, 0
        %v3472 = vsel %vm702, %v3429, 0
        %v3475 = vsel %vm702, %v3431, 0
        %v3478 = vsel %vm702, %v3433, 0
        %v3481 = vsel %vm702, %v3435, 0
        %v3484 = vsel %vm702, %v3437, 0
        %3486 = vmatpush.bf16.xpose.msra.mxu0 %v3484
        %3487 = vmatpush.bf16.xpose.msra.mxu0 %v3481
        %3488 = vmatpush.bf16.xpose.msra.mxu0 %v3478
        %3489 = vmatpush.bf16.xpose.msra.mxu0 %v3475
        %3490 = vmatpush.bf16.xpose.msra.mxu0 %v3472
        %3491 = vmatpush.bf16.xpose.msra.mxu0 %v3469
        %3492 = vmatpush.bf16.xpose.msra.mxu0 %v3466
        %3493 = vmatpush.bf16.xpose.msra.mxu0 %v3463
        %3494 = vmatmul.bf16.gmra.mxu0 %v3439
        %v3495 = vpop.f32.mrf.mxu0
        %v3496 = vadd.f32 %v598, %v3495
        %v3497 = vpop.f32.mrf.mxu0
        %v3498 = vadd.f32 %v599, %v3497
        %3499 = vmatmul.bf16.gmra.mxu0 %v3442
        %v3500 = vpop.f32.mrf.mxu0
        %v3501 = vadd.f32 %v600, %v3500
        %v3502 = vpop.f32.mrf.mxu0
        %v3503 = vadd.f32 %v601, %v3502
        %3504 = vmatmul.bf16.gmra.mxu0 %v3445
        %v3505 = vpop.f32.mrf.mxu0
        %v3506 = vadd.f32 %v602, %v3505
        %v3507 = vpop.f32.mrf.mxu0
        %v3508 = vadd.f32 %v603, %v3507
        %3509 = vmatmul.bf16.gmra.mxu0 %v3448
        %v3510 = vpop.f32.mrf.mxu0
        %v3511 = vadd.f32 %v604, %v3510
        %v3512 = vpop.f32.mrf.mxu0
        %v3513 = vadd.f32 %v605, %v3512
        %3514 = vmatmul.bf16.gmra.mxu0 %v3451
        %v3515 = vpop.f32.mrf.mxu0
        %v3516 = vadd.f32 %v606, %v3515
        %v3517 = vpop.f32.mrf.mxu0
        %v3518 = vadd.f32 %v607, %v3517
        %3519 = vmatmul.bf16.gmra.mxu0 %v3454
        %v3520 = vpop.f32.mrf.mxu0
        %v3521 = vadd.f32 %v608, %v3520
        %v3522 = vpop.f32.mrf.mxu0
        %v3523 = vadd.f32 %v609, %v3522
        %3524 = vmatmul.bf16.gmra.mxu0 %v3457
        %v3525 = vpop.f32.mrf.mxu0
        %v3526 = vadd.f32 %v610, %v3525
        %v3527 = vpop.f32.mrf.mxu0
        %v3528 = vadd.f32 %v611, %v3527
        %3529 = vmatmul.bf16.gmra.mxu0 %v3460
        %v3530 = vpop.f32.mrf.mxu0
        %v3531 = vadd.f32 %v612, %v3530
        %v3532 = vpop.f32.mrf.mxu0
        %v3533 = vadd.f32 %v613, %v3532
        %3534 = vdwg.mxu0
        %3535 = vmax.xlane.f32.xlu0 %v3496
        %v3536 = vpop.xlane.xlu0 %3535
        %3537 = vmax.xlane.f32.xlu0 %v3498
        %v3538 = vpop.xlane.xlu0 %3537
        %3539 = vmax.xlane.f32.xlu0 %v3501
        %v3540 = vpop.xlane.xlu0 %3539
        %3541 = vmax.xlane.f32.xlu0 %v3503
        %v3542 = vpop.xlane.xlu0 %3541
        %3543 = vmax.xlane.f32.xlu0 %v3506
        %v3544 = vpop.xlane.xlu0 %3543
        %3545 = vmax.xlane.f32.xlu0 %v3508
        %v3546 = vpop.xlane.xlu0 %3545
        %3547 = vmax.xlane.f32.xlu0 %v3511
        %v3548 = vpop.xlane.xlu0 %3547
        %3549 = vmax.xlane.f32.xlu0 %v3513
        %v3550 = vpop.xlane.xlu0 %3549
        %3551 = vmax.xlane.f32.xlu0 %v3516
        %v3552 = vpop.xlane.xlu0 %3551
        %3553 = vmax.xlane.f32.xlu0 %v3518
        %v3554 = vpop.xlane.xlu0 %3553
        %3555 = vmax.xlane.f32.xlu0 %v3521
        %v3556 = vpop.xlane.xlu0 %3555
        %3557 = vmax.xlane.f32.xlu0 %v3523
        %v3558 = vpop.xlane.xlu0 %3557
        %3559 = vmax.xlane.f32.xlu0 %v3526
        %v3560 = vpop.xlane.xlu0 %3559
        %3561 = vmax.xlane.f32.xlu0 %v3528
        %v3562 = vpop.xlane.xlu0 %3561
        %3563 = vmax.xlane.f32.xlu0 %v3531
        %v3564 = vpop.xlane.xlu0 %3563
        %3565 = vmax.xlane.f32.xlu0 %v3533
        %v3566 = vpop.xlane.xlu0 %3565
        %v3567 = vsub.f32 %v3496, %v3536
        %v3568 = vsub.f32 %v3498, %v3538
        %v3569 = vsub.f32 %v3501, %v3540
        %v3570 = vsub.f32 %v3503, %v3542
        %v3571 = vsub.f32 %v3506, %v3544
        %v3572 = vsub.f32 %v3508, %v3546
        %v3573 = vsub.f32 %v3511, %v3548
        %v3574 = vsub.f32 %v3513, %v3550
        %v3575 = vsub.f32 %v3516, %v3552
        %v3576 = vsub.f32 %v3518, %v3554
        %v3577 = vsub.f32 %v3521, %v3556
        %v3578 = vsub.f32 %v3523, %v3558
        %v3579 = vsub.f32 %v3526, %v3560
        %v3580 = vsub.f32 %v3528, %v3562
        %v3581 = vsub.f32 %v3531, %v3564
        %v3582 = vsub.f32 %v3533, %v3566
        %v3583 = vmul.f32 %v3567, 1.442695
        %v3584 = vpow.pop %v3583
        %v3585 = vmul.f32 %v3568, 1.442695
        %v3586 = vpow.pop %v3585
        %v3587 = vmul.f32 %v3569, 1.442695
        %v3588 = vpow.pop %v3587
        %v3589 = vmul.f32 %v3570, 1.442695
        %v3590 = vpow.pop %v3589
        %v3591 = vmul.f32 %v3571, 1.442695
        %v3592 = vpow.pop %v3591
        %v3593 = vmul.f32 %v3572, 1.442695
        %v3594 = vpow.pop %v3593
        %v3595 = vmul.f32 %v3573, 1.442695
        %v3596 = vpow.pop %v3595
        %v3597 = vmul.f32 %v3574, 1.442695
        %v3598 = vpow.pop %v3597
        %v3599 = vmul.f32 %v3575, 1.442695
        %v3600 = vpow.pop %v3599
        %v3601 = vmul.f32 %v3576, 1.442695
        %v3602 = vpow.pop %v3601
        %v3603 = vmul.f32 %v3577, 1.442695
        %v3604 = vpow.pop %v3603
        %v3605 = vmul.f32 %v3578, 1.442695
        %v3606 = vpow.pop %v3605
        %v3607 = vmul.f32 %v3579, 1.442695
        %v3608 = vpow.pop %v3607
        %v3609 = vmul.f32 %v3580, 1.442695
        %v3610 = vpow.pop %v3609
        %v3611 = vmul.f32 %v3581, 1.442695
        %v3612 = vpow.pop %v3611
        %v3613 = vmul.f32 %v3582, 1.442695
        %v3614 = vpow.pop %v3613
        %3615 = vadd.xlane.f32.xlu0 %v3584
        %v3616 = vpop.xlane.xlu0 %3615
        %3617 = vadd.xlane.f32.xlu0 %v3586
        %v3618 = vpop.xlane.xlu0 %3617
        %3619 = vadd.xlane.f32.xlu0 %v3588
        %v3620 = vpop.xlane.xlu0 %3619
        %3621 = vadd.xlane.f32.xlu0 %v3590
        %v3622 = vpop.xlane.xlu0 %3621
        %3623 = vadd.xlane.f32.xlu0 %v3592
        %v3624 = vpop.xlane.xlu0 %3623
        %3625 = vadd.xlane.f32.xlu0 %v3594
        %v3626 = vpop.xlane.xlu0 %3625
        %3627 = vadd.xlane.f32.xlu0 %v3596
        %v3628 = vpop.xlane.xlu0 %3627
        %3629 = vadd.xlane.f32.xlu0 %v3598
        %v3630 = vpop.xlane.xlu0 %3629
        %3631 = vadd.xlane.f32.xlu0 %v3600
        %v3632 = vpop.xlane.xlu0 %3631
        %3633 = vadd.xlane.f32.xlu0 %v3602
        %v3634 = vpop.xlane.xlu0 %3633
        %3635 = vadd.xlane.f32.xlu0 %v3604
        %v3636 = vpop.xlane.xlu0 %3635
        %3637 = vadd.xlane.f32.xlu0 %v3606
        %v3638 = vpop.xlane.xlu0 %3637
        %3639 = vadd.xlane.f32.xlu0 %v3608
        %v3640 = vpop.xlane.xlu0 %3639
        %3641 = vadd.xlane.f32.xlu0 %v3610
        %v3642 = vpop.xlane.xlu0 %3641
        %3643 = vadd.xlane.f32.xlu0 %v3612
        %v3644 = vpop.xlane.xlu0 %3643
        %3645 = vadd.xlane.f32.xlu0 %v3614
        %v3646 = vpop.xlane.xlu0 %3645
        %v3647 = vrcp.pop %v3616
        %v3648 = vrcp.pop %v3618
        %v3649 = vrcp.pop %v3620
        %v3650 = vrcp.pop %v3622
        %v3651 = vrcp.pop %v3624
        %v3652 = vrcp.pop %v3626
        %v3653 = vrcp.pop %v3628
        %v3654 = vrcp.pop %v3630
        %v3655 = vrcp.pop %v3632
        %v3656 = vrcp.pop %v3634
        %v3657 = vrcp.pop %v3636
        %v3658 = vrcp.pop %v3638
        %v3659 = vrcp.pop %v3640
        %v3660 = vrcp.pop %v3642
        %v3661 = vrcp.pop %v3644
        %v3662 = vrcp.pop %v3646
        %v3663 = vmul.f32 %v3584, %v3647
        %v3664 = vmul.f32 %v3586, %v3648
        %v3665 = vmul.f32 %v3588, %v3649
        %v3666 = vmul.f32 %v3590, %v3650
        %v3667 = vmul.f32 %v3592, %v3651
        %v3668 = vmul.f32 %v3594, %v3652
        %v3669 = vmul.f32 %v3596, %v3653
        %v3670 = vmul.f32 %v3598, %v3654
        %v3671 = vmul.f32 %v3600, %v3655
        %v3672 = vmul.f32 %v3602, %v3656
        %v3673 = vmul.f32 %v3604, %v3657
        %v3674 = vmul.f32 %v3606, %v3658
        %v3675 = vmul.f32 %v3608, %v3659
        %v3676 = vmul.f32 %v3610, %v3660
        %v3677 = vmul.f32 %v3612, %v3661
        %v3678 = vmul.f32 %v3614, %v3662
        %v3679 = vpack.c.bf16 %v3664, %v3663
        %v3680 = vpack.c.bf16 %v3666, %v3665
        %v3681 = vpack.c.bf16 %v3668, %v3667
        %v3682 = vpack.c.bf16 %v3670, %v3669
        %v3683 = vpack.c.bf16 %v3672, %v3671
        %v3684 = vpack.c.bf16 %v3674, %v3673
        %v3685 = vpack.c.bf16 %v3676, %v3675
        %v3686 = vpack.c.bf16 %v3678, %v3677
        %v3703 = vunpack.c.l.b16 %v3350
        %v3704 = vunpack.c.l.b16 %v3351
        %v3705 = vunpack.c.l.b16 %v3352
        %v3706 = vunpack.c.l.b16 %v3353
        %v3707 = vunpack.c.l.b16 %v3354
        %v3708 = vunpack.c.l.b16 %v3355
        %v3709 = vunpack.c.l.b16 %v3356
        %v3710 = vunpack.c.l.b16 %v3357
        %v3711 = vunpack.c.l.b16 %v3358
        %v3712 = vunpack.c.l.b16 %v3359
        %v3713 = vunpack.c.l.b16 %v3360
        %v3714 = vunpack.c.l.b16 %v3361
        %v3715 = vunpack.c.l.b16 %v3362
        %v3716 = vunpack.c.l.b16 %v3363
        %v3717 = vunpack.c.l.b16 %v3364
        %v3718 = vunpack.c.l.b16 %v3365
        %v3719 = vpack.c.b16 %v3704, %v3703
        %v3720 = vpack.c.b16 %v3706, %v3705
        %v3721 = vpack.c.b16 %v3708, %v3707
        %v3722 = vpack.c.b16 %v3710, %v3709
        %v3723 = vpack.c.b16 %v3712, %v3711
        %v3724 = vpack.c.b16 %v3714, %v3713
        %v3725 = vpack.c.b16 %v3716, %v3715
        %v3726 = vpack.c.b16 %v3718, %v3717
        %3727 = vrot.lane.b32.xlu0 %v3719, 88
        %v3728 = vpop.permute.xlu0 %3727
        %3729 = vrot.lane.b32.xlu0 %v3720, 88
        %v3730 = vpop.permute.xlu0 %3729
        %3731 = vrot.lane.b32.xlu0 %v3721, 88
        %v3732 = vpop.permute.xlu0 %3731
        %3733 = vrot.lane.b32.xlu0 %v3722, 88
        %v3734 = vpop.permute.xlu0 %3733
        %3735 = vrot.lane.b32.xlu0 %v3723, 88
        %v3736 = vpop.permute.xlu0 %3735
        %3737 = vrot.lane.b32.xlu0 %v3724, 88
        %v3738 = vpop.permute.xlu0 %3737
        %3739 = vrot.lane.b32.xlu0 %v3725, 88
        %v3740 = vpop.permute.xlu0 %3739
        %3741 = vrot.lane.b32.xlu0 %v3726, 88
        %v3742 = vpop.permute.xlu0 %3741
        %3751 = vmatpush.bf16.msra.mxu0 %v3742
        %3752 = vmatpush.bf16.msra.mxu0 %v3740
        %3753 = vmatpush.bf16.msra.mxu0 %v3738
        %3754 = vmatpush.bf16.msra.mxu0 %v3736
        %3755 = vmatpush.bf16.msra.mxu0 %v3734
        %3756 = vmatpush.bf16.msra.mxu0 %v3732
        %3757 = vmatpush.bf16.msra.mxu0 %v3730
        %3758 = vmatpush.bf16.msra.mxu0 %v3728
        %3759 = vmatmul.bf16.gmra.mxu0 %v3679
        %v3760 = vpop.f32.mrf.mxu0
        %v3761 = vadd.f32 0.0, %v3760
        %v3762 = vpop.f32.mrf.mxu0
        %v3763 = vadd.f32 0.0, %v3762
        %3764 = vmatmul.bf16.gmra.mxu0 %v3680
        %v3765 = vpop.f32.mrf.mxu0
        %v3766 = vadd.f32 0.0, %v3765
        %v3767 = vpop.f32.mrf.mxu0
        %v3768 = vadd.f32 0.0, %v3767
        %3769 = vmatmul.bf16.gmra.mxu0 %v3681
        %v3770 = vpop.f32.mrf.mxu0
        %v3771 = vadd.f32 0.0, %v3770
        %v3772 = vpop.f32.mrf.mxu0
        %v3773 = vadd.f32 0.0, %v3772
        %3774 = vmatmul.bf16.gmra.mxu0 %v3682
        %v3775 = vpop.f32.mrf.mxu0
        %v3776 = vadd.f32 0.0, %v3775
        %v3777 = vpop.f32.mrf.mxu0
        %v3778 = vadd.f32 0.0, %v3777
        %3779 = vmatmul.bf16.gmra.mxu0 %v3683
        %v3780 = vpop.f32.mrf.mxu0
        %v3781 = vadd.f32 0.0, %v3780
        %v3782 = vpop.f32.mrf.mxu0
        %v3783 = vadd.f32 0.0, %v3782
        %3784 = vmatmul.bf16.gmra.mxu0 %v3684
        %v3785 = vpop.f32.mrf.mxu0
        %v3786 = vadd.f32 0.0, %v3785
        %v3787 = vpop.f32.mrf.mxu0
        %v3788 = vadd.f32 0.0, %v3787
        %3789 = vmatmul.bf16.gmra.mxu0 %v3685
        %v3790 = vpop.f32.mrf.mxu0
        %v3791 = vadd.f32 0.0, %v3790
        %v3792 = vpop.f32.mrf.mxu0
        %v3793 = vadd.f32 0.0, %v3792
        %3794 = vmatmul.bf16.gmra.mxu0 %v3686
        %v3795 = vpop.f32.mrf.mxu0
        %v3796 = vadd.f32 0.0, %v3795
        %v3797 = vpop.f32.mrf.mxu0
        %v3798 = vadd.f32 0.0, %v3797
        %3799 = vdwg.mxu0
        %v3800 = vpack.c.bf16 %v3761, %v3761
        %v3801 = vpack.c.bf16 %v3763, %v3763
        %v3802 = vpack.c.bf16 %v3766, %v3766
        %v3803 = vpack.c.bf16 %v3768, %v3768
        %v3804 = vpack.c.bf16 %v3771, %v3771
        %v3805 = vpack.c.bf16 %v3773, %v3773
        %v3806 = vpack.c.bf16 %v3776, %v3776
        %v3807 = vpack.c.bf16 %v3778, %v3778
        %v3808 = vpack.c.bf16 %v3781, %v3781
        %v3809 = vpack.c.bf16 %v3783, %v3783
        %v3810 = vpack.c.bf16 %v3786, %v3786
        %v3811 = vpack.c.bf16 %v3788, %v3788
        %v3812 = vpack.c.bf16 %v3791, %v3791
        %v3813 = vpack.c.bf16 %v3793, %v3793
        %v3814 = vpack.c.bf16 %v3796, %v3796
        %v3815 = vpack.c.bf16 %v3798, %v3798
        %3832 = vrot.lane.b32.xlu0 %v3800, 40
        %v3833 = vpop.permute.xlu0 %3832
        %3834 = vrot.lane.b32.xlu0 %v3801, 40
        %v3835 = vpop.permute.xlu0 %3834
        %3836 = vrot.lane.b32.xlu0 %v3802, 40
        %v3837 = vpop.permute.xlu0 %3836
        %3838 = vrot.lane.b32.xlu0 %v3803, 40
        %v3839 = vpop.permute.xlu0 %3838
        %3840 = vrot.lane.b32.xlu0 %v3804, 40
        %v3841 = vpop.permute.xlu0 %3840
        %3842 = vrot.lane.b32.xlu0 %v3805, 40
        %v3843 = vpop.permute.xlu0 %3842
        %3844 = vrot.lane.b32.xlu0 %v3806, 40
        %v3845 = vpop.permute.xlu0 %3844
        %3846 = vrot.lane.b32.xlu0 %v3807, 40
        %v3847 = vpop.permute.xlu0 %3846
        %3848 = vrot.lane.b32.xlu0 %v3808, 40
        %v3849 = vpop.permute.xlu0 %3848
        %3850 = vrot.lane.b32.xlu0 %v3809, 40
        %v3851 = vpop.permute.xlu0 %3850
        %3852 = vrot.lane.b32.xlu0 %v3810, 40
        %v3853 = vpop.permute.xlu0 %3852
        %3854 = vrot.lane.b32.xlu0 %v3811, 40
        %v3855 = vpop.permute.xlu0 %3854
        %3856 = vrot.lane.b32.xlu0 %v3812, 40
        %v3857 = vpop.permute.xlu0 %3856
        %3858 = vrot.lane.b32.xlu0 %v3813, 40
        %v3859 = vpop.permute.xlu0 %3858
        %3860 = vrot.lane.b32.xlu0 %v3814, 40
        %v3861 = vpop.permute.xlu0 %3860
        %3862 = vrot.lane.b32.xlu0 %v3815, 40
        %v3863 = vpop.permute.xlu0 %3862
        %vm3880 = vcmask 388416
        %3881 = vst.msk [vmem:[#allocation3] sm:$0xf] %vm3880, %v3833
        %3882 = vst.msk [vmem:[#allocation3 + $0x4] sm:$0xf] %vm3880, %v3835
        %3883 = vst.msk [vmem:[#allocation3 + $0x8] sm:$0xf] %vm3880, %v3837
        %3884 = vst.msk [vmem:[#allocation3 + $0xc] sm:$0xf] %vm3880, %v3839
        %3885 = vst.msk [vmem:[#allocation3 + $0x10] sm:$0xf] %vm3880, %v3841
        %3886 = vst.msk [vmem:[#allocation3 + $0x14] sm:$0xf] %vm3880, %v3843
        %3887 = vst.msk [vmem:[#allocation3 + $0x18] sm:$0xf] %vm3880, %v3845
        %3888 = vst.msk [vmem:[#allocation3 + $0x1c] sm:$0xf] %vm3880, %v3847
        %3889 = vst.msk [vmem:[#allocation3 + $0x20] sm:$0xf] %vm3880, %v3849
        %3890 = vst.msk [vmem:[#allocation3 + $0x24] sm:$0xf] %vm3880, %v3851
        %3891 = vst.msk [vmem:[#allocation3 + $0x28] sm:$0xf] %vm3880, %v3853
        %3892 = vst.msk [vmem:[#allocation3 + $0x2c] sm:$0xf] %vm3880, %v3855
        %3893 = vst.msk [vmem:[#allocation3 + $0x30] sm:$0xf] %vm3880, %v3857
        %3894 = vst.msk [vmem:[#allocation3 + $0x34] sm:$0xf] %vm3880, %v3859
        %3895 = vst.msk [vmem:[#allocation3 + $0x38] sm:$0xf] %vm3880, %v3861
        %3896 = vst.msk [vmem:[#allocation3 + $0x3c] sm:$0xf] %vm3880, %v3863
        %v3897 = vld [vmem:[#allocation2] sm:$0xf]
        %v3898 = vld [vmem:[#allocation2 + $0x8] sm:$0xf]
        %v3899 = vld [vmem:[#allocation2 + $0x10] sm:$0xf]
        %v3900 = vld [vmem:[#allocation2 + $0x18] sm:$0xf]
        %v3901 = vld [vmem:[#allocation2 + $0x20] sm:$0xf]
        %v3902 = vld [vmem:[#allocation2 + $0x28] sm:$0xf]
        %v3903 = vld [vmem:[#allocation2 + $0x30] sm:$0xf]
        %v3904 = vld [vmem:[#allocation2 + $0x38] sm:$0xf]
        %v3905 = vld [vmem:[#allocation2 + $0x40] sm:$0xf]
        %v3906 = vld [vmem:[#allocation2 + $0x48] sm:$0xf]
        %v3907 = vld [vmem:[#allocation2 + $0x50] sm:$0xf]
        %v3908 = vld [vmem:[#allocation2 + $0x58] sm:$0xf]
        %v3909 = vld [vmem:[#allocation2 + $0x60] sm:$0xf]
        %v3910 = vld [vmem:[#allocation2 + $0x68] sm:$0xf]
        %v3911 = vld [vmem:[#allocation2 + $0x70] sm:$0xf]
        %v3912 = vld [vmem:[#allocation2 + $0x78] sm:$0xf]
        %v3913 = vld [vmem:[#allocation2 + $0x4] sm:$0xf]
        %v3914 = vld [vmem:[#allocation2 + $0xc] sm:$0xf]
        %v3915 = vld [vmem:[#allocation2 + $0x14] sm:$0xf]
        %v3916 = vld [vmem:[#allocation2 + $0x1c] sm:$0xf]
        %v3917 = vld [vmem:[#allocation2 + $0x24] sm:$0xf]
        %v3918 = vld [vmem:[#allocation2 + $0x2c] sm:$0xf]
        %v3919 = vld [vmem:[#allocation2 + $0x34] sm:$0xf]
        %v3920 = vld [vmem:[#allocation2 + $0x3c] sm:$0xf]
        %v3921 = vld [vmem:[#allocation2 + $0x44] sm:$0xf]
        %v3922 = vld [vmem:[#allocation2 + $0x4c] sm:$0xf]
        %v3923 = vld [vmem:[#allocation2 + $0x54] sm:$0xf]
        %v3924 = vld [vmem:[#allocation2 + $0x5c] sm:$0xf]
        %v3925 = vld [vmem:[#allocation2 + $0x64] sm:$0xf]
        %v3926 = vld [vmem:[#allocation2 + $0x6c] sm:$0xf]
        %v3927 = vld [vmem:[#allocation2 + $0x74] sm:$0xf]
        %v3928 = vld [vmem:[#allocation2 + $0x7c] sm:$0xf]
        %v3945 = vunpack.c.l.b16 %v3897
        %v3946 = vunpack.c.l.b16 %v3898
        %v3947 = vunpack.c.l.b16 %v3899
        %v3948 = vunpack.c.l.b16 %v3900
        %v3949 = vunpack.c.l.b16 %v3901
        %v3950 = vunpack.c.l.b16 %v3902
        %v3951 = vunpack.c.l.b16 %v3903
        %v3952 = vunpack.c.l.b16 %v3904
        %v3953 = vunpack.c.l.b16 %v3905
        %v3954 = vunpack.c.l.b16 %v3906
        %v3955 = vunpack.c.l.b16 %v3907
        %v3956 = vunpack.c.l.b16 %v3908
        %v3957 = vunpack.c.l.b16 %v3909
        %v3958 = vunpack.c.l.b16 %v3910
        %v3959 = vunpack.c.l.b16 %v3911
        %v3960 = vunpack.c.l.b16 %v3912
        %v3961 = vpack.c.b16 %v3946, %v3945
        %v3962 = vpack.c.b16 %v3948, %v3947
        %v3963 = vpack.c.b16 %v3950, %v3949
        %v3964 = vpack.c.b16 %v3952, %v3951
        %v3965 = vpack.c.b16 %v3954, %v3953
        %v3966 = vpack.c.b16 %v3956, %v3955
        %v3967 = vpack.c.b16 %v3958, %v3957
        %v3968 = vpack.c.b16 %v3960, %v3959
        %3969 = vrot.lane.b32.xlu0 %v3961, 80
        %v3970 = vpop.permute.xlu0 %3969
        %3971 = vrot.lane.b32.xlu0 %v3962, 80
        %v3972 = vpop.permute.xlu0 %3971
        %3973 = vrot.lane.b32.xlu0 %v3963, 80
        %v3974 = vpop.permute.xlu0 %3973
        %3975 = vrot.lane.b32.xlu0 %v3964, 80
        %v3976 = vpop.permute.xlu0 %3975
        %3977 = vrot.lane.b32.xlu0 %v3965, 80
        %v3978 = vpop.permute.xlu0 %3977
        %3979 = vrot.lane.b32.xlu0 %v3966, 80
        %v3980 = vpop.permute.xlu0 %3979
        %3981 = vrot.lane.b32.xlu0 %v3967, 80
        %v3982 = vpop.permute.xlu0 %3981
        %3983 = vrot.lane.b32.xlu0 %v3968, 80
        %v3984 = vpop.permute.xlu0 %3983
        %3985 = vrot.lane.b32.xlu0 %v3961, 16
        %v3986 = vpop.permute.xlu0 %3985
        %3987 = vrot.lane.b32.xlu0 %v3962, 16
        %v3988 = vpop.permute.xlu0 %3987
        %3989 = vrot.lane.b32.xlu0 %v3963, 16
        %v3990 = vpop.permute.xlu0 %3989
        %3991 = vrot.lane.b32.xlu0 %v3964, 16
        %v3992 = vpop.permute.xlu0 %3991
        %3993 = vrot.lane.b32.xlu0 %v3965, 16
        %v3994 = vpop.permute.xlu0 %3993
        %3995 = vrot.lane.b32.xlu0 %v3966, 16
        %v3996 = vpop.permute.xlu0 %3995
        %3997 = vrot.lane.b32.xlu0 %v3967, 16
        %v3998 = vpop.permute.xlu0 %3997
        %3999 = vrot.lane.b32.xlu0 %v3968, 16
        %v4000 = vpop.permute.xlu0 %3999
        %v4002 = vsel %vm702, %v3970, 0
        %v4005 = vsel %vm702, %v3972, 0
        %v4008 = vsel %vm702, %v3974, 0
        %v4011 = vsel %vm702, %v3976, 0
        %v4014 = vsel %vm702, %v3978, 0
        %v4017 = vsel %vm702, %v3980, 0
        %v4020 = vsel %vm702, %v3982, 0
        %v4023 = vsel %vm702, %v3984, 0
        %v4026 = vsel %vm702, %v3986, 0
        %v4029 = vsel %vm702, %v3988, 0
        %v4032 = vsel %vm702, %v3990, 0
        %v4035 = vsel %vm702, %v3992, 0
        %v4038 = vsel %vm702, %v3994, 0
        %v4041 = vsel %vm702, %v3996, 0
        %v4044 = vsel %vm702, %v3998, 0
        %v4047 = vsel %vm702, %v4000, 0
        %4049 = vmatpush.bf16.xpose.msra.mxu0 %v4047
        %4050 = vmatpush.bf16.xpose.msra.mxu0 %v4044
        %4051 = vmatpush.bf16.xpose.msra.mxu0 %v4041
        %4052 = vmatpush.bf16.xpose.msra.mxu0 %v4038
        %4053 = vmatpush.bf16.xpose.msra.mxu0 %v4035
        %4054 = vmatpush.bf16.xpose.msra.mxu0 %v4032
        %4055 = vmatpush.bf16.xpose.msra.mxu0 %v4029
        %4056 = vmatpush.bf16.xpose.msra.mxu0 %v4026
        %4057 = vmatmul.bf16.gmra.mxu0 %v4002
        %v4058 = vpop.f32.mrf.mxu0
        %v4059 = vadd.f32 %v598, %v4058
        %v4060 = vpop.f32.mrf.mxu0
        %v4061 = vadd.f32 %v599, %v4060
        %4062 = vmatmul.bf16.gmra.mxu0 %v4005
        %v4063 = vpop.f32.mrf.mxu0
        %v4064 = vadd.f32 %v600, %v4063
        %v4065 = vpop.f32.mrf.mxu0
        %v4066 = vadd.f32 %v601, %v4065
        %4067 = vmatmul.bf16.gmra.mxu0 %v4008
        %v4068 = vpop.f32.mrf.mxu0
        %v4069 = vadd.f32 %v602, %v4068
        %v4070 = vpop.f32.mrf.mxu0
        %v4071 = vadd.f32 %v603, %v4070
        %4072 = vmatmul.bf16.gmra.mxu0 %v4011
        %v4073 = vpop.f32.mrf.mxu0
        %v4074 = vadd.f32 %v604, %v4073
        %v4075 = vpop.f32.mrf.mxu0
        %v4076 = vadd.f32 %v605, %v4075
        %4077 = vmatmul.bf16.gmra.mxu0 %v4014
        %v4078 = vpop.f32.mrf.mxu0
        %v4079 = vadd.f32 %v606, %v4078
        %v4080 = vpop.f32.mrf.mxu0
        %v4081 = vadd.f32 %v607, %v4080
        %4082 = vmatmul.bf16.gmra.mxu0 %v4017
        %v4083 = vpop.f32.mrf.mxu0
        %v4084 = vadd.f32 %v608, %v4083
        %v4085 = vpop.f32.mrf.mxu0
        %v4086 = vadd.f32 %v609, %v4085
        %4087 = vmatmul.bf16.gmra.mxu0 %v4020
        %v4088 = vpop.f32.mrf.mxu0
        %v4089 = vadd.f32 %v610, %v4088
        %v4090 = vpop.f32.mrf.mxu0
        %v4091 = vadd.f32 %v611, %v4090
        %4092 = vmatmul.bf16.gmra.mxu0 %v4023
        %v4093 = vpop.f32.mrf.mxu0
        %v4094 = vadd.f32 %v612, %v4093
        %v4095 = vpop.f32.mrf.mxu0
        %v4096 = vadd.f32 %v613, %v4095
        %4097 = vdwg.mxu0
        %4098 = vmax.xlane.f32.xlu0 %v4059
        %v4099 = vpop.xlane.xlu0 %4098
        %4100 = vmax.xlane.f32.xlu0 %v4061
        %v4101 = vpop.xlane.xlu0 %4100
        %4102 = vmax.xlane.f32.xlu0 %v4064
        %v4103 = vpop.xlane.xlu0 %4102
        %4104 = vmax.xlane.f32.xlu0 %v4066
        %v4105 = vpop.xlane.xlu0 %4104
        %4106 = vmax.xlane.f32.xlu0 %v4069
        %v4107 = vpop.xlane.xlu0 %4106
        %4108 = vmax.xlane.f32.xlu0 %v4071
        %v4109 = vpop.xlane.xlu0 %4108
        %4110 = vmax.xlane.f32.xlu0 %v4074
        %v4111 = vpop.xlane.xlu0 %4110
        %4112 = vmax.xlane.f32.xlu0 %v4076
        %v4113 = vpop.xlane.xlu0 %4112
        %4114 = vmax.xlane.f32.xlu0 %v4079
        %v4115 = vpop.xlane.xlu0 %4114
        %4116 = vmax.xlane.f32.xlu0 %v4081
        %v4117 = vpop.xlane.xlu0 %4116
        %4118 = vmax.xlane.f32.xlu0 %v4084
        %v4119 = vpop.xlane.xlu0 %4118
        %4120 = vmax.xlane.f32.xlu0 %v4086
        %v4121 = vpop.xlane.xlu0 %4120
        %4122 = vmax.xlane.f32.xlu0 %v4089
        %v4123 = vpop.xlane.xlu0 %4122
        %4124 = vmax.xlane.f32.xlu0 %v4091
        %v4125 = vpop.xlane.xlu0 %4124
        %4126 = vmax.xlane.f32.xlu0 %v4094
        %v4127 = vpop.xlane.xlu0 %4126
        %4128 = vmax.xlane.f32.xlu0 %v4096
        %v4129 = vpop.xlane.xlu0 %4128
        %v4130 = vsub.f32 %v4059, %v4099
        %v4131 = vsub.f32 %v4061, %v4101
        %v4132 = vsub.f32 %v4064, %v4103
        %v4133 = vsub.f32 %v4066, %v4105
        %v4134 = vsub.f32 %v4069, %v4107
        %v4135 = vsub.f32 %v4071, %v4109
        %v4136 = vsub.f32 %v4074, %v4111
        %v4137 = vsub.f32 %v4076, %v4113
        %v4138 = vsub.f32 %v4079, %v4115
        %v4139 = vsub.f32 %v4081, %v4117
        %v4140 = vsub.f32 %v4084, %v4119
        %v4141 = vsub.f32 %v4086, %v4121
        %v4142 = vsub.f32 %v4089, %v4123
        %v4143 = vsub.f32 %v4091, %v4125
        %v4144 = vsub.f32 %v4094, %v4127
        %v4145 = vsub.f32 %v4096, %v4129
        %v4146 = vmul.f32 %v4130, 1.442695
        %v4147 = vpow.pop %v4146
        %v4148 = vmul.f32 %v4131, 1.442695
        %v4149 = vpow.pop %v4148
        %v4150 = vmul.f32 %v4132, 1.442695
        %v4151 = vpow.pop %v4150
        %v4152 = vmul.f32 %v4133, 1.442695
        %v4153 = vpow.pop %v4152
        %v4154 = vmul.f32 %v4134, 1.442695
        %v4155 = vpow.pop %v4154
        %v4156 = vmul.f32 %v4135, 1.442695
        %v4157 = vpow.pop %v4156
        %v4158 = vmul.f32 %v4136, 1.442695
        %v4159 = vpow.pop %v4158
        %v4160 = vmul.f32 %v4137, 1.442695
        %v4161 = vpow.pop %v4160
        %v4162 = vmul.f32 %v4138, 1.442695
        %v4163 = vpow.pop %v4162
        %v4164 = vmul.f32 %v4139, 1.442695
        %v4165 = vpow.pop %v4164
        %v4166 = vmul.f32 %v4140, 1.442695
        %v4167 = vpow.pop %v4166
        %v4168 = vmul.f32 %v4141, 1.442695
        %v4169 = vpow.pop %v4168
        %v4170 = vmul.f32 %v4142, 1.442695
        %v4171 = vpow.pop %v4170
        %v4172 = vmul.f32 %v4143, 1.442695
        %v4173 = vpow.pop %v4172
        %v4174 = vmul.f32 %v4144, 1.442695
        %v4175 = vpow.pop %v4174
        %v4176 = vmul.f32 %v4145, 1.442695
        %v4177 = vpow.pop %v4176
        %4178 = vadd.xlane.f32.xlu0 %v4147
        %v4179 = vpop.xlane.xlu0 %4178
        %4180 = vadd.xlane.f32.xlu0 %v4149
        %v4181 = vpop.xlane.xlu0 %4180
        %4182 = vadd.xlane.f32.xlu0 %v4151
        %v4183 = vpop.xlane.xlu0 %4182
        %4184 = vadd.xlane.f32.xlu0 %v4153
        %v4185 = vpop.xlane.xlu0 %4184
        %4186 = vadd.xlane.f32.xlu0 %v4155
        %v4187 = vpop.xlane.xlu0 %4186
        %4188 = vadd.xlane.f32.xlu0 %v4157
        %v4189 = vpop.xlane.xlu0 %4188
        %4190 = vadd.xlane.f32.xlu0 %v4159
        %v4191 = vpop.xlane.xlu0 %4190
        %4192 = vadd.xlane.f32.xlu0 %v4161
        %v4193 = vpop.xlane.xlu0 %4192
        %4194 = vadd.xlane.f32.xlu0 %v4163
        %v4195 = vpop.xlane.xlu0 %4194
        %4196 = vadd.xlane.f32.xlu0 %v4165
        %v4197 = vpop.xlane.xlu0 %4196
        %4198 = vadd.xlane.f32.xlu0 %v4167
        %v4199 = vpop.xlane.xlu0 %4198
        %4200 = vadd.xlane.f32.xlu0 %v4169
        %v4201 = vpop.xlane.xlu0 %4200
        %4202 = vadd.xlane.f32.xlu0 %v4171
        %v4203 = vpop.xlane.xlu0 %4202
        %4204 = vadd.xlane.f32.xlu0 %v4173
        %v4205 = vpop.xlane.xlu0 %4204
        %4206 = vadd.xlane.f32.xlu0 %v4175
        %v4207 = vpop.xlane.xlu0 %4206
        %4208 = vadd.xlane.f32.xlu0 %v4177
        %v4209 = vpop.xlane.xlu0 %4208
        %v4210 = vrcp.pop %v4179
        %v4211 = vrcp.pop %v4181
        %v4212 = vrcp.pop %v4183
        %v4213 = vrcp.pop %v4185
        %v4214 = vrcp.pop %v4187
        %v4215 = vrcp.pop %v4189
        %v4216 = vrcp.pop %v4191
        %v4217 = vrcp.pop %v4193
        %v4218 = vrcp.pop %v4195
        %v4219 = vrcp.pop %v4197
        %v4220 = vrcp.pop %v4199
        %v4221 = vrcp.pop %v4201
        %v4222 = vrcp.pop %v4203
        %v4223 = vrcp.pop %v4205
        %v4224 = vrcp.pop %v4207
        %v4225 = vrcp.pop %v4209
        %v4226 = vmul.f32 %v4147, %v4210
        %v4227 = vmul.f32 %v4149, %v4211
        %v4228 = vmul.f32 %v4151, %v4212
        %v4229 = vmul.f32 %v4153, %v4213
        %v4230 = vmul.f32 %v4155, %v4214
        %v4231 = vmul.f32 %v4157, %v4215
        %v4232 = vmul.f32 %v4159, %v4216
        %v4233 = vmul.f32 %v4161, %v4217
        %v4234 = vmul.f32 %v4163, %v4218
        %v4235 = vmul.f32 %v4165, %v4219
        %v4236 = vmul.f32 %v4167, %v4220
        %v4237 = vmul.f32 %v4169, %v4221
        %v4238 = vmul.f32 %v4171, %v4222
        %v4239 = vmul.f32 %v4173, %v4223
        %v4240 = vmul.f32 %v4175, %v4224
        %v4241 = vmul.f32 %v4177, %v4225
        %v4242 = vpack.c.bf16 %v4227, %v4226
        %v4243 = vpack.c.bf16 %v4229, %v4228
        %v4244 = vpack.c.bf16 %v4231, %v4230
        %v4245 = vpack.c.bf16 %v4233, %v4232
        %v4246 = vpack.c.bf16 %v4235, %v4234
        %v4247 = vpack.c.bf16 %v4237, %v4236
        %v4248 = vpack.c.bf16 %v4239, %v4238
        %v4249 = vpack.c.bf16 %v4241, %v4240
        %v4266 = vunpack.c.l.b16 %v3913
        %v4267 = vunpack.c.l.b16 %v3914
        %v4268 = vunpack.c.l.b16 %v3915
        %v4269 = vunpack.c.l.b16 %v3916
        %v4270 = vunpack.c.l.b16 %v3917
        %v4271 = vunpack.c.l.b16 %v3918
        %v4272 = vunpack.c.l.b16 %v3919
        %v4273 = vunpack.c.l.b16 %v3920
        %v4274 = vunpack.c.l.b16 %v3921
        %v4275 = vunpack.c.l.b16 %v3922
        %v4276 = vunpack.c.l.b16 %v3923
        %v4277 = vunpack.c.l.b16 %v3924
        %v4278 = vunpack.c.l.b16 %v3925
        %v4279 = vunpack.c.l.b16 %v3926
        %v4280 = vunpack.c.l.b16 %v3927
        %v4281 = vunpack.c.l.b16 %v3928
        %v4282 = vpack.c.b16 %v4267, %v4266
        %v4283 = vpack.c.b16 %v4269, %v4268
        %v4284 = vpack.c.b16 %v4271, %v4270
        %v4285 = vpack.c.b16 %v4273, %v4272
        %v4286 = vpack.c.b16 %v4275, %v4274
        %v4287 = vpack.c.b16 %v4277, %v4276
        %v4288 = vpack.c.b16 %v4279, %v4278
        %v4289 = vpack.c.b16 %v4281, %v4280
        %4290 = vrot.lane.b32.xlu0 %v4282, 80
        %v4291 = vpop.permute.xlu0 %4290
        %4292 = vrot.lane.b32.xlu0 %v4283, 80
        %v4293 = vpop.permute.xlu0 %4292
        %4294 = vrot.lane.b32.xlu0 %v4284, 80
        %v4295 = vpop.permute.xlu0 %4294
        %4296 = vrot.lane.b32.xlu0 %v4285, 80
        %v4297 = vpop.permute.xlu0 %4296
        %4298 = vrot.lane.b32.xlu0 %v4286, 80
        %v4299 = vpop.permute.xlu0 %4298
        %4300 = vrot.lane.b32.xlu0 %v4287, 80
        %v4301 = vpop.permute.xlu0 %4300
        %4302 = vrot.lane.b32.xlu0 %v4288, 80
        %v4303 = vpop.permute.xlu0 %4302
        %4304 = vrot.lane.b32.xlu0 %v4289, 80
        %v4305 = vpop.permute.xlu0 %4304
        %4314 = vmatpush.bf16.msra.mxu0 %v4305
        %4315 = vmatpush.bf16.msra.mxu0 %v4303
        %4316 = vmatpush.bf16.msra.mxu0 %v4301
        %4317 = vmatpush.bf16.msra.mxu0 %v4299
        %4318 = vmatpush.bf16.msra.mxu0 %v4297
        %4319 = vmatpush.bf16.msra.mxu0 %v4295
        %4320 = vmatpush.bf16.msra.mxu0 %v4293
        %4321 = vmatpush.bf16.msra.mxu0 %v4291
        %4322 = vmatmul.bf16.gmra.mxu0 %v4242
        %v4323 = vpop.f32.mrf.mxu0
        %v4324 = vadd.f32 0.0, %v4323
        %v4325 = vpop.f32.mrf.mxu0
        %v4326 = vadd.f32 0.0, %v4325
        %4327 = vmatmul.bf16.gmra.mxu0 %v4243
        %v4328 = vpop.f32.mrf.mxu0
        %v4329 = vadd.f32 0.0, %v4328
        %v4330 = vpop.f32.mrf.mxu0
        %v4331 = vadd.f32 0.0, %v4330
        %4332 = vmatmul.bf16.gmra.mxu0 %v4244
        %v4333 = vpop.f32.mrf.mxu0
        %v4334 = vadd.f32 0.0, %v4333
        %v4335 = vpop.f32.mrf.mxu0
        %v4336 = vadd.f32 0.0, %v4335
        %4337 = vmatmul.bf16.gmra.mxu0 %v4245
        %v4338 = vpop.f32.mrf.mxu0
        %v4339 = vadd.f32 0.0, %v4338
        %v4340 = vpop.f32.mrf.mxu0
        %v4341 = vadd.f32 0.0, %v4340
        %4342 = vmatmul.bf16.gmra.mxu0 %v4246
        %v4343 = vpop.f32.mrf.mxu0
        %v4344 = vadd.f32 0.0, %v4343
        %v4345 = vpop.f32.mrf.mxu0
        %v4346 = vadd.f32 0.0, %v4345
        %4347 = vmatmul.bf16.gmra.mxu0 %v4247
        %v4348 = vpop.f32.mrf.mxu0
        %v4349 = vadd.f32 0.0, %v4348
        %v4350 = vpop.f32.mrf.mxu0
        %v4351 = vadd.f32 0.0, %v4350
        %4352 = vmatmul.bf16.gmra.mxu0 %v4248
        %v4353 = vpop.f32.mrf.mxu0
        %v4354 = vadd.f32 0.0, %v4353
        %v4355 = vpop.f32.mrf.mxu0
        %v4356 = vadd.f32 0.0, %v4355
        %4357 = vmatmul.bf16.gmra.mxu0 %v4249
        %v4358 = vpop.f32.mrf.mxu0
        %v4359 = vadd.f32 0.0, %v4358
        %v4360 = vpop.f32.mrf.mxu0
        %v4361 = vadd.f32 0.0, %v4360
        %4362 = vdwg.mxu0
        %v4363 = vpack.c.bf16 %v4324, %v4324
        %v4364 = vpack.c.bf16 %v4326, %v4326
        %v4365 = vpack.c.bf16 %v4329, %v4329
        %v4366 = vpack.c.bf16 %v4331, %v4331
        %v4367 = vpack.c.bf16 %v4334, %v4334
        %v4368 = vpack.c.bf16 %v4336, %v4336
        %v4369 = vpack.c.bf16 %v4339, %v4339
        %v4370 = vpack.c.bf16 %v4341, %v4341
        %v4371 = vpack.c.bf16 %v4344, %v4344
        %v4372 = vpack.c.bf16 %v4346, %v4346
        %v4373 = vpack.c.bf16 %v4349, %v4349
        %v4374 = vpack.c.bf16 %v4351, %v4351
        %v4375 = vpack.c.bf16 %v4354, %v4354
        %v4376 = vpack.c.bf16 %v4356, %v4356
        %v4377 = vpack.c.bf16 %v4359, %v4359
        %v4378 = vpack.c.bf16 %v4361, %v4361
        %4395 = vrot.lane.b32.xlu0 %v4363, 48
        %v4396 = vpop.permute.xlu0 %4395
        %4397 = vrot.lane.b32.xlu0 %v4364, 48
        %v4398 = vpop.permute.xlu0 %4397
        %4399 = vrot.lane.b32.xlu0 %v4365, 48
        %v4400 = vpop.permute.xlu0 %4399
        %4401 = vrot.lane.b32.xlu0 %v4366, 48
        %v4402 = vpop.permute.xlu0 %4401
        %4403 = vrot.lane.b32.xlu0 %v4367, 48
        %v4404 = vpop.permute.xlu0 %4403
        %4405 = vrot.lane.b32.xlu0 %v4368, 48
        %v4406 = vpop.permute.xlu0 %4405
        %4407 = vrot.lane.b32.xlu0 %v4369, 48
        %v4408 = vpop.permute.xlu0 %4407
        %4409 = vrot.lane.b32.xlu0 %v4370, 48
        %v4410 = vpop.permute.xlu0 %4409
        %4411 = vrot.lane.b32.xlu0 %v4371, 48
        %v4412 = vpop.permute.xlu0 %4411
        %4413 = vrot.lane.b32.xlu0 %v4372, 48
        %v4414 = vpop.permute.xlu0 %4413
        %4415 = vrot.lane.b32.xlu0 %v4373, 48
        %v4416 = vpop.permute.xlu0 %4415
        %4417 = vrot.lane.b32.xlu0 %v4374, 48
        %v4418 = vpop.permute.xlu0 %4417
        %4419 = vrot.lane.b32.xlu0 %v4375, 48
        %v4420 = vpop.permute.xlu0 %4419
        %4421 = vrot.lane.b32.xlu0 %v4376, 48
        %v4422 = vpop.permute.xlu0 %4421
        %4423 = vrot.lane.b32.xlu0 %v4377, 48
        %v4424 = vpop.permute.xlu0 %4423
        %4425 = vrot.lane.b32.xlu0 %v4378, 48
        %v4426 = vpop.permute.xlu0 %4425
        %vm4443 = vcmask 454016
        %4444 = vst.msk [vmem:[#allocation3] sm:$0xf] %vm4443, %v4396
        %4445 = vst.msk [vmem:[#allocation3 + $0x4] sm:$0xf] %vm4443, %v4398
        %4446 = vst.msk [vmem:[#allocation3 + $0x8] sm:$0xf] %vm4443, %v4400
        %4447 = vst.msk [vmem:[#allocation3 + $0xc] sm:$0xf] %vm4443, %v4402
        %4448 = vst.msk [vmem:[#allocation3 + $0x10] sm:$0xf] %vm4443, %v4404
        %4449 = vst.msk [vmem:[#allocation3 + $0x14] sm:$0xf] %vm4443, %v4406
        %4450 = vst.msk [vmem:[#allocation3 + $0x18] sm:$0xf] %vm4443, %v4408
        %4451 = vst.msk [vmem:[#allocation3 + $0x1c] sm:$0xf] %vm4443, %v4410
        %4452 = vst.msk [vmem:[#allocation3 + $0x20] sm:$0xf] %vm4443, %v4412
        %4453 = vst.msk [vmem:[#allocation3 + $0x24] sm:$0xf] %vm4443, %v4414
        %4454 = vst.msk [vmem:[#allocation3 + $0x28] sm:$0xf] %vm4443, %v4416
        %4455 = vst.msk [vmem:[#allocation3 + $0x2c] sm:$0xf] %vm4443, %v4418
        %4456 = vst.msk [vmem:[#allocation3 + $0x30] sm:$0xf] %vm4443, %v4420
        %4457 = vst.msk [vmem:[#allocation3 + $0x34] sm:$0xf] %vm4443, %v4422
        %4458 = vst.msk [vmem:[#allocation3 + $0x38] sm:$0xf] %vm4443, %v4424
        %4459 = vst.msk [vmem:[#allocation3 + $0x3c] sm:$0xf] %vm4443, %v4426
        %v4460 = vld [vmem:[#allocation2] sm:$0xf]
        %v4461 = vld [vmem:[#allocation2 + $0x8] sm:$0xf]
        %v4462 = vld [vmem:[#allocation2 + $0x10] sm:$0xf]
        %v4463 = vld [vmem:[#allocation2 + $0x18] sm:$0xf]
        %v4464 = vld [vmem:[#allocation2 + $0x20] sm:$0xf]
        %v4465 = vld [vmem:[#allocation2 + $0x28] sm:$0xf]
        %v4466 = vld [vmem:[#allocation2 + $0x30] sm:$0xf]
        %v4467 = vld [vmem:[#allocation2 + $0x38] sm:$0xf]
        %v4468 = vld [vmem:[#allocation2 + $0x40] sm:$0xf]
        %v4469 = vld [vmem:[#allocation2 + $0x48] sm:$0xf]
        %v4470 = vld [vmem:[#allocation2 + $0x50] sm:$0xf]
        %v4471 = vld [vmem:[#allocation2 + $0x58] sm:$0xf]
        %v4472 = vld [vmem:[#allocation2 + $0x60] sm:$0xf]
        %v4473 = vld [vmem:[#allocation2 + $0x68] sm:$0xf]
        %v4474 = vld [vmem:[#allocation2 + $0x70] sm:$0xf]
        %v4475 = vld [vmem:[#allocation2 + $0x78] sm:$0xf]
        %v4476 = vld [vmem:[#allocation2 + $0x4] sm:$0xf]
        %v4477 = vld [vmem:[#allocation2 + $0xc] sm:$0xf]
        %v4478 = vld [vmem:[#allocation2 + $0x14] sm:$0xf]
        %v4479 = vld [vmem:[#allocation2 + $0x1c] sm:$0xf]
        %v4480 = vld [vmem:[#allocation2 + $0x24] sm:$0xf]
        %v4481 = vld [vmem:[#allocation2 + $0x2c] sm:$0xf]
        %v4482 = vld [vmem:[#allocation2 + $0x34] sm:$0xf]
        %v4483 = vld [vmem:[#allocation2 + $0x3c] sm:$0xf]
        %v4484 = vld [vmem:[#allocation2 + $0x44] sm:$0xf]
        %v4485 = vld [vmem:[#allocation2 + $0x4c] sm:$0xf]
        %v4486 = vld [vmem:[#allocation2 + $0x54] sm:$0xf]
        %v4487 = vld [vmem:[#allocation2 + $0x5c] sm:$0xf]
        %v4488 = vld [vmem:[#allocation2 + $0x64] sm:$0xf]
        %v4489 = vld [vmem:[#allocation2 + $0x6c] sm:$0xf]
        %v4490 = vld [vmem:[#allocation2 + $0x74] sm:$0xf]
        %v4491 = vld [vmem:[#allocation2 + $0x7c] sm:$0xf]
        %v4508 = vunpack.c.l.b16 %v4460
        %v4509 = vunpack.c.l.b16 %v4461
        %v4510 = vunpack.c.l.b16 %v4462
        %v4511 = vunpack.c.l.b16 %v4463
        %v4512 = vunpack.c.l.b16 %v4464
        %v4513 = vunpack.c.l.b16 %v4465
        %v4514 = vunpack.c.l.b16 %v4466
        %v4515 = vunpack.c.l.b16 %v4467
        %v4516 = vunpack.c.l.b16 %v4468
        %v4517 = vunpack.c.l.b16 %v4469
        %v4518 = vunpack.c.l.b16 %v4470
        %v4519 = vunpack.c.l.b16 %v4471
        %v4520 = vunpack.c.l.b16 %v4472
        %v4521 = vunpack.c.l.b16 %v4473
        %v4522 = vunpack.c.l.b16 %v4474
        %v4523 = vunpack.c.l.b16 %v4475
        %v4524 = vpack.c.b16 %v4509, %v4508
        %v4525 = vpack.c.b16 %v4511, %v4510
        %v4526 = vpack.c.b16 %v4513, %v4512
        %v4527 = vpack.c.b16 %v4515, %v4514
        %v4528 = vpack.c.b16 %v4517, %v4516
        %v4529 = vpack.c.b16 %v4519, %v4518
        %v4530 = vpack.c.b16 %v4521, %v4520
        %v4531 = vpack.c.b16 %v4523, %v4522
        %4532 = vrot.lane.b32.xlu0 %v4524, 72
        %v4533 = vpop.permute.xlu0 %4532
        %4534 = vrot.lane.b32.xlu0 %v4525, 72
        %v4535 = vpop.permute.xlu0 %4534
        %4536 = vrot.lane.b32.xlu0 %v4526, 72
        %v4537 = vpop.permute.xlu0 %4536
        %4538 = vrot.lane.b32.xlu0 %v4527, 72
        %v4539 = vpop.permute.xlu0 %4538
        %4540 = vrot.lane.b32.xlu0 %v4528, 72
        %v4541 = vpop.permute.xlu0 %4540
        %4542 = vrot.lane.b32.xlu0 %v4529, 72
        %v4543 = vpop.permute.xlu0 %4542
        %4544 = vrot.lane.b32.xlu0 %v4530, 72
        %v4545 = vpop.permute.xlu0 %4544
        %4546 = vrot.lane.b32.xlu0 %v4531, 72
        %v4547 = vpop.permute.xlu0 %4546
        %4548 = vrot.lane.b32.xlu0 %v4524, 8
        %v4549 = vpop.permute.xlu0 %4548
        %4550 = vrot.lane.b32.xlu0 %v4525, 8
        %v4551 = vpop.permute.xlu0 %4550
        %4552 = vrot.lane.b32.xlu0 %v4526, 8
        %v4553 = vpop.permute.xlu0 %4552
        %4554 = vrot.lane.b32.xlu0 %v4527, 8
        %v4555 = vpop.permute.xlu0 %4554
        %4556 = vrot.lane.b32.xlu0 %v4528, 8
        %v4557 = vpop.permute.xlu0 %4556
        %4558 = vrot.lane.b32.xlu0 %v4529, 8
        %v4559 = vpop.permute.xlu0 %4558
        %4560 = vrot.lane.b32.xlu0 %v4530, 8
        %v4561 = vpop.permute.xlu0 %4560
        %4562 = vrot.lane.b32.xlu0 %v4531, 8
        %v4563 = vpop.permute.xlu0 %4562
        %v4565 = vsel %vm702, %v4533, 0
        %v4568 = vsel %vm702, %v4535, 0
        %v4571 = vsel %vm702, %v4537, 0
        %v4574 = vsel %vm702, %v4539, 0
        %v4577 = vsel %vm702, %v4541, 0
        %v4580 = vsel %vm702, %v4543, 0
        %v4583 = vsel %vm702, %v4545, 0
        %v4586 = vsel %vm702, %v4547, 0
        %v4589 = vsel %vm702, %v4549, 0
        %v4592 = vsel %vm702, %v4551, 0
        %v4595 = vsel %vm702, %v4553, 0
        %v4598 = vsel %vm702, %v4555, 0
        %v4601 = vsel %vm702, %v4557, 0
        %v4604 = vsel %vm702, %v4559, 0
        %v4607 = vsel %vm702, %v4561, 0
        %v4610 = vsel %vm702, %v4563, 0
        %4612 = vmatpush.bf16.xpose.msra.mxu0 %v4610
        %4613 = vmatpush.bf16.xpose.msra.mxu0 %v4607
        %4614 = vmatpush.bf16.xpose.msra.mxu0 %v4604
        %4615 = vmatpush.bf16.xpose.msra.mxu0 %v4601
        %4616 = vmatpush.bf16.xpose.msra.mxu0 %v4598
        %4617 = vmatpush.bf16.xpose.msra.mxu0 %v4595
        %4618 = vmatpush.bf16.xpose.msra.mxu0 %v4592
        %4619 = vmatpush.bf16.xpose.msra.mxu0 %v4589
        %4620 = vmatmul.bf16.gmra.mxu0 %v4565
        %v4621 = vpop.f32.mrf.mxu0
        %v4622 = vadd.f32 %v598, %v4621
        %v4623 = vpop.f32.mrf.mxu0
        %v4624 = vadd.f32 %v599, %v4623
        %4625 = vmatmul.bf16.gmra.mxu0 %v4568
        %v4626 = vpop.f32.mrf.mxu0
        %v4627 = vadd.f32 %v600, %v4626
        %v4628 = vpop.f32.mrf.mxu0
        %v4629 = vadd.f32 %v601, %v4628
        %4630 = vmatmul.bf16.gmra.mxu0 %v4571
        %v4631 = vpop.f32.mrf.mxu0
        %v4632 = vadd.f32 %v602, %v4631
        %v4633 = vpop.f32.mrf.mxu0
        %v4634 = vadd.f32 %v603, %v4633
        %4635 = vmatmul.bf16.gmra.mxu0 %v4574
        %v4636 = vpop.f32.mrf.mxu0
        %v4637 = vadd.f32 %v604, %v4636
        %v4638 = vpop.f32.mrf.mxu0
        %v4639 = vadd.f32 %v605, %v4638
        %4640 = vmatmul.bf16.gmra.mxu0 %v4577
        %v4641 = vpop.f32.mrf.mxu0
        %v4642 = vadd.f32 %v606, %v4641
        %v4643 = vpop.f32.mrf.mxu0
        %v4644 = vadd.f32 %v607, %v4643
        %4645 = vmatmul.bf16.gmra.mxu0 %v4580
        %v4646 = vpop.f32.mrf.mxu0
        %v4647 = vadd.f32 %v608, %v4646
        %v4648 = vpop.f32.mrf.mxu0
        %v4649 = vadd.f32 %v609, %v4648
        %4650 = vmatmul.bf16.gmra.mxu0 %v4583
        %v4651 = vpop.f32.mrf.mxu0
        %v4652 = vadd.f32 %v610, %v4651
        %v4653 = vpop.f32.mrf.mxu0
        %v4654 = vadd.f32 %v611, %v4653
        %4655 = vmatmul.bf16.gmra.mxu0 %v4586
        %v4656 = vpop.f32.mrf.mxu0
        %v4657 = vadd.f32 %v612, %v4656
        %v4658 = vpop.f32.mrf.mxu0
        %v4659 = vadd.f32 %v613, %v4658
        %4660 = vdwg.mxu0
        %4661 = vmax.xlane.f32.xlu0 %v4622
        %v4662 = vpop.xlane.xlu0 %4661
        %4663 = vmax.xlane.f32.xlu0 %v4624
        %v4664 = vpop.xlane.xlu0 %4663
        %4665 = vmax.xlane.f32.xlu0 %v4627
        %v4666 = vpop.xlane.xlu0 %4665
        %4667 = vmax.xlane.f32.xlu0 %v4629
        %v4668 = vpop.xlane.xlu0 %4667
        %4669 = vmax.xlane.f32.xlu0 %v4632
        %v4670 = vpop.xlane.xlu0 %4669
        %4671 = vmax.xlane.f32.xlu0 %v4634
        %v4672 = vpop.xlane.xlu0 %4671
        %4673 = vmax.xlane.f32.xlu0 %v4637
        %v4674 = vpop.xlane.xlu0 %4673
        %4675 = vmax.xlane.f32.xlu0 %v4639
        %v4676 = vpop.xlane.xlu0 %4675
        %4677 = vmax.xlane.f32.xlu0 %v4642
        %v4678 = vpop.xlane.xlu0 %4677
        %4679 = vmax.xlane.f32.xlu0 %v4644
        %v4680 = vpop.xlane.xlu0 %4679
        %4681 = vmax.xlane.f32.xlu0 %v4647
        %v4682 = vpop.xlane.xlu0 %4681
        %4683 = vmax.xlane.f32.xlu0 %v4649
        %v4684 = vpop.xlane.xlu0 %4683
        %4685 = vmax.xlane.f32.xlu0 %v4652
        %v4686 = vpop.xlane.xlu0 %4685
        %4687 = vmax.xlane.f32.xlu0 %v4654
        %v4688 = vpop.xlane.xlu0 %4687
        %4689 = vmax.xlane.f32.xlu0 %v4657
        %v4690 = vpop.xlane.xlu0 %4689
        %4691 = vmax.xlane.f32.xlu0 %v4659
        %v4692 = vpop.xlane.xlu0 %4691
        %v4693 = vsub.f32 %v4622, %v4662
        %v4694 = vsub.f32 %v4624, %v4664
        %v4695 = vsub.f32 %v4627, %v4666
        %v4696 = vsub.f32 %v4629, %v4668
        %v4697 = vsub.f32 %v4632, %v4670
        %v4698 = vsub.f32 %v4634, %v4672
        %v4699 = vsub.f32 %v4637, %v4674
        %v4700 = vsub.f32 %v4639, %v4676
        %v4701 = vsub.f32 %v4642, %v4678
        %v4702 = vsub.f32 %v4644, %v4680
        %v4703 = vsub.f32 %v4647, %v4682
        %v4704 = vsub.f32 %v4649, %v4684
        %v4705 = vsub.f32 %v4652, %v4686
        %v4706 = vsub.f32 %v4654, %v4688
        %v4707 = vsub.f32 %v4657, %v4690
        %v4708 = vsub.f32 %v4659, %v4692
        %v4709 = vmul.f32 %v4693, 1.442695
        %v4710 = vpow.pop %v4709
        %v4711 = vmul.f32 %v4694, 1.442695
        %v4712 = vpow.pop %v4711
        %v4713 = vmul.f32 %v4695, 1.442695
        %v4714 = vpow.pop %v4713
        %v4715 = vmul.f32 %v4696, 1.442695
        %v4716 = vpow.pop %v4715
        %v4717 = vmul.f32 %v4697, 1.442695
        %v4718 = vpow.pop %v4717
        %v4719 = vmul.f32 %v4698, 1.442695
        %v4720 = vpow.pop %v4719
        %v4721 = vmul.f32 %v4699, 1.442695
        %v4722 = vpow.pop %v4721
        %v4723 = vmul.f32 %v4700, 1.442695
        %v4724 = vpow.pop %v4723
        %v4725 = vmul.f32 %v4701, 1.442695
        %v4726 = vpow.pop %v4725
        %v4727 = vmul.f32 %v4702, 1.442695
        %v4728 = vpow.pop %v4727
        %v4729 = vmul.f32 %v4703, 1.442695
        %v4730 = vpow.pop %v4729
        %v4731 = vmul.f32 %v4704, 1.442695
        %v4732 = vpow.pop %v4731
        %v4733 = vmul.f32 %v4705, 1.442695
        %v4734 = vpow.pop %v4733
        %v4735 = vmul.f32 %v4706, 1.442695
        %v4736 = vpow.pop %v4735
        %v4737 = vmul.f32 %v4707, 1.442695
        %v4738 = vpow.pop %v4737
        %v4739 = vmul.f32 %v4708, 1.442695
        %v4740 = vpow.pop %v4739
        %4741 = vadd.xlane.f32.xlu0 %v4710
        %v4742 = vpop.xlane.xlu0 %4741
        %4743 = vadd.xlane.f32.xlu0 %v4712
        %v4744 = vpop.xlane.xlu0 %4743
        %4745 = vadd.xlane.f32.xlu0 %v4714
        %v4746 = vpop.xlane.xlu0 %4745
        %4747 = vadd.xlane.f32.xlu0 %v4716
        %v4748 = vpop.xlane.xlu0 %4747
        %4749 = vadd.xlane.f32.xlu0 %v4718
        %v4750 = vpop.xlane.xlu0 %4749
        %4751 = vadd.xlane.f32.xlu0 %v4720
        %v4752 = vpop.xlane.xlu0 %4751
        %4753 = vadd.xlane.f32.xlu0 %v4722
        %v4754 = vpop.xlane.xlu0 %4753
        %4755 = vadd.xlane.f32.xlu0 %v4724
        %v4756 = vpop.xlane.xlu0 %4755
        %4757 = vadd.xlane.f32.xlu0 %v4726
        %v4758 = vpop.xlane.xlu0 %4757
        %4759 = vadd.xlane.f32.xlu0 %v4728
        %v4760 = vpop.xlane.xlu0 %4759
        %4761 = vadd.xlane.f32.xlu0 %v4730
        %v4762 = vpop.xlane.xlu0 %4761
        %4763 = vadd.xlane.f32.xlu0 %v4732
        %v4764 = vpop.xlane.xlu0 %4763
        %4765 = vadd.xlane.f32.xlu0 %v4734
        %v4766 = vpop.xlane.xlu0 %4765
        %4767 = vadd.xlane.f32.xlu0 %v4736
        %v4768 = vpop.xlane.xlu0 %4767
        %4769 = vadd.xlane.f32.xlu0 %v4738
        %v4770 = vpop.xlane.xlu0 %4769
        %4771 = vadd.xlane.f32.xlu0 %v4740
        %v4772 = vpop.xlane.xlu0 %4771
        %v4773 = vrcp.pop %v4742
        %v4774 = vrcp.pop %v4744
        %v4775 = vrcp.pop %v4746
        %v4776 = vrcp.pop %v4748
        %v4777 = vrcp.pop %v4750
        %v4778 = vrcp.pop %v4752
        %v4779 = vrcp.pop %v4754
        %v4780 = vrcp.pop %v4756
        %v4781 = vrcp.pop %v4758
        %v4782 = vrcp.pop %v4760
        %v4783 = vrcp.pop %v4762
        %v4784 = vrcp.pop %v4764
        %v4785 = vrcp.pop %v4766
        %v4786 = vrcp.pop %v4768
        %v4787 = vrcp.pop %v4770
        %v4788 = vrcp.pop %v4772
        %v4789 = vmul.f32 %v4710, %v4773
        %v4790 = vmul.f32 %v4712, %v4774
        %v4791 = vmul.f32 %v4714, %v4775
        %v4792 = vmul.f32 %v4716, %v4776
        %v4793 = vmul.f32 %v4718, %v4777
        %v4794 = vmul.f32 %v4720, %v4778
        %v4795 = vmul.f32 %v4722, %v4779
        %v4796 = vmul.f32 %v4724, %v4780
        %v4797 = vmul.f32 %v4726, %v4781
        %v4798 = vmul.f32 %v4728, %v4782
        %v4799 = vmul.f32 %v4730, %v4783
        %v4800 = vmul.f32 %v4732, %v4784
        %v4801 = vmul.f32 %v4734, %v4785
        %v4802 = vmul.f32 %v4736, %v4786
        %v4803 = vmul.f32 %v4738, %v4787
        %v4804 = vmul.f32 %v4740, %v4788
        %v4805 = vpack.c.bf16 %v4790, %v4789
        %v4806 = vpack.c.bf16 %v4792, %v4791
        %v4807 = vpack.c.bf16 %v4794, %v4793
        %v4808 = vpack.c.bf16 %v4796, %v4795
        %v4809 = vpack.c.bf16 %v4798, %v4797
        %v4810 = vpack.c.bf16 %v4800, %v4799
        %v4811 = vpack.c.bf16 %v4802, %v4801
        %v4812 = vpack.c.bf16 %v4804, %v4803
        %v4829 = vunpack.c.l.b16 %v4476
        %v4830 = vunpack.c.l.b16 %v4477
        %v4831 = vunpack.c.l.b16 %v4478
        %v4832 = vunpack.c.l.b16 %v4479
        %v4833 = vunpack.c.l.b16 %v4480
        %v4834 = vunpack.c.l.b16 %v4481
        %v4835 = vunpack.c.l.b16 %v4482
        %v4836 = vunpack.c.l.b16 %v4483
        %v4837 = vunpack.c.l.b16 %v4484
        %v4838 = vunpack.c.l.b16 %v4485
        %v4839 = vunpack.c.l.b16 %v4486
        %v4840 = vunpack.c.l.b16 %v4487
        %v4841 = vunpack.c.l.b16 %v4488
        %v4842 = vunpack.c.l.b16 %v4489
        %v4843 = vunpack.c.l.b16 %v4490
        %v4844 = vunpack.c.l.b16 %v4491
        %v4845 = vpack.c.b16 %v4830, %v4829
        %v4846 = vpack.c.b16 %v4832, %v4831
        %v4847 = vpack.c.b16 %v4834, %v4833
        %v4848 = vpack.c.b16 %v4836, %v4835
        %v4849 = vpack.c.b16 %v4838, %v4837
        %v4850 = vpack.c.b16 %v4840, %v4839
        %v4851 = vpack.c.b16 %v4842, %v4841
        %v4852 = vpack.c.b16 %v4844, %v4843
        %4853 = vrot.lane.b32.xlu0 %v4845, 72
        %v4854 = vpop.permute.xlu0 %4853
        %4855 = vrot.lane.b32.xlu0 %v4846, 72
        %v4856 = vpop.permute.xlu0 %4855
        %4857 = vrot.lane.b32.xlu0 %v4847, 72
        %v4858 = vpop.permute.xlu0 %4857
        %4859 = vrot.lane.b32.xlu0 %v4848, 72
        %v4860 = vpop.permute.xlu0 %4859
        %4861 = vrot.lane.b32.xlu0 %v4849, 72
        %v4862 = vpop.permute.xlu0 %4861
        %4863 = vrot.lane.b32.xlu0 %v4850, 72
        %v4864 = vpop.permute.xlu0 %4863
        %4865 = vrot.lane.b32.xlu0 %v4851, 72
        %v4866 = vpop.permute.xlu0 %4865
        %4867 = vrot.lane.b32.xlu0 %v4852, 72
        %v4868 = vpop.permute.xlu0 %4867
        %4877 = vmatpush.bf16.msra.mxu0 %v4868
        %4878 = vmatpush.bf16.msra.mxu0 %v4866
        %4879 = vmatpush.bf16.msra.mxu0 %v4864
        %4880 = vmatpush.bf16.msra.mxu0 %v4862
        %4881 = vmatpush.bf16.msra.mxu0 %v4860
        %4882 = vmatpush.bf16.msra.mxu0 %v4858
        %4883 = vmatpush.bf16.msra.mxu0 %v4856
        %4884 = vmatpush.bf16.msra.mxu0 %v4854
        %4885 = vmatmul.bf16.gmra.mxu0 %v4805
        %v4886 = vpop.f32.mrf.mxu0
        %v4887 = vadd.f32 0.0, %v4886
        %v4888 = vpop.f32.mrf.mxu0
        %v4889 = vadd.f32 0.0, %v4888
        %4890 = vmatmul.bf16.gmra.mxu0 %v4806
        %v4891 = vpop.f32.mrf.mxu0
        %v4892 = vadd.f32 0.0, %v4891
        %v4893 = vpop.f32.mrf.mxu0
        %v4894 = vadd.f32 0.0, %v4893
        %4895 = vmatmul.bf16.gmra.mxu0 %v4807
        %v4896 = vpop.f32.mrf.mxu0
        %v4897 = vadd.f32 0.0, %v4896
        %v4898 = vpop.f32.mrf.mxu0
        %v4899 = vadd.f32 0.0, %v4898
        %4900 = vmatmul.bf16.gmra.mxu0 %v4808
        %v4901 = vpop.f32.mrf.mxu0
        %v4902 = vadd.f32 0.0, %v4901
        %v4903 = vpop.f32.mrf.mxu0
        %v4904 = vadd.f32 0.0, %v4903
        %4905 = vmatmul.bf16.gmra.mxu0 %v4809
        %v4906 = vpop.f32.mrf.mxu0
        %v4907 = vadd.f32 0.0, %v4906
        %v4908 = vpop.f32.mrf.mxu0
        %v4909 = vadd.f32 0.0, %v4908
        %4910 = vmatmul.bf16.gmra.mxu0 %v4810
        %v4911 = vpop.f32.mrf.mxu0
        %v4912 = vadd.f32 0.0, %v4911
        %v4913 = vpop.f32.mrf.mxu0
        %v4914 = vadd.f32 0.0, %v4913
        %4915 = vmatmul.bf16.gmra.mxu0 %v4811
        %v4916 = vpop.f32.mrf.mxu0
        %v4917 = vadd.f32 0.0, %v4916
        %v4918 = vpop.f32.mrf.mxu0
        %v4919 = vadd.f32 0.0, %v4918
        %4920 = vmatmul.bf16.gmra.mxu0 %v4812
        %v4921 = vpop.f32.mrf.mxu0
        %v4922 = vadd.f32 0.0, %v4921
        %v4923 = vpop.f32.mrf.mxu0
        %v4924 = vadd.f32 0.0, %v4923
        %4925 = vdwg.mxu0
        %v4926 = vpack.c.bf16 %v4887, %v4887
        %v4927 = vpack.c.bf16 %v4889, %v4889
        %v4928 = vpack.c.bf16 %v4892, %v4892
        %v4929 = vpack.c.bf16 %v4894, %v4894
        %v4930 = vpack.c.bf16 %v4897, %v4897
        %v4931 = vpack.c.bf16 %v4899, %v4899
        %v4932 = vpack.c.bf16 %v4902, %v4902
        %v4933 = vpack.c.bf16 %v4904, %v4904
        %v4934 = vpack.c.bf16 %v4907, %v4907
        %v4935 = vpack.c.bf16 %v4909, %v4909
        %v4936 = vpack.c.bf16 %v4912, %v4912
        %v4937 = vpack.c.bf16 %v4914, %v4914
        %v4938 = vpack.c.bf16 %v4917, %v4917
        %v4939 = vpack.c.bf16 %v4919, %v4919
        %v4940 = vpack.c.bf16 %v4922, %v4922
        %v4941 = vpack.c.bf16 %v4924, %v4924
        %4958 = vrot.lane.b32.xlu0 %v4926, 56
        %v4959 = vpop.permute.xlu0 %4958
        %4960 = vrot.lane.b32.xlu0 %v4927, 56
        %v4961 = vpop.permute.xlu0 %4960
        %4962 = vrot.lane.b32.xlu0 %v4928, 56
        %v4963 = vpop.permute.xlu0 %4962
        %4964 = vrot.lane.b32.xlu0 %v4929, 56
        %v4965 = vpop.permute.xlu0 %4964
        %4966 = vrot.lane.b32.xlu0 %v4930, 56
        %v4967 = vpop.permute.xlu0 %4966
        %4968 = vrot.lane.b32.xlu0 %v4931, 56
        %v4969 = vpop.permute.xlu0 %4968
        %4970 = vrot.lane.b32.xlu0 %v4932, 56
        %v4971 = vpop.permute.xlu0 %4970
        %4972 = vrot.lane.b32.xlu0 %v4933, 56
        %v4973 = vpop.permute.xlu0 %4972
        %4974 = vrot.lane.b32.xlu0 %v4934, 56
        %v4975 = vpop.permute.xlu0 %4974
        %4976 = vrot.lane.b32.xlu0 %v4935, 56
        %v4977 = vpop.permute.xlu0 %4976
        %4978 = vrot.lane.b32.xlu0 %v4936, 56
        %v4979 = vpop.permute.xlu0 %4978
        %4980 = vrot.lane.b32.xlu0 %v4937, 56
        %v4981 = vpop.permute.xlu0 %4980
        %4982 = vrot.lane.b32.xlu0 %v4938, 56
        %v4983 = vpop.permute.xlu0 %4982
        %4984 = vrot.lane.b32.xlu0 %v4939, 56
        %v4985 = vpop.permute.xlu0 %4984
        %4986 = vrot.lane.b32.xlu0 %v4940, 56
        %v4987 = vpop.permute.xlu0 %4986
        %4988 = vrot.lane.b32.xlu0 %v4941, 56
        %v4989 = vpop.permute.xlu0 %4988
        %vm5006 = vcmask 519616
        %5007 = vst.msk [vmem:[#allocation3] sm:$0xf] %vm5006, %v4959
        %5008 = vst.msk [vmem:[#allocation3 + $0x4] sm:$0xf] %vm5006, %v4961
        %5009 = vst.msk [vmem:[#allocation3 + $0x8] sm:$0xf] %vm5006, %v4963
        %5010 = vst.msk [vmem:[#allocation3 + $0xc] sm:$0xf] %vm5006, %v4965
        %5011 = vst.msk [vmem:[#allocation3 + $0x10] sm:$0xf] %vm5006, %v4967
        %5012 = vst.msk [vmem:[#allocation3 + $0x14] sm:$0xf] %vm5006, %v4969
        %5013 = vst.msk [vmem:[#allocation3 + $0x18] sm:$0xf] %vm5006, %v4971
        %5014 = vst.msk [vmem:[#allocation3 + $0x1c] sm:$0xf] %vm5006, %v4973
        %5015 = vst.msk [vmem:[#allocation3 + $0x20] sm:$0xf] %vm5006, %v4975
        %5016 = vst.msk [vmem:[#allocation3 + $0x24] sm:$0xf] %vm5006, %v4977
        %5017 = vst.msk [vmem:[#allocation3 + $0x28] sm:$0xf] %vm5006, %v4979
        %5018 = vst.msk [vmem:[#allocation3 + $0x2c] sm:$0xf] %vm5006, %v4981
        %5019 = vst.msk [vmem:[#allocation3 + $0x30] sm:$0xf] %vm5006, %v4983
        %5020 = vst.msk [vmem:[#allocation3 + $0x34] sm:$0xf] %vm5006, %v4985
        %5021 = vst.msk [vmem:[#allocation3 + $0x38] sm:$0xf] %vm5006, %v4987
        %5022 = vst.msk [vmem:[#allocation3 + $0x3c] sm:$0xf] %vm5006, %v4989
        %v5023 = vld [vmem:[#allocation3] sm:$0xf]
        %v5024 = vld [vmem:[#allocation3 + $0x4] sm:$0xf]
        %v5025 = vld [vmem:[#allocation3 + $0x8] sm:$0xf]
        %v5026 = vld [vmem:[#allocation3 + $0xc] sm:$0xf]
        %v5027 = vld [vmem:[#allocation3 + $0x10] sm:$0xf]
        %v5028 = vld [vmem:[#allocation3 + $0x14] sm:$0xf]
        %v5029 = vld [vmem:[#allocation3 + $0x18] sm:$0xf]
        %v5030 = vld [vmem:[#allocation3 + $0x1c] sm:$0xf]
        %v5031 = vld [vmem:[#allocation3 + $0x20] sm:$0xf]
        %v5032 = vld [vmem:[#allocation3 + $0x24] sm:$0xf]
        %v5033 = vld [vmem:[#allocation3 + $0x28] sm:$0xf]
        %v5034 = vld [vmem:[#allocation3 + $0x2c] sm:$0xf]
        %v5035 = vld [vmem:[#allocation3 + $0x30] sm:$0xf]
        %v5036 = vld [vmem:[#allocation3 + $0x34] sm:$0xf]
        %v5037 = vld [vmem:[#allocation3 + $0x38] sm:$0xf]
        %v5038 = vld [vmem:[#allocation3 + $0x3c] sm:$0xf]
        %v5039 = vld [vmem:[%s4] sm:$0xf]
        %v5040 = vld [vmem:[%s4 + $0x4] sm:$0xf]
        %v5041 = vld [vmem:[%s4 + $0x8] sm:$0xf]
        %v5042 = vld [vmem:[%s4 + $0xc] sm:$0xf]
        %v5043 = vld [vmem:[%s4 + $0x10] sm:$0xf]
        %v5044 = vld [vmem:[%s4 + $0x14] sm:$0xf]
        %v5045 = vld [vmem:[%s4 + $0x18] sm:$0xf]
        %v5046 = vld [vmem:[%s4 + $0x1c] sm:$0xf]
        %v5047 = vld [vmem:[%s5] sm:$0x1]
        %v5049 = vperm.slane %v5047, 0
        %v5067 = vunpack.c.l.b16 %v5023
        %v5068 = vunpack.c.l.b16 %v5024
        %v5069 = vunpack.c.l.b16 %v5025
        %v5070 = vunpack.c.l.b16 %v5026
        %v5071 = vunpack.c.l.b16 %v5027
        %v5072 = vunpack.c.l.b16 %v5028
        %v5073 = vunpack.c.l.b16 %v5029
        %v5074 = vunpack.c.l.b16 %v5030
        %v5075 = vunpack.c.l.b16 %v5031
        %v5076 = vunpack.c.l.b16 %v5032
        %v5077 = vunpack.c.l.b16 %v5033
        %v5078 = vunpack.c.l.b16 %v5034
        %v5079 = vunpack.c.l.b16 %v5035
        %v5080 = vunpack.c.l.b16 %v5036
        %v5081 = vunpack.c.l.b16 %v5037
        %v5082 = vunpack.c.l.b16 %v5038
        %v5083 = vpack.c.b16 %v5068, %v5067
        %v5084 = vpack.c.b16 %v5070, %v5069
        %v5085 = vpack.c.b16 %v5072, %v5071
        %v5086 = vpack.c.b16 %v5074, %v5073
        %v5087 = vpack.c.b16 %v5076, %v5075
        %v5088 = vpack.c.b16 %v5078, %v5077
        %v5089 = vpack.c.b16 %v5080, %v5079
        %v5090 = vpack.c.b16 %v5082, %v5081
        %v5099 = vunpack.c.l.b16 %v5039
        %v5100 = vunpack.c.l.b16 %v5040
        %v5101 = vunpack.c.l.b16 %v5041
        %v5102 = vunpack.c.l.b16 %v5042
        %v5103 = vunpack.c.l.b16 %v5043
        %v5104 = vunpack.c.l.b16 %v5044
        %v5105 = vunpack.c.l.b16 %v5045
        %v5106 = vunpack.c.l.b16 %v5046
        %v5107 = vpack.c.b16 %v5100, %v5099
        %v5108 = vpack.c.b16 %v5102, %v5101
        %v5109 = vpack.c.b16 %v5104, %v5103
        %v5110 = vpack.c.b16 %v5106, %v5105
        %vm5115 = vcmask 523264
        %v5117 = vsel %vm5115, %v5083, 0
        %v5120 = vsel %vm5115, %v5084, 0
        %v5123 = vsel %vm5115, %v5085, 0
        %v5126 = vsel %vm5115, %v5086, 0
        %v5129 = vsel %vm5115, %v5087, 0
        %v5132 = vsel %vm5115, %v5088, 0
        %v5135 = vsel %vm5115, %v5089, 0
        %v5138 = vsel %vm5115, %v5090, 0
        %5140 = vmatpush.bf16.msra.mxu0 0
        %5141 = vmatpush.bf16.msra.mxu0 0
        %5142 = vmatpush.bf16.msra.mxu0 0
        %5143 = vmatpush.bf16.msra.mxu0 0
        %5144 = vmatpush.bf16.msra.mxu0 %v5110
        %5145 = vmatpush.bf16.msra.mxu0 %v5109
        %5146 = vmatpush.bf16.msra.mxu0 %v5108
        %5147 = vmatpush.bf16.msra.mxu0 %v5107
        %5148 = vmatmul.bf16.gmra.mxu0 %v5117
        %v5149 = vpop.f32.mrf.mxu0
        %v5150 = vadd.f32 %v5049, %v5149
        %v5151 = vpop.f32.mrf.mxu0
        %v5152 = vadd.f32 %v5049, %v5151
        %5153 = vmatmul.bf16.gmra.mxu0 %v5120
        %v5154 = vpop.f32.mrf.mxu0
        %v5155 = vadd.f32 %v5049, %v5154
        %v5156 = vpop.f32.mrf.mxu0
        %v5157 = vadd.f32 %v5049, %v5156
        %5158 = vmatmul.bf16.gmra.mxu0 %v5123
        %v5159 = vpop.f32.mrf.mxu0
        %v5160 = vadd.f32 %v5049, %v5159
        %v5161 = vpop.f32.mrf.mxu0
        %v5162 = vadd.f32 %v5049, %v5161
        %5163 = vmatmul.bf16.gmra.mxu0 %v5126
        %v5164 = vpop.f32.mrf.mxu0
        %v5165 = vadd.f32 %v5049, %v5164
        %v5166 = vpop.f32.mrf.mxu0
        %v5167 = vadd.f32 %v5049, %v5166
        %5168 = vmatmul.bf16.gmra.mxu0 %v5129
        %v5169 = vpop.f32.mrf.mxu0
        %v5170 = vadd.f32 %v5049, %v5169
        %v5171 = vpop.f32.mrf.mxu0
        %v5172 = vadd.f32 %v5049, %v5171
        %5173 = vmatmul.bf16.gmra.mxu0 %v5132
        %v5174 = vpop.f32.mrf.mxu0
        %v5175 = vadd.f32 %v5049, %v5174
        %v5176 = vpop.f32.mrf.mxu0
        %v5177 = vadd.f32 %v5049, %v5176
        %5178 = vmatmul.bf16.gmra.mxu0 %v5135
        %v5179 = vpop.f32.mrf.mxu0
        %v5180 = vadd.f32 %v5049, %v5179
        %v5181 = vpop.f32.mrf.mxu0
        %v5182 = vadd.f32 %v5049, %v5181
        %5183 = vmatmul.bf16.gmra.mxu0 %v5138
        %v5184 = vpop.f32.mrf.mxu0
        %v5185 = vadd.f32 %v5049, %v5184
        %v5186 = vpop.f32.mrf.mxu0
        %v5187 = vadd.f32 %v5049, %v5186
        %5188 = vdwg.mxu0
        %v5189 = vmax.f32 %v5150, 0.0
        %v5190 = vmax.f32 %v5152, 0.0
        %v5191 = vmax.f32 %v5155, 0.0
        %v5192 = vmax.f32 %v5157, 0.0
        %v5193 = vmax.f32 %v5160, 0.0
        %v5194 = vmax.f32 %v5162, 0.0
        %v5195 = vmax.f32 %v5165, 0.0
        %v5196 = vmax.f32 %v5167, 0.0
        %v5197 = vmax.f32 %v5170, 0.0
        %v5198 = vmax.f32 %v5172, 0.0
        %v5199 = vmax.f32 %v5175, 0.0
        %v5200 = vmax.f32 %v5177, 0.0
        %v5201 = vmax.f32 %v5180, 0.0
        %v5202 = vmax.f32 %v5182, 0.0
        %v5203 = vmax.f32 %v5185, 0.0
        %v5204 = vmax.f32 %v5187, 0.0
        %5205 = vst.msk [vmem:[%s244] sm:$0xff] %vm5115, %v5189
        %5206 = vst.msk [vmem:[%s244 + $0x8] sm:$0xff] %vm5115, %v5190
        %5207 = vst.msk [vmem:[%s244 + $0x10] sm:$0xff] %vm5115, %v5191
        %5208 = vst.msk [vmem:[%s244 + $0x18] sm:$0xff] %vm5115, %v5192
        %5209 = vst.msk [vmem:[%s244 + $0x20] sm:$0xff] %vm5115, %v5193
        %5210 = vst.msk [vmem:[%s244 + $0x28] sm:$0xff] %vm5115, %v5194
        %5211 = vst.msk [vmem:[%s244 + $0x30] sm:$0xff] %vm5115, %v5195
        %5212 = vst.msk [vmem:[%s244 + $0x38] sm:$0xff] %vm5115, %v5196
        %5213 = vst.msk [vmem:[%s244 + $0x40] sm:$0xff] %vm5115, %v5197
        %5214 = vst.msk [vmem:[%s244 + $0x48] sm:$0xff] %vm5115, %v5198
        %5215 = vst.msk [vmem:[%s244 + $0x50] sm:$0xff] %vm5115, %v5199
        %5216 = vst.msk [vmem:[%s244 + $0x58] sm:$0xff] %vm5115, %v5200
        %5217 = vst.msk [vmem:[%s244 + $0x60] sm:$0xff] %vm5115, %v5201
        %5218 = vst.msk [vmem:[%s244 + $0x68] sm:$0xff] %vm5115, %v5202
        %5219 = vst.msk [vmem:[%s244 + $0x70] sm:$0xff] %vm5115, %v5203
        %5220 = vst.msk [vmem:[%s244 + $0x78] sm:$0xff] %vm5115, %v5204
        %s5221 = sand.u32 %s159, 1
        %s5222 = scalar_lea.sflag [#allocation5], %s5221
        %s5223 = sand.u32 %s159, 1
        %s5224 = smul.addr %s5223, 128
        %s5225 = scalar_lea.vmem [#allocation4], %s5224
        // Predicated region
        $region45: #{temporal_attention.1} parent=43 // pred_check
          %p5226 = pneg %p169
        $region46: #{temporal_attention.1} parent=43 // pred_check_branch
          %5228 = sbr.rel (%p5226) target = $region48
        $region47: #{temporal_attention.1} parent=43 // pred_region
          %5230 = vsyncadd %s5222, 0
          %s5231 = smul.addr %s20, 16
          %s5232 = smul.addr %s5231, 8
          %s5233 = scalar_lea.hbm %s6, %s5232
          %s5234 = sshll.u32 %s5225, 4
          %s5235 = int_to_ptr.vmem [resolvable:$true] %s5234
          %s5236 = sshll.u32 %s5233, 4
          %s5237 = int_to_ptr.hbm [resolvable:$true] %s5236
          %5242 = dma.vmem_to_hbm [thread:$0]  %s5235, 2048, %s5237, %s5222, 128, 128, 8
        $region48: #{temporal_attention.1} parent=43 // pred_fallthru
          _
      $region44: #{temporal_attention.1} parent=5 // pred_fallthru
        _
      %p5243 = scmp.le.s32.totalorder 2, %s15
      // Predicated region
      $region49: #{temporal_attention.1} parent=5 // pred_check
        %p5244 = pneg %p5243
      $region50: #{temporal_attention.1} parent=5 // pred_check_branch
        %5246 = sbr.rel (%p5244) target = $region52
      $region51: #{temporal_attention.1} parent=5 // pred_region
        %s5247 = ssub.s32 %s15, 2
        // Predicated region
        $region53: #{temporal_attention.1} parent=51 // pred_check
          %p5248 = pneg %p175
        $region54: #{temporal_attention.1} parent=51 // pred_check_branch
          %5250 = sbr.rel (%p5248) target = $region56
        $region55: #{temporal_attention.1} parent=51 // pred_region
          %s5251 = sand.u32 %s160, 1
          %s5252 = scalar_lea.sflag [#allocation5], %s5251
          %s5253 = sand.u32 %s160, 1
          %s5254 = smul.addr %s5253, 128
          %s5255 = scalar_lea.vmem [#allocation4], %s5254
          %5257 = dma.done %s5252, 2048
        $region56: #{temporal_attention.1} parent=51 // pred_fallthru
          _
      $region52: #{temporal_attention.1} parent=5 // pred_fallthru
        _
    $region6: #{temporal_attention.1} parent=1 // loop_footer
      %s19 = sadd.s32 1, %s15
    $region7: #{temporal_attention.1} parent=1 // loop_footer_branch
      %14 = sbr.rel target = $region3
    $region8: #{temporal_attention.1} parent=1 // loop_exit
      _
    %5258 = vsyncpa [#allocation5], 1
    %s5259 = scalar_lea.sflag [#allocation5], 1
    %5260 = vsyncpa %s5259, 1

</llo_original>
